<compile_context>
chip_gen: v7x
topology: tpu7x:2x2x1
jax: 0.10.0
libtpu: 0.0.40
codegen_flags: <defaults>
</compile_context>

<pallas_src>
import functools
import math

import jax
import jax.numpy as jnp
from jax.experimental import pallas as pl
from jax.experimental.pallas import tpu as pltpu

HIDDEN = 1024
BN_EPS = 1e-3


# ---------------------------------------------------------------------------
# helpers
# ---------------------------------------------------------------------------
def _round_up(x, m):
    return ((x + m - 1) // m) * m


def _pick_div_tile(total, cap, step=128):
    """Largest multiple of `step` dividing `total` (a multiple of step), <= cap."""
    t = min(total, cap)
    while total % t:
        t -= step
    return t


# ---------------------------------------------------------------------------
# Kernel 1: conv-as-matmul + train-mode BatchNorm + ReLU, fully fused.
#   grid = (nj, nk); output block (Mp, tn) resident across k; f32 scratch
#   accumulator; BN/ReLU applied in the last-k epilogue; bf16 output.
#   Padded rows (>= m_true) are exactly zero on input (no conv bias), so the
#   column sums over all Mp rows equal sums over the true batch; epilogue
#   re-zeros padded rows so the invariant holds for the next layer.
# ---------------------------------------------------------------------------
def _conv_bn_relu_kernel(a_ref, w_ref, gamma_ref, beta_ref, o_ref, acc_ref, *,
                         m_true, eps):
    k = pl.program_id(1)

    @pl.when(k == 0)
    def _():
        acc_ref[...] = jnp.zeros_like(acc_ref)

    acc_ref[...] += jnp.dot(a_ref[...], w_ref[...],
                            preferred_element_type=jnp.float32)

    @pl.when(k == pl.num_programs(1) - 1)
    def _():
        y = acc_ref[...]                                         # (Mp, tn) f32
        row = jax.lax.broadcasted_iota(jnp.int32, y.shape, 0)
        rmask = row < m_true
        inv_m = 1.0 / m_true
        mean = jnp.sum(y, axis=0, keepdims=True) * inv_m         # pad rows == 0
        diff = jnp.where(rmask, y - mean, 0.0)                   # shifted 2-pass
        var = jnp.sum(diff * diff, axis=0, keepdims=True) * inv_m
        scale = gamma_ref[...] * jax.lax.rsqrt(var + eps)
        h = jnp.maximum(diff * scale + beta_ref[...], 0.0)
        o_ref[...] = jnp.where(rmask, h, 0.0).astype(o_ref.dtype)


def conv_bn_relu(a, w_p, gamma2, beta2, m_true):
    """a: (M, K) float/bf16 (rows >= m_true must be zero); w_p: (Kp, Np) bf16.
    Returns bf16 (Mp, Np) activations, padded rows zeroed."""
    M, K = a.shape
    Kp, Np = w_p.shape
    Mp = _round_up(M, 16)
    tn = _pick_div_tile(Np, 512)          # Np = 1024 -> tn = 512 (2 j-steps)
    tk = _pick_div_tile(Kp, 512)          # Kp padded to x512 -> tk = 512

    if (M, K) != (Mp, Kp):
        a = jnp.pad(a, ((0, Mp - M), (0, Kp - K)))
    a = a.astype(jnp.bfloat16)

    return pl.pallas_call(
        functools.partial(_conv_bn_relu_kernel, m_true=m_true, eps=BN_EPS),
        out_shape=jax.ShapeDtypeStruct((Mp, Np), jnp.bfloat16),
        grid=(Np // tn, Kp // tk),
        in_specs=[pl.BlockSpec((Mp, tk), lambda j, k: (0, k)),
                  pl.BlockSpec((tk, tn), lambda j, k: (k, j)),
                  pl.BlockSpec((1, tn), lambda j, k: (0, j)),
                  pl.BlockSpec((1, tn), lambda j, k: (0, j))],
        out_specs=pl.BlockSpec((Mp, tn), lambda j, k: (0, j)),
        scratch_shapes=[pltpu.VMEM((Mp, tn), jnp.float32)],
        compiler_params=pltpu.CompilerParams(
            dimension_semantics=("parallel", "arbitrary")),
    )(a, w_p, gamma2, beta2)


# ---------------------------------------------------------------------------
# Kernel 2: merged class+bbox head: matmul + bias, with the class softmax
# fused into the epilogue as a second output.  Single grid step (K = 1024 and
# N <= a few hundred easily fit VMEM on every generation).
# ---------------------------------------------------------------------------
def _head_kernel(a_ref, w_ref, bias_ref, o_ref, probs_ref, *, num_classes):
    y = jnp.dot(a_ref[...], w_ref[...], preferred_element_type=jnp.float32)
    y = y + bias_ref[...]
    o_ref[...] = y                                               # logits || bbox
    col = jax.lax.broadcasted_iota(jnp.int32, y.shape, 1)
    xm = jnp.where(col < num_classes, y, -jnp.inf)               # mask bbox/pad
    m = jnp.max(xm, axis=-1, keepdims=True)
    e = jnp.exp(xm - m)
    denom = jnp.sum(e, axis=-1, keepdims=True)
    p = e * pl.reciprocal(denom, approx=True)
    probs_ref[...] = p[:, :probs_ref.shape[1]]


def head_class_bbox(h, w_p, bias_p, num_classes):
    """h: (Mp, 1024) bf16; w_p: (1024, Np) bf16 = [wc || wb] padded;
    bias_p: (1, Np) f32.  Returns (out (Mp, Np) f32, probs (Mp, Cp) f32)."""
    Mp, Kp = h.shape
    _, Np = w_p.shape
    Cp = min(_round_up(num_classes, 128), Np)

    return pl.pallas_call(
        functools.partial(_head_kernel, num_classes=num_classes),
        out_shape=(jax.ShapeDtypeStruct((Mp, Np), jnp.float32),
                   jax.ShapeDtypeStruct((Mp, Cp), jnp.float32)),
        grid=(1,),
        in_specs=[pl.BlockSpec((Mp, Kp), lambda i: (0, 0)),
                  pl.BlockSpec((Kp, Np), lambda i: (0, 0)),
                  pl.BlockSpec((1, Np), lambda i: (0, 0))],
        out_specs=(pl.BlockSpec((Mp, Np), lambda i: (0, 0)),
                   pl.BlockSpec((Mp, Cp), lambda i: (0, 0))),
        compiler_params=pltpu.CompilerParams(
            dimension_semantics=("arbitrary",)),
    )(h, w_p, bias_p)


# ---------------------------------------------------------------------------
# parameter prep (transpose / pad / bf16 cast hoisted out of the forward)
# ---------------------------------------------------------------------------
def _prep_conv_weight(w_kn):
    """(K, N) -> bf16 (round_up(K,512), round_up(N,128))."""
    K, N = w_kn.shape
    Kp, Np = _round_up(K, 512), _round_up(N, 128)
    return jnp.pad(w_kn, ((0, Kp - K), (0, Np - N))).astype(jnp.bfloat16)


def init_classifier_params(key, depth, num_classes, pool_size):
    k1, k2, k3, k4, k5, k6 = jax.random.split(key, 6)
    K1 = depth * pool_size * pool_size

    def uni(k, shape, fan_in):
        bound = 1.0 / math.sqrt(fan_in)
        return jax.random.uniform(k, shape, jnp.float32, -bound, bound)

    # conv1 / conv2 biases dropped: exactly cancelled by train-mode BatchNorm.
    w1 = uni(k1, (HIDDEN, depth, pool_size, pool_size), K1)
    w1m = w1.reshape(HIDDEN, K1).T                       # (K1, 1024)
    w2 = uni(k2, (HIDDEN, HIDDEN, 1, 1), HIDDEN)
    w2m = w2.reshape(HIDDEN, HIDDEN).T                   # (1024, 1024)

    # merged class+bbox head: [wc || wb] along N, biases concatenated.
    wc = uni(k3, (num_classes, HIDDEN), HIDDEN)
    bc = uni(k4, (num_classes,), HIDDEN)
    wb = uni(k5, (num_classes * 4, HIDDEN), HIDDEN)
    bb = uni(k6, (num_classes * 4,), HIDDEN)
    w_head = jnp.concatenate([wc.T, wb.T], axis=1)       # (1024, 5C)
    b_head = jnp.concatenate([bc, bb])                   # (5C,)
    Nh = w_head.shape[1]
    Np = _round_up(Nh, 128)
    w_head_p = jnp.pad(w_head, ((0, 0), (0, Np - Nh))).astype(jnp.bfloat16)
    b_head_p = jnp.pad(b_head, (0, Np - Nh)).reshape(1, Np).astype(jnp.float32)

    return {
        'w1': _prep_conv_weight(w1m),
        'bn1_g': jnp.ones((1, HIDDEN), jnp.float32),
        'bn1_b': jnp.zeros((1, HIDDEN), jnp.float32),
        'w2': _prep_conv_weight(w2m),
        'bn2_g': jnp.ones((1, HIDDEN), jnp.float32),
        'bn2_b': jnp.zeros((1, HIDDEN), jnp.float32),
        'w_head': w_head_p,
        'b_head': b_head_p,
    }


# ---------------------------------------------------------------------------
# forward (train mode, non-visualize phase)
# ---------------------------------------------------------------------------
def make_classifier_forward(num_classes):
    def forward(params, x):
        n = x.shape[0]
        # conv1: kernel_size == spatial size -> pure matmul over (ci, kh, kw)
        a = x.reshape(n, -1)
        h1 = conv_bn_relu(a, params['w1'], params['bn1_g'], params['bn1_b'], n)
        # TODO(synk): config.DEV.SWITCH / CLS_MERGE_FEAT 'beta' merge branch
        # (simple_add / linear_add of small_feat_input) not implemented; it is
        # disabled by default in the reference config.
        # conv2: 1x1 conv -> matmul; h1 stays padded (Mp, 1024) bf16.
        h2 = conv_bn_relu(h1, params['w2'], params['bn2_g'], params['bn2_b'], n)
        # merged class/bbox head with fused softmax
        out, probs_p = head_class_bbox(h2, params['w_head'], params['b_head'],
                                       num_classes)
        logits = out[:n, :num_classes]
        probs = probs_p[:n, :num_classes]
        bbox = out[:n, num_classes:5 * num_classes].reshape(n, num_classes, 4)
        # non-visualize phase: [mrcnn_class_logits, mrcnn_probs, mrcnn_bbox]
        return logits, probs, bbox
    return forward


# ---------------------------------------------------------------------------
if __name__ == "__main__":
    DEPTH, NUM_CLASSES, POOL_SIZE, N_ROIS = 32, 8, 4, 16

    key = jax.random.PRNGKey(0)
    kp, kx = jax.random.split(key)
    params = init_classifier_params(kp, DEPTH, NUM_CLASSES, POOL_SIZE)
    x = jax.random.normal(kx, (N_ROIS, DEPTH, POOL_SIZE, POOL_SIZE), jnp.float32)

    fwd = jax.jit(make_classifier_forward(NUM_CLASSES))
    logits, probs, bbox = jax.block_until_ready(fwd(params, x))

    assert logits.shape == (N_ROIS, NUM_CLASSES), logits.shape
    assert probs.shape == (N_ROIS, NUM_CLASSES), probs.shape
    assert bbox.shape == (N_ROIS, NUM_CLASSES, 4), bbox.shape
    assert bool(jnp.all(jnp.isfinite(logits)))
    assert bool(jnp.all(jnp.isfinite(probs)))
    assert bool(jnp.all(jnp.isfinite(bbox)))
    assert bool(jnp.all(jnp.abs(probs.sum(axis=1) - 1.0) < 5e-2))
    print("KERNEL_OK")
</pallas_src>

<mosaic_0001>
module attributes {stable_mosaic.version = 11 : i64} {
  func.func @_conv_bn_relu_kernel(%arg0: i32, %arg1: i32, %arg2: memref<16x512xbf16, #tpu.memory_space<vmem>>, %arg3: memref<512x512xbf16, #tpu.memory_space<vmem>>, %arg4: memref<1x512xf32, #tpu.memory_space<vmem>>, %arg5: memref<1x512xf32, #tpu.memory_space<vmem>>, %arg6: memref<16x512xbf16, #tpu.memory_space<vmem>>, %arg7: memref<16x512xf32, #tpu.memory_space<vmem>>) attributes {dimension_semantics = [#tpu.dimension_semantics<parallel>, #tpu.dimension_semantics<arbitrary>], iteration_bounds = array<i64: 2, 1>, scalar_prefetch = 0 : i64, scratch_operands = 1 : i64, tpu.core_type = #tpu.core_type<tc>, window_params = [{transform_indices = @transform_0, window_bounds = array<i64: 16, 512>}, {transform_indices = @transform_1, window_bounds = array<i64: 512, 512>}, {transform_indices = @transform_2, window_bounds = array<i64: 1, 512>}, {transform_indices = @transform_3, window_bounds = array<i64: 1, 512>}, {transform_indices = @transform_4, window_bounds = array<i64: 16, 512>}]} {
    %c0_i32 = arith.constant 0 : i32
    %0 = arith.cmpi eq, %arg1, %c0_i32 : i32
    %1 = arith.extui %0 : i1 to i32
    %c0_i32_0 = arith.constant 0 : i32
    %2 = arith.cmpi ne, %1, %c0_i32_0 : i32
    scf.if %2 {
      %cst_10 = arith.constant 0.000000e+00 : f32
      %12 = vector.broadcast %cst_10 : f32 to vector<16x512xf32>
      %c0_11 = arith.constant 0 : index
      %c0_12 = arith.constant 0 : index
      %13 = vector.load %arg7[%c0_11, %c0_12] : memref<16x512xf32, #tpu.memory_space<vmem>>, vector<16x512xf32>
      tpu.vector_store %arg7[%c0_11, %c0_12], %12 {strides = array<i32>} : memref<16x512xf32, #tpu.memory_space<vmem>>, vector<16x512xf32>,
    } else {
    }
    %c0 = arith.constant 0 : index
    %c0_1 = arith.constant 0 : index
    %3 = vector.load %arg7[%c0, %c0_1] : memref<16x512xf32, #tpu.memory_space<vmem>>, vector<16x512xf32>
    %c0_2 = arith.constant 0 : index
    %c0_3 = arith.constant 0 : index
    %4 = vector.load %arg2[%c0_2, %c0_3] : memref<16x512xbf16, #tpu.memory_space<vmem>>, vector<16x512xbf16>
    %c0_4 = arith.constant 0 : index
    %c0_5 = arith.constant 0 : index
    %5 = vector.load %arg3[%c0_4, %c0_5] : memref<512x512xbf16, #tpu.memory_space<vmem>>, vector<512x512xbf16>
    %cst = arith.constant dense<0.000000e+00> : vector<16x512xf32>
    %6 = tpu.matmul %4, %5, %cst {dimension_numbers = #tpu.dot_dimension_numbers<[1], [0], [0], [1], [0, 0, 1, 1], [], []>} : vector<16x512xbf16>, vector<512x512xbf16>, vector<16x512xf32> -> vector<16x512xf32>
    %7 = arith.addf %3, %6 : vector<16x512xf32>
    %c0_6 = arith.constant 0 : index
    %c0_7 = arith.constant 0 : index
    %8 = vector.load %arg7[%c0_6, %c0_7] : memref<16x512xf32, #tpu.memory_space<vmem>>, vector<16x512xf32>
    tpu.vector_store %arg7[%c0_6, %c0_7], %7 {strides = array<i32>} : memref<16x512xf32, #tpu.memory_space<vmem>>, vector<16x512xf32>,
    %c0_i32_8 = arith.constant 0 : i32
    %9 = arith.cmpi eq, %arg1, %c0_i32_8 : i32
    %10 = arith.extui %9 : i1 to i32
    %c0_i32_9 = arith.constant 0 : i32
    %11 = arith.cmpi ne, %10, %c0_i32_9 : i32
    scf.if %11 {
      %c0_10 = arith.constant 0 : index
      %c0_11 = arith.constant 0 : index
      %12 = vector.load %arg7[%c0_10, %c0_11] : memref<16x512xf32, #tpu.memory_space<vmem>>, vector<16x512xf32>
      %13 = tpu.iota {dimensions = array<i32: 0>} : vector<16x512xi32>
      %c16_i32 = arith.constant 16 : i32
      %14 = vector.broadcast %c16_i32 : i32 to vector<16x512xi32>
      %15 = arith.cmpi slt, %13, %14 : vector<16x512xi32>
      %cst_12 = arith.constant dense<0.000000e+00> : vector<512xf32>
      %16 = vector.multi_reduction <add>, %12, %cst_12 [0] : vector<16x512xf32> to vector<512xf32>
      %17 = vector.shape_cast %16 : vector<512xf32> to vector<1x512xf32>
      %cst_13 = arith.constant 6.250000e-02 : f32
      %18 = vector.broadcast %cst_13 : f32 to vector<1x512xf32>
      %19 = arith.mulf %17, %18 : vector<1x512xf32>
      %20 = vector.broadcast %19 : vector<1x512xf32> to vector<16x512xf32>
      %21 = arith.subf %12, %20 : vector<16x512xf32>
      %cst_14 = arith.constant 0.000000e+00 : f32
      %22 = vector.broadcast %cst_14 : f32 to vector<16x512xf32>
      %23 = arith.select %15, %21, %22 : vector<16x512xi1>, vector<16x512xf32>
      %24 = arith.mulf %23, %23 : vector<16x512xf32>
      %cst_15 = arith.constant dense<0.000000e+00> : vector<512xf32>
      %25 = vector.multi_reduction <add>, %24, %cst_15 [0] : vector<16x512xf32> to vector<512xf32>
      %26 = vector.shape_cast %25 : vector<512xf32> to vector<1x512xf32>
      %cst_16 = arith.constant 6.250000e-02 : f32
      %27 = vector.broadcast %cst_16 : f32 to vector<1x512xf32>
      %28 = arith.mulf %26, %27 : vector<1x512xf32>
      %c0_17 = arith.constant 0 : index
      %c0_18 = arith.constant 0 : index
      %29 = vector.load %arg4[%c0_17, %c0_18] : memref<1x512xf32, #tpu.memory_space<vmem>>, vector<1x512xf32>
      %cst_19 = arith.constant 1.000000e-03 : f32
      %30 = vector.broadcast %cst_19 : f32 to vector<1x512xf32>
      %31 = arith.addf %28, %30 : vector<1x512xf32>
      %32 = math.rsqrt %31 : vector<1x512xf32>
      %33 = arith.mulf %29, %32 : vector<1x512xf32>
      %34 = vector.broadcast %33 : vector<1x512xf32> to vector<16x512xf32>
      %35 = arith.mulf %23, %34 : vector<16x512xf32>
      %c0_20 = arith.constant 0 : index
      %c0_21 = arith.constant 0 : index
      %36 = vector.load %arg5[%c0_20, %c0_21] : memref<1x512xf32, #tpu.memory_space<vmem>>, vector<1x512xf32>
      %37 = vector.broadcast %36 : vector<1x512xf32> to vector<16x512xf32>
      %38 = arith.addf %35, %37 : vector<16x512xf32>
      %cst_22 = arith.constant 0.000000e+00 : f32
      %39 = vector.broadcast %cst_22 : f32 to vector<16x512xf32>
      %40 = arith.maximumf %38, %39 : vector<16x512xf32>
      %cst_23 = arith.constant 0.000000e+00 : f32
      %41 = vector.broadcast %cst_23 : f32 to vector<16x512xf32>
      %42 = arith.select %15, %40, %41 : vector<16x512xi1>, vector<16x512xf32>
      %43 = arith.truncf %42 : vector<16x512xf32> to vector<16x512xbf16>
      %c0_24 = arith.constant 0 : index
      %c0_25 = arith.constant 0 : index
      %44 = vector.load %arg6[%c0_24, %c0_25] : memref<16x512xbf16, #tpu.memory_space<vmem>>, vector<16x512xbf16>
      tpu.vector_store %arg6[%c0_24, %c0_25], %43 {strides = array<i32>} : memref<16x512xbf16, #tpu.memory_space<vmem>>, vector<16x512xbf16>,
    } else {
    }
    return
  }
  func.func @transform_0(%arg0: i32, %arg1: i32) -> (i32, i32) {
    %c0_i32 = arith.constant 0 : i32
    %c0_i32_0 = arith.constant 0 : i32
    return %c0_i32, %arg1 : i32, i32
  }
  func.func @transform_1(%arg0: i32, %arg1: i32) -> (i32, i32) {
    %c0_i32 = arith.constant 0 : i32
    return %arg1, %arg0 : i32, i32
  }
  func.func @transform_2(%arg0: i32, %arg1: i32) -> (i32, i32) {
    %c0_i32 = arith.constant 0 : i32
    %c0_i32_0 = arith.constant 0 : i32
    return %c0_i32, %arg0 : i32, i32
  }
  func.func @transform_3(%arg0: i32, %arg1: i32) -> (i32, i32) {
    %c0_i32 = arith.constant 0 : i32
    %c0_i32_0 = arith.constant 0 : i32
    return %c0_i32, %arg0 : i32, i32
  }
  func.func @transform_4(%arg0: i32, %arg1: i32) -> (i32, i32) {
    %c0_i32 = arith.constant 0 : i32
    %c0_i32_0 = arith.constant 0 : i32
    return %c0_i32, %arg0 : i32, i32
  }
}

module attributes {stable_mosaic.version = 11 : i64} {
  func.func @_conv_bn_relu_kernel(%arg0: i32, %arg1: i32, %arg2: memref<16x512xbf16, #tpu.memory_space<vmem>>, %arg3: memref<512x512xbf16, #tpu.memory_space<vmem>>, %arg4: memref<1x512xf32, #tpu.memory_space<vmem>>, %arg5: memref<1x512xf32, #tpu.memory_space<vmem>>, %arg6: memref<16x512xbf16, #tpu.memory_space<vmem>>, %arg7: memref<16x512xf32, #tpu.memory_space<vmem>>) attributes {dimension_semantics = [#tpu.dimension_semantics<parallel>, #tpu.dimension_semantics<arbitrary>], iteration_bounds = array<i64: 2, 2>, scalar_prefetch = 0 : i64, scratch_operands = 1 : i64, tpu.core_type = #tpu.core_type<tc>, window_params = [{transform_indices = @transform_0, window_bounds = array<i64: 16, 512>}, {transform_indices = @transform_1, window_bounds = array<i64: 512, 512>}, {transform_indices = @transform_2, window_bounds = array<i64: 1, 512>}, {transform_indices = @transform_3, window_bounds = array<i64: 1, 512>}, {transform_indices = @transform_4, window_bounds = array<i64: 16, 512>}]} {
    %c0_i32 = arith.constant 0 : i32
    %0 = arith.cmpi eq, %arg1, %c0_i32 : i32
    %1 = arith.extui %0 : i1 to i32
    %c0_i32_0 = arith.constant 0 : i32
    %2 = arith.cmpi ne, %1, %c0_i32_0 : i32
    scf.if %2 {
      %cst_9 = arith.constant 0.000000e+00 : f32
      %12 = vector.broadcast %cst_9 : f32 to vector<16x512xf32>
      %c0_10 = arith.constant 0 : index
      %c0_11 = arith.constant 0 : index
      %13 = vector.load %arg7[%c0_10, %c0_11] : memref<16x512xf32, #tpu.memory_space<vmem>>, vector<16x512xf32>
      tpu.vector_store %arg7[%c0_10, %c0_11], %12 {strides = array<i32>} : memref<16x512xf32, #tpu.memory_space<vmem>>, vector<16x512xf32>,
    } else {
    }
    %c0 = arith.constant 0 : index
    %c0_1 = arith.constant 0 : index
    %3 = vector.load %arg7[%c0, %c0_1] : memref<16x512xf32, #tpu.memory_space<vmem>>, vector<16x512xf32>
    %c0_2 = arith.constant 0 : index
    %c0_3 = arith.constant 0 : index
    %4 = vector.load %arg2[%c0_2, %c0_3] : memref<16x512xbf16, #tpu.memory_space<vmem>>, vector<16x512xbf16>
    %c0_4 = arith.constant 0 : index
    %c0_5 = arith.constant 0 : index
    %5 = vector.load %arg3[%c0_4, %c0_5] : memref<512x512xbf16, #tpu.memory_space<vmem>>, vector<512x512xbf16>
    %cst = arith.constant dense<0.000000e+00> : vector<16x512xf32>
    %6 = tpu.matmul %4, %5, %cst {dimension_numbers = #tpu.dot_dimension_numbers<[1], [0], [0], [1], [0, 0, 1, 1], [], []>} : vector<16x512xbf16>, vector<512x512xbf16>, vector<16x512xf32> -> vector<16x512xf32>
    %7 = arith.addf %3, %6 : vector<16x512xf32>
    %c0_6 = arith.constant 0 : index
    %c0_7 = arith.constant 0 : index
    %8 = vector.load %arg7[%c0_6, %c0_7] : memref<16x512xf32, #tpu.memory_space<vmem>>, vector<16x512xf32>
    tpu.vector_store %arg7[%c0_6, %c0_7], %7 {strides = array<i32>} : memref<16x512xf32, #tpu.memory_space<vmem>>, vector<16x512xf32>,
    %c1_i32 = arith.constant 1 : i32
    %9 = arith.cmpi eq, %arg1, %c1_i32 : i32
    %10 = arith.extui %9 : i1 to i32
    %c0_i32_8 = arith.constant 0 : i32
    %11 = arith.cmpi ne, %10, %c0_i32_8 : i32
    scf.if %11 {
      %c0_9 = arith.constant 0 : index
      %c0_10 = arith.constant 0 : index
      %12 = vector.load %arg7[%c0_9, %c0_10] : memref<16x512xf32, #tpu.memory_space<vmem>>, vector<16x512xf32>
      %13 = tpu.iota {dimensions = array<i32: 0>} : vector<16x512xi32>
      %c16_i32 = arith.constant 16 : i32
      %14 = vector.broadcast %c16_i32 : i32 to vector<16x512xi32>
      %15 = arith.cmpi slt, %13, %14 : vector<16x512xi32>
      %cst_11 = arith.constant dense<0.000000e+00> : vector<512xf32>
      %16 = vector.multi_reduction <add>, %12, %cst_11 [0] : vector<16x512xf32> to vector<512xf32>
      %17 = vector.shape_cast %16 : vector<512xf32> to vector<1x512xf32>
      %cst_12 = arith.constant 6.250000e-02 : f32
      %18 = vector.broadcast %cst_12 : f32 to vector<1x512xf32>
      %19 = arith.mulf %17, %18 : vector<1x512xf32>
      %20 = vector.broadcast %19 : vector<1x512xf32> to vector<16x512xf32>
      %21 = arith.subf %12, %20 : vector<16x512xf32>
      %cst_13 = arith.constant 0.000000e+00 : f32
      %22 = vector.broadcast %cst_13 : f32 to vector<16x512xf32>
      %23 = arith.select %15, %21, %22 : vector<16x512xi1>, vector<16x512xf32>
      %24 = arith.mulf %23, %23 : vector<16x512xf32>
      %cst_14 = arith.constant dense<0.000000e+00> : vector<512xf32>
      %25 = vector.multi_reduction <add>, %24, %cst_14 [0] : vector<16x512xf32> to vector<512xf32>
      %26 = vector.shape_cast %25 : vector<512xf32> to vector<1x512xf32>
      %cst_15 = arith.constant 6.250000e-02 : f32
      %27 = vector.broadcast %cst_15 : f32 to vector<1x512xf32>
      %28 = arith.mulf %26, %27 : vector<1x512xf32>
      %c0_16 = arith.constant 0 : index
      %c0_17 = arith.constant 0 : index
      %29 = vector.load %arg4[%c0_16, %c0_17] : memref<1x512xf32, #tpu.memory_space<vmem>>, vector<1x512xf32>
      %cst_18 = arith.constant 1.000000e-03 : f32
      %30 = vector.broadcast %cst_18 : f32 to vector<1x512xf32>
      %31 = arith.addf %28, %30 : vector<1x512xf32>
      %32 = math.rsqrt %31 : vector<1x512xf32>
      %33 = arith.mulf %29, %32 : vector<1x512xf32>
      %34 = vector.broadcast %33 : vector<1x512xf32> to vector<16x512xf32>
      %35 = arith.mulf %23, %34 : vector<16x512xf32>
      %c0_19 = arith.constant 0 : index
      %c0_20 = arith.constant 0 : index
      %36 = vector.load %arg5[%c0_19, %c0_20] : memref<1x512xf32, #tpu.memory_space<vmem>>, vector<1x512xf32>
      %37 = vector.broadcast %36 : vector<1x512xf32> to vector<16x512xf32>
      %38 = arith.addf %35, %37 : vector<16x512xf32>
      %cst_21 = arith.constant 0.000000e+00 : f32
      %39 = vector.broadcast %cst_21 : f32 to vector<16x512xf32>
      %40 = arith.maximumf %38, %39 : vector<16x512xf32>
      %cst_22 = arith.constant 0.000000e+00 : f32
      %41 = vector.broadcast %cst_22 : f32 to vector<16x512xf32>
      %42 = arith.select %15, %40, %41 : vector<16x512xi1>, vector<16x512xf32>
      %43 = arith.truncf %42 : vector<16x512xf32> to vector<16x512xbf16>
      %c0_23 = arith.constant 0 : index
      %c0_24 = arith.constant 0 : index
      %44 = vector.load %arg6[%c0_23, %c0_24] : memref<16x512xbf16, #tpu.memory_space<vmem>>, vector<16x512xbf16>
      tpu.vector_store %arg6[%c0_23, %c0_24], %43 {strides = array<i32>} : memref<16x512xbf16, #tpu.memory_space<vmem>>, vector<16x512xbf16>,
    } else {
    }
    return
  }
  func.func @transform_0(%arg0: i32, %arg1: i32) -> (i32, i32) {
    %c0_i32 = arith.constant 0 : i32
    %c0_i32_0 = arith.constant 0 : i32
    return %c0_i32, %arg1 : i32, i32
  }
  func.func @transform_1(%arg0: i32, %arg1: i32) -> (i32, i32) {
    %c0_i32 = arith.constant 0 : i32
    return %arg1, %arg0 : i32, i32
  }
  func.func @transform_2(%arg0: i32, %arg1: i32) -> (i32, i32) {
    %c0_i32 = arith.constant 0 : i32
    %c0_i32_0 = arith.constant 0 : i32
    return %c0_i32, %arg0 : i32, i32
  }
  func.func @transform_3(%arg0: i32, %arg1: i32) -> (i32, i32) {
    %c0_i32 = arith.constant 0 : i32
    %c0_i32_0 = arith.constant 0 : i32
    return %c0_i32, %arg0 : i32, i32
  }
  func.func @transform_4(%arg0: i32, %arg1: i32) -> (i32, i32) {
    %c0_i32 = arith.constant 0 : i32
    %c0_i32_0 = arith.constant 0 : i32
    return %c0_i32, %arg0 : i32, i32
  }
}

module attributes {stable_mosaic.version = 11 : i64} {
  func.func @_head_kernel(%arg0: i32, %arg1: memref<16x1024xbf16, #tpu.memory_space<vmem>>, %arg2: memref<1024x128xbf16, #tpu.memory_space<vmem>>, %arg3: memref<1x128xf32, #tpu.memory_space<vmem>>, %arg4: memref<16x128xf32, #tpu.memory_space<vmem>>, %arg5: memref<16x128xf32, #tpu.memory_space<vmem>>) attributes {dimension_semantics = [#tpu.dimension_semantics<arbitrary>], iteration_bounds = array<i64: 1>, scalar_prefetch = 0 : i64, scratch_operands = 0 : i64, tpu.core_type = #tpu.core_type<tc>, window_params = [{pipeline_mode = #tpu.pipeline_mode<synchronous>, transform_indices = @transform_0, window_bounds = array<i64: 16, 1024>}, {pipeline_mode = #tpu.pipeline_mode<synchronous>, transform_indices = @transform_1, window_bounds = array<i64: 1024, 128>}, {pipeline_mode = #tpu.pipeline_mode<synchronous>, transform_indices = @transform_2, window_bounds = array<i64: 1, 128>}, {pipeline_mode = #tpu.pipeline_mode<synchronous>, transform_indices = @transform_3, window_bounds = array<i64: 16, 128>}, {pipeline_mode = #tpu.pipeline_mode<synchronous>, transform_indices = @transform_4, window_bounds = array<i64: 16, 128>}]} {
    %c0 = arith.constant 0 : index
    %c0_0 = arith.constant 0 : index
    %0 = vector.load %arg1[%c0, %c0_0] : memref<16x1024xbf16, #tpu.memory_space<vmem>>, vector<16x1024xbf16>
    %c0_1 = arith.constant 0 : index
    %c0_2 = arith.constant 0 : index
    %1 = vector.load %arg2[%c0_1, %c0_2] : memref<1024x128xbf16, #tpu.memory_space<vmem>>, vector<1024x128xbf16>
    %cst = arith.constant dense<0.000000e+00> : vector<16x128xf32>
    %2 = tpu.matmul %0, %1, %cst {dimension_numbers = #tpu.dot_dimension_numbers<[1], [0], [0], [1], [0, 0, 1, 1], [], []>} : vector<16x1024xbf16>, vector<1024x128xbf16>, vector<16x128xf32> -> vector<16x128xf32>
    %c0_3 = arith.constant 0 : index
    %c0_4 = arith.constant 0 : index
    %3 = vector.load %arg3[%c0_3, %c0_4] : memref<1x128xf32, #tpu.memory_space<vmem>>, vector<1x128xf32>
    %4 = vector.broadcast %3 : vector<1x128xf32> to vector<16x128xf32>
    %5 = arith.addf %2, %4 : vector<16x128xf32>
    %c0_5 = arith.constant 0 : index
    %c0_6 = arith.constant 0 : index
    %6 = vector.load %arg4[%c0_5, %c0_6] : memref<16x128xf32, #tpu.memory_space<vmem>>, vector<16x128xf32>
    tpu.vector_store %arg4[%c0_5, %c0_6], %5 {strides = array<i32>} : memref<16x128xf32, #tpu.memory_space<vmem>>, vector<16x128xf32>,
    %7 = tpu.iota {dimensions = array<i32: 1>} : vector<16x128xi32>
    %c8_i32 = arith.constant 8 : i32
    %8 = vector.broadcast %c8_i32 : i32 to vector<16x128xi32>
    %9 = arith.cmpi slt, %7, %8 : vector<16x128xi32>
    %cst_7 = arith.constant 0xFF800000 : f32
    %10 = vector.broadcast %cst_7 : f32 to vector<16x128xf32>
    %11 = arith.select %9, %5, %10 : vector<16x128xi1>, vector<16x128xf32>
    %cst_8 = arith.constant dense<0xFF800000> : vector<16xf32>
    %12 = vector.multi_reduction <maximumf>, %11, %cst_8 [1] : vector<16x128xf32> to vector<16xf32>
    %13 = vector.shape_cast %12 : vector<16xf32> to vector<16x1xf32>
    %14 = vector.broadcast %13 : vector<16x1xf32> to vector<16x128xf32>
    %15 = arith.subf %11, %14 : vector<16x128xf32>
    %16 = math.exp %15 : vector<16x128xf32>
    %cst_9 = arith.constant dense<0.000000e+00> : vector<16xf32>
    %17 = vector.multi_reduction <add>, %16, %cst_9 [1] : vector<16x128xf32> to vector<16xf32>
    %18 = vector.shape_cast %17 : vector<16xf32> to vector<16x1xf32>
    %19 = tpu.reciprocal %18 {approx = true} : vector<16x1xf32> -> vector<16x1xf32>
    %20 = vector.broadcast %19 : vector<16x1xf32> to vector<16x128xf32>
    %21 = arith.mulf %16, %20 : vector<16x128xf32>
    %c0_10 = arith.constant 0 : index
    %c0_11 = arith.constant 0 : index
    %22 = vector.load %arg5[%c0_10, %c0_11] : memref<16x128xf32, #tpu.memory_space<vmem>>, vector<16x128xf32>
    tpu.vector_store %arg5[%c0_10, %c0_11], %21 {strides = array<i32>} : memref<16x128xf32, #tpu.memory_space<vmem>>, vector<16x128xf32>,
    return
  }
  func.func @transform_0(%arg0: i32) -> (i32, i32) {
    %c0_i32 = arith.constant 0 : i32
    %c0_i32_0 = arith.constant 0 : i32
    %c0_i32_1 = arith.constant 0 : i32
    return %c0_i32, %c0_i32_0 : i32, i32
  }
  func.func @transform_1(%arg0: i32) -> (i32, i32) {
    %c0_i32 = arith.constant 0 : i32
    %c0_i32_0 = arith.constant 0 : i32
    %c0_i32_1 = arith.constant 0 : i32
    return %c0_i32, %c0_i32_0 : i32, i32
  }
  func.func @transform_2(%arg0: i32) -> (i32, i32) {
    %c0_i32 = arith.constant 0 : i32
    %c0_i32_0 = arith.constant 0 : i32
    %c0_i32_1 = arith.constant 0 : i32
    return %c0_i32, %c0_i32_0 : i32, i32
  }
  func.func @transform_3(%arg0: i32) -> (i32, i32) {
    %c0_i32 = arith.constant 0 : i32
    %c0_i32_0 = arith.constant 0 : i32
    %c0_i32_1 = arith.constant 0 : i32
    return %c0_i32, %c0_i32_0 : i32, i32
  }
  func.func @transform_4(%arg0: i32) -> (i32, i32) {
    %c0_i32 = arith.constant 0 : i32
    %c0_i32_0 = arith.constant 0 : i32
    %c0_i32_1 = arith.constant 0 : i32
    return %c0_i32, %c0_i32_0 : i32, i32
  }
}

</mosaic_0001>

<llo_original>
// kernel: forward.3
$region0: #{forward.3}
  #allocation0 [shape = 'u32[]', space=smem, size = 0x4, offset = 0x4, fixed_abs, tag = 'smem constant byte address 0x4 - core index']
  #allocation1 [shape = 'u32[144,128]{1,0:T(1,128)}', space=vmem, size = 0x12000, scoped, tag = 'internal scratch']
  #allocation2 [shape = 'f32[16,512]{1,0:T(8,128)}', space=vmem, size = 0x8000, scoped, tag = 'scratch operand']
  %s0 = inlined_call_operand.vmem [shape: bf16[16,512], index: 0, kind: input, shape index: {}]
  %s1 = inlined_call_operand.hbm [shape: bf16[512,1024], index: 1, kind: input, shape index: {}]
  %s2 = inlined_call_operand.hbm [shape: f32[1,1024], index: 2, kind: input, shape index: {}]
  %s3 = inlined_call_operand.hbm [shape: f32[1,1024], index: 3, kind: input, shape index: {}]
  %s4 = inlined_call_operand.vmem [shape: bf16[16,1024], index: 4, kind: output, shape index: {}]
  %s5 = sld [smem:[#allocation0]]
  $region88: #{forward.3} parent=0
    _
  %s7 = ssub.s32 1, %s5
  %s8 = scalar_select 0, %s7, %s5
  $region1: #{forward.3} parent=0
    #allocation3 [shape = 'u8[1048576]{0}', space=vmem, size = 0x100000, scoped, tag = 'input window, operand 1']
    #allocation4 [shape = 's32[2]{0}', space=sflag, size = 0x8, scoped, tag = 'scoped memory for forward.3']
    #allocation5 [shape = 'u8[4096]{0}', space=vmem, size = 0x1000, scoped, tag = 'input window, operand 2']
    #allocation6 [shape = 's32[2]{0}', space=sflag, size = 0x8, scoped, tag = 'scoped memory for forward.3']
    #allocation7 [shape = 'u8[4096]{0}', space=vmem, size = 0x1000, scoped, tag = 'input window, operand 3']
    #allocation8 [shape = 'u8[32768]{0}', space=vmem, size = 0x8000, scoped, tag = 'output window, operand 0']
    %9 = vsyncpa [#allocation4], 0
    %s10 = scalar_lea.sflag [#allocation4], 1
    %11 = vsyncpa %s10, 0
    %12 = vsyncpa [#allocation6], 0
    %s13 = scalar_lea.sflag [#allocation6], 1
    %14 = vsyncpa %s13, 0
    loop: start=0, step=1, limit=4
    $region2: #{forward.3} parent=1 // loop_pre_header
      _
    $region3: #{forward.3} parent=1 // loop_header
      %s16 = sphi 0, %s20
      %p17 = scmp.ge.s32.totalorder %s16, 4
      %s23 = sphi 0, %s35
      %s24 = sphi 0, %s31
      %s25 = sphi 0, %s23
      %s26 = sphi 0, %s24
      %s27 = sphi 0, %s25
      %s28 = sphi 0, %s26
      %s38 = sphi 0, %s40
      %s41 = sphi 0, %s38
      %s42 = sphi 0, %s41
      %s58 = sphi 0, %s42
      %s66 = sphi 0, %s68
      %s69 = sphi 0, %s66
      %s70 = sphi 0, %s69
      %s86 = sphi 0, %s70
      %s92 = sphi 0, %s94
      %s95 = sphi 0, %s92
      %s96 = sphi 0, %s95
      %s112 = sphi 0, %s96
      %s118 = sphi 0, %s120
      %s121 = sphi 0, %s118
      %s122 = sphi 0, %s121
      %s138 = sphi 0, %s122
      %s144 = sphi 0, %s146
      %s147 = sphi 0, %s144
      %s148 = sphi 0, %s147
      %s164 = sphi 0, %s148
    $region4: #{forward.3} parent=1 // loop_header_branch
      %19 = sbr.rel (%p17) target = $region8
    $region5: #{forward.3} parent=1 // loop_body
      %s21 = ssub.s32 %s16, 1
      %s22 = ssub.s32 %s16, 2
      %s29 = sadd.s32 1, %s24
      %p30 = scmp.ge.s32.totalorder %s29, 1
      %s31 = scalar_select %p30, 0, %s29
      %s32 = sadd.s32 1, %s23
      %s33 = scalar_select %p30, %s32, %s23
      %p34 = scmp.ge.s32.totalorder %s33, 2
      %s35 = scalar_select %p34, 0, %s33
      %s36 = ssub.s32 %s24, %s31
      %p37 = scmp.eq.s32.totalorder %s36, 0
      %s39 = sadd.s32 %s38, 1
      %s40 = scalar_select %p37, %s38, %s39
      %p43 = pneg %p37
      %p44 = scmp.eq.s32.totalorder %s16, 1
      %p45 = por %p43, %p44
      %p46 = scmp.ne.s32.totalorder %s38, %s41
      %p47 = scmp.eq.s32.totalorder %s16, 0
      %p48 = por %p46, %p47
      %p49 = scmp.ne.s32.totalorder %s38, %s41
      %p50 = scmp.eq.s32.totalorder %s21, 1
      %p51 = por %p49, %p50
      %p52 = scmp.ne.s32.totalorder %s41, %s42
      %p53 = scmp.eq.s32.totalorder %s21, 0
      %p54 = por %p52, %p53
      %p55 = scmp.ne.s32.totalorder %s41, %s42
      %p56 = scmp.eq.s32.totalorder %s22, 1
      %p57 = por %p55, %p56
      %p59 = scmp.ne.s32.totalorder %s42, %s58
      %p60 = scmp.eq.s32.totalorder %s22, 0
      %p61 = por %p59, %p60
      %s62 = ssub.s32 %s24, %s31
      %s63 = ssub.s32 %s23, %s35
      %s64 = sor.u32 %s62, %s63
      %p65 = scmp.eq.s32.totalorder %s64, 0
      %s67 = sadd.s32 %s66, 1
      %s68 = scalar_select %p65, %s66, %s67
      %p71 = pneg %p65
      %p72 = scmp.eq.s32.totalorder %s16, 1
      %p73 = por %p71, %p72
      %p74 = scmp.ne.s32.totalorder %s66, %s69
      %p75 = scmp.eq.s32.totalorder %s16, 0
      %p76 = por %p74, %p75
      %p77 = scmp.ne.s32.totalorder %s66, %s69
      %p78 = scmp.eq.s32.totalorder %s21, 1
      %p79 = por %p77, %p78
      %p80 = scmp.ne.s32.totalorder %s69, %s70
      %p81 = scmp.eq.s32.totalorder %s21, 0
      %p82 = por %p80, %p81
      %p83 = scmp.ne.s32.totalorder %s69, %s70
      %p84 = scmp.eq.s32.totalorder %s22, 1
      %p85 = por %p83, %p84
      %p87 = scmp.ne.s32.totalorder %s70, %s86
      %p88 = scmp.eq.s32.totalorder %s22, 0
      %p89 = por %p87, %p88
      %s90 = ssub.s32 %s23, %s35
      %p91 = scmp.eq.s32.totalorder %s90, 0
      %s93 = sadd.s32 %s92, 1
      %s94 = scalar_select %p91, %s92, %s93
      %p97 = pneg %p91
      %p98 = scmp.eq.s32.totalorder %s16, 1
      %p99 = por %p97, %p98
      %p100 = scmp.ne.s32.totalorder %s92, %s95
      %p101 = scmp.eq.s32.totalorder %s16, 0
      %p102 = por %p100, %p101
      %p103 = scmp.ne.s32.totalorder %s92, %s95
      %p104 = scmp.eq.s32.totalorder %s21, 1
      %p105 = por %p103, %p104
      %p106 = scmp.ne.s32.totalorder %s95, %s96
      %p107 = scmp.eq.s32.totalorder %s21, 0
      %p108 = por %p106, %p107
      %p109 = scmp.ne.s32.totalorder %s95, %s96
      %p110 = scmp.eq.s32.totalorder %s22, 1
      %p111 = por %p109, %p110
      %p113 = scmp.ne.s32.totalorder %s96, %s112
      %p114 = scmp.eq.s32.totalorder %s22, 0
      %p115 = por %p113, %p114
      %s116 = ssub.s32 %s23, %s35
      %p117 = scmp.eq.s32.totalorder %s116, 0
      %s119 = sadd.s32 %s118, 1
      %s120 = scalar_select %p117, %s118, %s119
      %p123 = pneg %p117
      %p124 = scmp.eq.s32.totalorder %s16, 1
      %p125 = por %p123, %p124
      %p126 = scmp.ne.s32.totalorder %s118, %s121
      %p127 = scmp.eq.s32.totalorder %s16, 0
      %p128 = por %p126, %p127
      %p129 = scmp.ne.s32.totalorder %s118, %s121
      %p130 = scmp.eq.s32.totalorder %s21, 1
      %p131 = por %p129, %p130
      %p132 = scmp.ne.s32.totalorder %s121, %s122
      %p133 = scmp.eq.s32.totalorder %s21, 0
      %p134 = por %p132, %p133
      %p135 = scmp.ne.s32.totalorder %s121, %s122
      %p136 = scmp.eq.s32.totalorder %s22, 1
      %p137 = por %p135, %p136
      %p139 = scmp.ne.s32.totalorder %s122, %s138
      %p140 = scmp.eq.s32.totalorder %s22, 0
      %p141 = por %p139, %p140
      %s142 = ssub.s32 %s23, %s35
      %p143 = scmp.eq.s32.totalorder %s142, 0
      %s145 = sadd.s32 %s144, 1
      %s146 = scalar_select %p143, %s144, %s145
      %p149 = pneg %p143
      %p150 = scmp.eq.s32.totalorder %s16, 1
      %p151 = por %p149, %p150
      %p152 = scmp.ne.s32.totalorder %s144, %s147
      %p153 = scmp.eq.s32.totalorder %s16, 0
      %p154 = por %p152, %p153
      %p155 = scmp.ne.s32.totalorder %s144, %s147
      %p156 = scmp.eq.s32.totalorder %s21, 1
      %p157 = por %p155, %p156
      %p158 = scmp.ne.s32.totalorder %s147, %s148
      %p159 = scmp.eq.s32.totalorder %s21, 0
      %p160 = por %p158, %p159
      %p161 = scmp.ne.s32.totalorder %s147, %s148
      %p162 = scmp.eq.s32.totalorder %s22, 1
      %p163 = por %p161, %p162
      %p165 = scmp.ne.s32.totalorder %s148, %s164
      %p166 = scmp.eq.s32.totalorder %s22, 0
      %p167 = por %p165, %p166
      %p168 = scmp.le.s32.totalorder 1, %s16
      %p169 = scmp.lt.s32.totalorder %s16, 3
      %p170 = pnand %p168, %p169
      %p171 = pneg %p170
      // Predicated region
      $region9: #{forward.3} parent=5 // pred_check
        _
      $region10: #{forward.3} parent=5 // pred_check_branch
        %173 = sbr.rel (%p170) target = $region12
      $region11: #{forward.3} parent=5 // pred_region
        %s174 = ssub.s32 %s16, 1
        // Predicated region
        $region13: #{forward.3} parent=11 // pred_check
          %p175 = pneg %p54
        $region14: #{forward.3} parent=11 // pred_check_branch
          %177 = sbr.rel (%p175) target = $region16
        $region15: #{forward.3} parent=11 // pred_region
          %s178 = smul.u32 4, %s26
          %p179 = scmp.lt.s32.totalorder %s178, 3
          %s180 = scalar_select %p179, %s178, 3
          %s181 = smul.addr %s180, 4
          %s182 = scalar_lea.vmem %s0, %s181
          %s183 = smul.u32 4, %s26
        $region16: #{forward.3} parent=11 // pred_fallthru
          _
      $region12: #{forward.3} parent=5 // pred_fallthru
        _
      %p184 = scmp.lt.s32.totalorder %s16, 2
      // Predicated region
      $region17: #{forward.3} parent=5 // pred_check
        %p185 = pneg %p184
      $region18: #{forward.3} parent=5 // pred_check_branch
        %187 = sbr.rel (%p185) target = $region20
      $region19: #{forward.3} parent=5 // pred_region
        // Predicated region
        $region21: #{forward.3} parent=19 // pred_check
          %p188 = pneg %p76
        $region22: #{forward.3} parent=19 // pred_check_branch
          %190 = sbr.rel (%p188) target = $region24
        $region23: #{forward.3} parent=19 // pred_region
          %s191 = sand.u32 %s66, 1
          %s192 = scalar_lea.sflag [#allocation4], %s191
          %s193 = sand.u32 %s66, 1
          %s194 = smul.addr %s193, 1024
          %s195 = scalar_lea.vmem [#allocation3], %s194
          %s196 = smul.u32 64, %s24
          %s197 = smul.u32 4, %s23
          %s199 = ssub.s32 16384, 16384
          %200 = vsyncadd %s192, %s199
          %s201 = smul.addr %s196, 8
          %s202 = sadd.s32 %s197, %s201
          %s203 = smul.addr %s202, 64
          %s204 = scalar_lea.hbm %s1, %s203
          %s205 = sshll.u32 %s195, 4
          %s206 = int_to_ptr.vmem [resolvable:$true] %s205
          %211 = dma.hbm_to_vmem [thread:$0]  %s204, 16384, %s206, %s192, 512, 256, 16
        $region24: #{forward.3} parent=19 // pred_fallthru
          _
        // Predicated region
        $region25: #{forward.3} parent=19 // pred_check
          %p212 = pneg %p102
        $region26: #{forward.3} parent=19 // pred_check_branch
          %214 = sbr.rel (%p212) target = $region28
        $region27: #{forward.3} parent=19 // pred_region
          %s215 = sand.u32 %s16, 1
          %s216 = scalar_lea.sflag [#allocation6], %s215
          %s217 = sand.u32 %s92, 1
          %s218 = smul.addr %s217, 4
          %s219 = scalar_lea.vmem [#allocation5], %s218
          %s220 = smul.u32 4, %s23
          %s222 = ssub.s32 64, 64
          %223 = vsyncadd %s216, %s222
          %s224 = smul.addr %s220, 16
          %s225 = scalar_lea.hbm %s2, %s224
          %s227 = sshll.u32 %s219, 4
          %s228 = int_to_ptr.vmem [resolvable:$true] %s227
          %230 = dma.hbm_to_vmem [thread:$0]  %s225, 64, %s228, %s216
        $region28: #{forward.3} parent=19 // pred_fallthru
          _
        // Predicated region
        $region29: #{forward.3} parent=19 // pred_check
          %p231 = pneg %p128
        $region30: #{forward.3} parent=19 // pred_check_branch
          %233 = sbr.rel (%p231) target = $region32
        $region31: #{forward.3} parent=19 // pred_region
          %s234 = sand.u32 %s16, 1
          %s235 = scalar_lea.sflag [#allocation6], %s234
          %s236 = sand.u32 %s118, 1
          %s237 = smul.addr %s236, 4
          %s238 = scalar_lea.vmem [#allocation7], %s237
          %s239 = smul.u32 4, %s23
          %s241 = ssub.s32 64, 64
          %242 = vsyncadd %s235, %s241
          %s243 = smul.addr %s239, 16
          %s244 = scalar_lea.hbm %s3, %s243
          %s246 = sshll.u32 %s238, 4
          %s247 = int_to_ptr.vmem [resolvable:$true] %s246
          %249 = dma.hbm_to_vmem [thread:$0]  %s244, 64, %s247, %s235
        $region32: #{forward.3} parent=19 // pred_fallthru
          _
      $region20: #{forward.3} parent=5 // pred_fallthru
        _
      %p250 = scmp.le.s32.totalorder 1, %s16
      %p251 = scmp.lt.s32.totalorder %s16, 3
      %p252 = pnand %p250, %p251
      %p253 = pneg %p252
      // Predicated region
      $region33: #{forward.3} parent=5 // pred_check
        _
      $region34: #{forward.3} parent=5 // pred_check_branch
        %255 = sbr.rel (%p252) target = $region36
      $region35: #{forward.3} parent=5 // pred_region
        %s256 = ssub.s32 %s16, 1
        %s257 = sand.u32 %s69, 1
        %s258 = scalar_lea.sflag [#allocation4], %s257
        %s259 = sand.u32 %s69, 1
        %s260 = smul.addr %s259, 1024
        %s261 = scalar_lea.vmem [#allocation3], %s260
        // Predicated region
        $region37: #{forward.3} parent=35 // pred_check
          %p262 = pneg %p82
        $region38: #{forward.3} parent=35 // pred_check_branch
          %264 = sbr.rel (%p262) target = $region40
        $region39: #{forward.3} parent=35 // pred_region
          %265 = dma.done %s258, 16384
        $region40: #{forward.3} parent=35 // pred_fallthru
          _
        %s266 = sand.u32 %s21, 1
        %s267 = scalar_lea.sflag [#allocation6], %s266
        %s268 = sand.u32 %s95, 1
        %s269 = smul.addr %s268, 4
        %s270 = scalar_lea.vmem [#allocation5], %s269
        // Predicated region
        $region41: #{forward.3} parent=35 // pred_check
          %p271 = pneg %p108
        $region42: #{forward.3} parent=35 // pred_check_branch
          %273 = sbr.rel (%p271) target = $region44
        $region43: #{forward.3} parent=35 // pred_region
          %274 = dma.done %s267, 64
        $region44: #{forward.3} parent=35 // pred_fallthru
          _
        %s275 = sand.u32 %s21, 1
        %s276 = scalar_lea.sflag [#allocation6], %s275
        %s277 = sand.u32 %s121, 1
        %s278 = smul.addr %s277, 4
        %s279 = scalar_lea.vmem [#allocation7], %s278
        // Predicated region
        $region45: #{forward.3} parent=35 // pred_check
          %p280 = pneg %p134
        $region46: #{forward.3} parent=35 // pred_check_branch
          %282 = sbr.rel (%p280) target = $region48
        $region47: #{forward.3} parent=35 // pred_region
          %283 = dma.done %s276, 64
        $region48: #{forward.3} parent=35 // pred_fallthru
          _
        %s284 = smul.u32 4, %s26
        %p285 = scmp.lt.s32.totalorder %s284, 3
        %s286 = scalar_select %p285, %s284, 3
        %s287 = smul.addr %s286, 4
        %s288 = scalar_lea.vmem %s0, %s287
        %p289 = pneg %p54
        %p290 = pneg %p51
        %s291 = sand.u32 %s69, 1
        %s292 = scalar_lea.sflag [#allocation4], %s291
        %s293 = sand.u32 %s69, 1
        %s294 = smul.addr %s293, 1024
        %s295 = scalar_lea.vmem [#allocation3], %s294
        %p296 = pneg %p82
        %p297 = pneg %p79
        %s298 = sand.u32 %s21, 1
        %s299 = scalar_lea.sflag [#allocation6], %s298
        %s300 = sand.u32 %s95, 1
        %s301 = smul.addr %s300, 4
        %s302 = scalar_lea.vmem [#allocation5], %s301
        %p303 = pneg %p108
        %p304 = pneg %p105
        %s305 = sand.u32 %s21, 1
        %s306 = scalar_lea.sflag [#allocation6], %s305
        %s307 = sand.u32 %s121, 1
        %s308 = smul.addr %s307, 4
        %s309 = scalar_lea.vmem [#allocation7], %s308
        %p310 = pneg %p134
        %p311 = pneg %p131
        %p312 = pneg %p160
        %p313 = pneg %p157
        %s314 = sand.u32 %s147, 1
        %s315 = sand.u32 %s147, 1
        %s316 = smul.addr %s315, 32
        %s317 = scalar_lea.vmem [#allocation8], %s316
        %s318 = smul.u32 4, %s26
        %p319 = scmp.lt.s32.totalorder %s318, 3
        %s320 = scalar_select %p319, %s318, 3
        %s321 = smul.addr %s320, 4
        %s322 = scalar_lea.vmem %s0, %s321
        %s323 = smul.u32 4, %s26
        %s324 = smul.u32 64, %s26
        %s325 = smul.u32 4, %s25
        %s326 = smul.u32 4, %s25
        %s327 = smul.u32 4, %s25
        %s328 = smul.u32 4, %s25
        %p329 = scmp.eq.s32.totalorder %s26, 0
        // Predicated region
        $region49: #{forward.3} parent=35 // pred_check
          %p330 = pneg %p329
        $region50: #{forward.3} parent=35 // pred_check_branch
          %332 = sbr.rel (%p330) target = $region52
        $region51: #{forward.3} parent=35 // pred_region
          %333 = vst [vmem:[#allocation2] sm:$0xff] 0.0
          %334 = vst [vmem:[#allocation2 + $0x8] sm:$0xff] 0.0
          %335 = vst [vmem:[#allocation2 + $0x10] sm:$0xff] 0.0
          %336 = vst [vmem:[#allocation2 + $0x18] sm:$0xff] 0.0
          %337 = vst [vmem:[#allocation2 + $0x20] sm:$0xff] 0.0
          %338 = vst [vmem:[#allocation2 + $0x28] sm:$0xff] 0.0
          %339 = vst [vmem:[#allocation2 + $0x30] sm:$0xff] 0.0
          %340 = vst [vmem:[#allocation2 + $0x38] sm:$0xff] 0.0
        $region52: #{forward.3} parent=35 // pred_fallthru
          _
        %v341 = vld [vmem:[#allocation2] sm:$0xff]
        %v342 = vld [vmem:[#allocation2 + $0x8] sm:$0xff]
        %v343 = vld [vmem:[#allocation2 + $0x10] sm:$0xff]
        %v344 = vld [vmem:[#allocation2 + $0x18] sm:$0xff]
        %v345 = vld [vmem:[#allocation2 + $0x20] sm:$0xff]
        %v346 = vld [vmem:[#allocation2 + $0x28] sm:$0xff]
        %v347 = vld [vmem:[#allocation2 + $0x30] sm:$0xff]
        %v348 = vld [vmem:[#allocation2 + $0x38] sm:$0xff]
        %v349 = vld [vmem:[%s322] sm:$0xff]
        %v350 = vld [vmem:[%s322 + $0x8] sm:$0xff]
        %v351 = vld [vmem:[%s322 + $0x10] sm:$0xff]
        %v352 = vld [vmem:[%s322 + $0x18] sm:$0xff]
        %v353 = vld [vmem:[%s261] sm:$0xff]
        %v354 = vld [vmem:[%s261 + $0x8] sm:$0xff]
        %v355 = vld [vmem:[%s261 + $0x10] sm:$0xff]
        %v356 = vld [vmem:[%s261 + $0x18] sm:$0xff]
        %v357 = vld [vmem:[%s261 + $0x20] sm:$0xff]
        %v358 = vld [vmem:[%s261 + $0x28] sm:$0xff]
        %v359 = vld [vmem:[%s261 + $0x30] sm:$0xff]
        %v360 = vld [vmem:[%s261 + $0x38] sm:$0xff]
        %v361 = vld [vmem:[%s261 + $0x40] sm:$0xff]
        %v362 = vld [vmem:[%s261 + $0x48] sm:$0xff]
        %v363 = vld [vmem:[%s261 + $0x50] sm:$0xff]
        %v364 = vld [vmem:[%s261 + $0x58] sm:$0xff]
        %v365 = vld [vmem:[%s261 + $0x60] sm:$0xff]
        %v366 = vld [vmem:[%s261 + $0x68] sm:$0xff]
        %v367 = vld [vmem:[%s261 + $0x70] sm:$0xff]
        %v368 = vld [vmem:[%s261 + $0x78] sm:$0xff]
        %v369 = vld [vmem:[%s261 + $0x80] sm:$0xff]
        %v370 = vld [vmem:[%s261 + $0x88] sm:$0xff]
        %v371 = vld [vmem:[%s261 + $0x90] sm:$0xff]
        %v372 = vld [vmem:[%s261 + $0x98] sm:$0xff]
        %v373 = vld [vmem:[%s261 + $0xa0] sm:$0xff]
        %v374 = vld [vmem:[%s261 + $0xa8] sm:$0xff]
        %v375 = vld [vmem:[%s261 + $0xb0] sm:$0xff]
        %v376 = vld [vmem:[%s261 + $0xb8] sm:$0xff]
        %v377 = vld [vmem:[%s261 + $0xc0] sm:$0xff]
        %v378 = vld [vmem:[%s261 + $0xc8] sm:$0xff]
        %v379 = vld [vmem:[%s261 + $0xd0] sm:$0xff]
        %v380 = vld [vmem:[%s261 + $0xd8] sm:$0xff]
        %v381 = vld [vmem:[%s261 + $0xe0] sm:$0xff]
        %v382 = vld [vmem:[%s261 + $0xe8] sm:$0xff]
        %v383 = vld [vmem:[%s261 + $0xf0] sm:$0xff]
        %v384 = vld [vmem:[%s261 + $0xf8] sm:$0xff]
        %v385 = vld [vmem:[%s261 + $0x100] sm:$0xff]
        %v386 = vld [vmem:[%s261 + $0x108] sm:$0xff]
        %v387 = vld [vmem:[%s261 + $0x110] sm:$0xff]
        %v388 = vld [vmem:[%s261 + $0x118] sm:$0xff]
        %v389 = vld [vmem:[%s261 + $0x120] sm:$0xff]
        %v390 = vld [vmem:[%s261 + $0x128] sm:$0xff]
        %v391 = vld [vmem:[%s261 + $0x130] sm:$0xff]
        %v392 = vld [vmem:[%s261 + $0x138] sm:$0xff]
        %v393 = vld [vmem:[%s261 + $0x140] sm:$0xff]
        %v394 = vld [vmem:[%s261 + $0x148] sm:$0xff]
        %v395 = vld [vmem:[%s261 + $0x150] sm:$0xff]
        %v396 = vld [vmem:[%s261 + $0x158] sm:$0xff]
        %v397 = vld [vmem:[%s261 + $0x160] sm:$0xff]
        %v398 = vld [vmem:[%s261 + $0x168] sm:$0xff]
        %v399 = vld [vmem:[%s261 + $0x170] sm:$0xff]
        %v400 = vld [vmem:[%s261 + $0x178] sm:$0xff]
        %v401 = vld [vmem:[%s261 + $0x180] sm:$0xff]
        %v402 = vld [vmem:[%s261 + $0x188] sm:$0xff]
        %v403 = vld [vmem:[%s261 + $0x190] sm:$0xff]
        %v404 = vld [vmem:[%s261 + $0x198] sm:$0xff]
        %v405 = vld [vmem:[%s261 + $0x1a0] sm:$0xff]
        %v406 = vld [vmem:[%s261 + $0x1a8] sm:$0xff]
        %v407 = vld [vmem:[%s261 + $0x1b0] sm:$0xff]
        %v408 = vld [vmem:[%s261 + $0x1b8] sm:$0xff]
        %v409 = vld [vmem:[%s261 + $0x1c0] sm:$0xff]
        %v410 = vld [vmem:[%s261 + $0x1c8] sm:$0xff]
        %v411 = vld [vmem:[%s261 + $0x1d0] sm:$0xff]
        %v412 = vld [vmem:[%s261 + $0x1d8] sm:$0xff]
        %v413 = vld [vmem:[%s261 + $0x1e0] sm:$0xff]
        %v414 = vld [vmem:[%s261 + $0x1e8] sm:$0xff]
        %v415 = vld [vmem:[%s261 + $0x1f0] sm:$0xff]
        %v416 = vld [vmem:[%s261 + $0x1f8] sm:$0xff]
        %v417 = vld [vmem:[%s261 + $0x200] sm:$0xff]
        %v418 = vld [vmem:[%s261 + $0x208] sm:$0xff]
        %v419 = vld [vmem:[%s261 + $0x210] sm:$0xff]
        %v420 = vld [vmem:[%s261 + $0x218] sm:$0xff]
        %v421 = vld [vmem:[%s261 + $0x220] sm:$0xff]
        %v422 = vld [vmem:[%s261 + $0x228] sm:$0xff]
        %v423 = vld [vmem:[%s261 + $0x230] sm:$0xff]
        %v424 = vld [vmem:[%s261 + $0x238] sm:$0xff]
        %v425 = vld [vmem:[%s261 + $0x240] sm:$0xff]
        %v426 = vld [vmem:[%s261 + $0x248] sm:$0xff]
        %v427 = vld [vmem:[%s261 + $0x250] sm:$0xff]
        %v428 = vld [vmem:[%s261 + $0x258] sm:$0xff]
        %v429 = vld [vmem:[%s261 + $0x260] sm:$0xff]
        %v430 = vld [vmem:[%s261 + $0x268] sm:$0xff]
        %v431 = vld [vmem:[%s261 + $0x270] sm:$0xff]
        %v432 = vld [vmem:[%s261 + $0x278] sm:$0xff]
        %v433 = vld [vmem:[%s261 + $0x280] sm:$0xff]
        %v434 = vld [vmem:[%s261 + $0x288] sm:$0xff]
        %v435 = vld [vmem:[%s261 + $0x290] sm:$0xff]
        %v436 = vld [vmem:[%s261 + $0x298] sm:$0xff]
        %v437 = vld [vmem:[%s261 + $0x2a0] sm:$0xff]
        %v438 = vld [vmem:[%s261 + $0x2a8] sm:$0xff]
        %v439 = vld [vmem:[%s261 + $0x2b0] sm:$0xff]
        %v440 = vld [vmem:[%s261 + $0x2b8] sm:$0xff]
        %v441 = vld [vmem:[%s261 + $0x2c0] sm:$0xff]
        %v442 = vld [vmem:[%s261 + $0x2c8] sm:$0xff]
        %v443 = vld [vmem:[%s261 + $0x2d0] sm:$0xff]
        %v444 = vld [vmem:[%s261 + $0x2d8] sm:$0xff]
        %v445 = vld [vmem:[%s261 + $0x2e0] sm:$0xff]
        %v446 = vld [vmem:[%s261 + $0x2e8] sm:$0xff]
        %v447 = vld [vmem:[%s261 + $0x2f0] sm:$0xff]
        %v448 = vld [vmem:[%s261 + $0x2f8] sm:$0xff]
        %v449 = vld [vmem:[%s261 + $0x300] sm:$0xff]
        %v450 = vld [vmem:[%s261 + $0x308] sm:$0xff]
        %v451 = vld [vmem:[%s261 + $0x310] sm:$0xff]
        %v452 = vld [vmem:[%s261 + $0x318] sm:$0xff]
        %v453 = vld [vmem:[%s261 + $0x320] sm:$0xff]
        %v454 = vld [vmem:[%s261 + $0x328] sm:$0xff]
        %v455 = vld [vmem:[%s261 + $0x330] sm:$0xff]
        %v456 = vld [vmem:[%s261 + $0x338] sm:$0xff]
        %v457 = vld [vmem:[%s261 + $0x340] sm:$0xff]
        %v458 = vld [vmem:[%s261 + $0x348] sm:$0xff]
        %v459 = vld [vmem:[%s261 + $0x350] sm:$0xff]
        %v460 = vld [vmem:[%s261 + $0x358] sm:$0xff]
        %v461 = vld [vmem:[%s261 + $0x360] sm:$0xff]
        %v462 = vld [vmem:[%s261 + $0x368] sm:$0xff]
        %v463 = vld [vmem:[%s261 + $0x370] sm:$0xff]
        %v464 = vld [vmem:[%s261 + $0x378] sm:$0xff]
        %v465 = vld [vmem:[%s261 + $0x380] sm:$0xff]
        %v466 = vld [vmem:[%s261 + $0x388] sm:$0xff]
        %v467 = vld [vmem:[%s261 + $0x390] sm:$0xff]
        %v468 = vld [vmem:[%s261 + $0x398] sm:$0xff]
        %v469 = vld [vmem:[%s261 + $0x3a0] sm:$0xff]
        %v470 = vld [vmem:[%s261 + $0x3a8] sm:$0xff]
        %v471 = vld [vmem:[%s261 + $0x3b0] sm:$0xff]
        %v472 = vld [vmem:[%s261 + $0x3b8] sm:$0xff]
        %v473 = vld [vmem:[%s261 + $0x3c0] sm:$0xff]
        %v474 = vld [vmem:[%s261 + $0x3c8] sm:$0xff]
        %v475 = vld [vmem:[%s261 + $0x3d0] sm:$0xff]
        %v476 = vld [vmem:[%s261 + $0x3d8] sm:$0xff]
        %v477 = vld [vmem:[%s261 + $0x3e0] sm:$0xff]
        %v478 = vld [vmem:[%s261 + $0x3e8] sm:$0xff]
        %v479 = vld [vmem:[%s261 + $0x3f0] sm:$0xff]
        %v480 = vld [vmem:[%s261 + $0x3f8] sm:$0xff]
        %v485 = vunpack.c.l.b16 %v349
        %v486 = vunpack.c.h.b16 %v349
        %v487 = vunpack.c.l.b16 %v350
        %v488 = vunpack.c.h.b16 %v350
        %v489 = vunpack.c.l.b16 %v351
        %v490 = vunpack.c.h.b16 %v351
        %v491 = vunpack.c.l.b16 %v352
        %v492 = vunpack.c.h.b16 %v352
        %v493 = vpack.c.b16 %v489, %v485
        %v494 = vpack.c.b16 %v490, %v486
        %v495 = vpack.c.b16 %v491, %v487
        %v496 = vpack.c.b16 %v492, %v488
        %v629 = vunpack.c.l.b16 %v353
        %v630 = vunpack.c.h.b16 %v353
        %v631 = vunpack.c.l.b16 %v354
        %v632 = vunpack.c.h.b16 %v354
        %v633 = vunpack.c.l.b16 %v355
        %v634 = vunpack.c.h.b16 %v355
        %v635 = vunpack.c.l.b16 %v356
        %v636 = vunpack.c.h.b16 %v356
        %v637 = vunpack.c.l.b16 %v357
        %v638 = vunpack.c.h.b16 %v357
        %v639 = vunpack.c.l.b16 %v358
        %v640 = vunpack.c.h.b16 %v358
        %v641 = vunpack.c.l.b16 %v359
        %v642 = vunpack.c.h.b16 %v359
        %v643 = vunpack.c.l.b16 %v360
        %v644 = vunpack.c.h.b16 %v360
        %v645 = vunpack.c.l.b16 %v361
        %v646 = vunpack.c.h.b16 %v361
        %v647 = vunpack.c.l.b16 %v362
        %v648 = vunpack.c.h.b16 %v362
        %v649 = vunpack.c.l.b16 %v363
        %v650 = vunpack.c.h.b16 %v363
        %v651 = vunpack.c.l.b16 %v364
        %v652 = vunpack.c.h.b16 %v364
        %v653 = vunpack.c.l.b16 %v365
        %v654 = vunpack.c.h.b16 %v365
        %v655 = vunpack.c.l.b16 %v366
        %v656 = vunpack.c.h.b16 %v366
        %v657 = vunpack.c.l.b16 %v367
        %v658 = vunpack.c.h.b16 %v367
        %v659 = vunpack.c.l.b16 %v368
        %v660 = vunpack.c.h.b16 %v368
        %v661 = vunpack.c.l.b16 %v369
        %v662 = vunpack.c.h.b16 %v369
        %v663 = vunpack.c.l.b16 %v370
        %v664 = vunpack.c.h.b16 %v370
        %v665 = vunpack.c.l.b16 %v371
        %v666 = vunpack.c.h.b16 %v371
        %v667 = vunpack.c.l.b16 %v372
        %v668 = vunpack.c.h.b16 %v372
        %v669 = vunpack.c.l.b16 %v373
        %v670 = vunpack.c.h.b16 %v373
        %v671 = vunpack.c.l.b16 %v374
        %v672 = vunpack.c.h.b16 %v374
        %v673 = vunpack.c.l.b16 %v375
        %v674 = vunpack.c.h.b16 %v375
        %v675 = vunpack.c.l.b16 %v376
        %v676 = vunpack.c.h.b16 %v376
        %v677 = vunpack.c.l.b16 %v377
        %v678 = vunpack.c.h.b16 %v377
        %v679 = vunpack.c.l.b16 %v378
        %v680 = vunpack.c.h.b16 %v378
        %v681 = vunpack.c.l.b16 %v379
        %v682 = vunpack.c.h.b16 %v379
        %v683 = vunpack.c.l.b16 %v380
        %v684 = vunpack.c.h.b16 %v380
        %v685 = vunpack.c.l.b16 %v381
        %v686 = vunpack.c.h.b16 %v381
        %v687 = vunpack.c.l.b16 %v382
        %v688 = vunpack.c.h.b16 %v382
        %v689 = vunpack.c.l.b16 %v383
        %v690 = vunpack.c.h.b16 %v383
        %v691 = vunpack.c.l.b16 %v384
        %v692 = vunpack.c.h.b16 %v384
        %v693 = vunpack.c.l.b16 %v385
        %v694 = vunpack.c.h.b16 %v385
        %v695 = vunpack.c.l.b16 %v386
        %v696 = vunpack.c.h.b16 %v386
        %v697 = vunpack.c.l.b16 %v387
        %v698 = vunpack.c.h.b16 %v387
        %v699 = vunpack.c.l.b16 %v388
        %v700 = vunpack.c.h.b16 %v388
        %v701 = vunpack.c.l.b16 %v389
        %v702 = vunpack.c.h.b16 %v389
        %v703 = vunpack.c.l.b16 %v390
        %v704 = vunpack.c.h.b16 %v390
        %v705 = vunpack.c.l.b16 %v391
        %v706 = vunpack.c.h.b16 %v391
        %v707 = vunpack.c.l.b16 %v392
        %v708 = vunpack.c.h.b16 %v392
        %v709 = vunpack.c.l.b16 %v393
        %v710 = vunpack.c.h.b16 %v393
        %v711 = vunpack.c.l.b16 %v394
        %v712 = vunpack.c.h.b16 %v394
        %v713 = vunpack.c.l.b16 %v395
        %v714 = vunpack.c.h.b16 %v395
        %v715 = vunpack.c.l.b16 %v396
        %v716 = vunpack.c.h.b16 %v396
        %v717 = vunpack.c.l.b16 %v397
        %v718 = vunpack.c.h.b16 %v397
        %v719 = vunpack.c.l.b16 %v398
        %v720 = vunpack.c.h.b16 %v398
        %v721 = vunpack.c.l.b16 %v399
        %v722 = vunpack.c.h.b16 %v399
        %v723 = vunpack.c.l.b16 %v400
        %v724 = vunpack.c.h.b16 %v400
        %v725 = vunpack.c.l.b16 %v401
        %v726 = vunpack.c.h.b16 %v401
        %v727 = vunpack.c.l.b16 %v402
        %v728 = vunpack.c.h.b16 %v402
        %v729 = vunpack.c.l.b16 %v403
        %v730 = vunpack.c.h.b16 %v403
        %v731 = vunpack.c.l.b16 %v404
        %v732 = vunpack.c.h.b16 %v404
        %v733 = vunpack.c.l.b16 %v405
        %v734 = vunpack.c.h.b16 %v405
        %v735 = vunpack.c.l.b16 %v406
        %v736 = vunpack.c.h.b16 %v406
        %v737 = vunpack.c.l.b16 %v407
        %v738 = vunpack.c.h.b16 %v407
        %v739 = vunpack.c.l.b16 %v408
        %v740 = vunpack.c.h.b16 %v408
        %v741 = vunpack.c.l.b16 %v409
        %v742 = vunpack.c.h.b16 %v409
        %v743 = vunpack.c.l.b16 %v410
        %v744 = vunpack.c.h.b16 %v410
        %v745 = vunpack.c.l.b16 %v411
        %v746 = vunpack.c.h.b16 %v411
        %v747 = vunpack.c.l.b16 %v412
        %v748 = vunpack.c.h.b16 %v412
        %v749 = vunpack.c.l.b16 %v413
        %v750 = vunpack.c.h.b16 %v413
        %v751 = vunpack.c.l.b16 %v414
        %v752 = vunpack.c.h.b16 %v414
        %v753 = vunpack.c.l.b16 %v415
        %v754 = vunpack.c.h.b16 %v415
        %v755 = vunpack.c.l.b16 %v416
        %v756 = vunpack.c.h.b16 %v416
        %v757 = vunpack.c.l.b16 %v417
        %v758 = vunpack.c.h.b16 %v417
        %v759 = vunpack.c.l.b16 %v418
        %v760 = vunpack.c.h.b16 %v418
        %v761 = vunpack.c.l.b16 %v419
        %v762 = vunpack.c.h.b16 %v419
        %v763 = vunpack.c.l.b16 %v420
        %v764 = vunpack.c.h.b16 %v420
        %v765 = vunpack.c.l.b16 %v421
        %v766 = vunpack.c.h.b16 %v421
        %v767 = vunpack.c.l.b16 %v422
        %v768 = vunpack.c.h.b16 %v422
        %v769 = vunpack.c.l.b16 %v423
        %v770 = vunpack.c.h.b16 %v423
        %v771 = vunpack.c.l.b16 %v424
        %v772 = vunpack.c.h.b16 %v424
        %v773 = vunpack.c.l.b16 %v425
        %v774 = vunpack.c.h.b16 %v425
        %v775 = vunpack.c.l.b16 %v426
        %v776 = vunpack.c.h.b16 %v426
        %v777 = vunpack.c.l.b16 %v427
        %v778 = vunpack.c.h.b16 %v427
        %v779 = vunpack.c.l.b16 %v428
        %v780 = vunpack.c.h.b16 %v428
        %v781 = vunpack.c.l.b16 %v429
        %v782 = vunpack.c.h.b16 %v429
        %v783 = vunpack.c.l.b16 %v430
        %v784 = vunpack.c.h.b16 %v430
        %v785 = vunpack.c.l.b16 %v431
        %v786 = vunpack.c.h.b16 %v431
        %v787 = vunpack.c.l.b16 %v432
        %v788 = vunpack.c.h.b16 %v432
        %v789 = vunpack.c.l.b16 %v433
        %v790 = vunpack.c.h.b16 %v433
        %v791 = vunpack.c.l.b16 %v434
        %v792 = vunpack.c.h.b16 %v434
        %v793 = vunpack.c.l.b16 %v435
        %v794 = vunpack.c.h.b16 %v435
        %v795 = vunpack.c.l.b16 %v436
        %v796 = vunpack.c.h.b16 %v436
        %v797 = vunpack.c.l.b16 %v437
        %v798 = vunpack.c.h.b16 %v437
        %v799 = vunpack.c.l.b16 %v438
        %v800 = vunpack.c.h.b16 %v438
        %v801 = vunpack.c.l.b16 %v439
        %v802 = vunpack.c.h.b16 %v439
        %v803 = vunpack.c.l.b16 %v440
        %v804 = vunpack.c.h.b16 %v440
        %v805 = vunpack.c.l.b16 %v441
        %v806 = vunpack.c.h.b16 %v441
        %v807 = vunpack.c.l.b16 %v442
        %v808 = vunpack.c.h.b16 %v442
        %v809 = vunpack.c.l.b16 %v443
        %v810 = vunpack.c.h.b16 %v443
        %v811 = vunpack.c.l.b16 %v444
        %v812 = vunpack.c.h.b16 %v444
        %v813 = vunpack.c.l.b16 %v445
        %v814 = vunpack.c.h.b16 %v445
        %v815 = vunpack.c.l.b16 %v446
        %v816 = vunpack.c.h.b16 %v446
        %v817 = vunpack.c.l.b16 %v447
        %v818 = vunpack.c.h.b16 %v447
        %v819 = vunpack.c.l.b16 %v448
        %v820 = vunpack.c.h.b16 %v448
        %v821 = vunpack.c.l.b16 %v449
        %v822 = vunpack.c.h.b16 %v449
        %v823 = vunpack.c.l.b16 %v450
        %v824 = vunpack.c.h.b16 %v450
        %v825 = vunpack.c.l.b16 %v451
        %v826 = vunpack.c.h.b16 %v451
        %v827 = vunpack.c.l.b16 %v452
        %v828 = vunpack.c.h.b16 %v452
        %v829 = vunpack.c.l.b16 %v453
        %v830 = vunpack.c.h.b16 %v453
        %v831 = vunpack.c.l.b16 %v454
        %v832 = vunpack.c.h.b16 %v454
        %v833 = vunpack.c.l.b16 %v455
        %v834 = vunpack.c.h.b16 %v455
        %v835 = vunpack.c.l.b16 %v456
        %v836 = vunpack.c.h.b16 %v456
        %v837 = vunpack.c.l.b16 %v457
        %v838 = vunpack.c.h.b16 %v457
        %v839 = vunpack.c.l.b16 %v458
        %v840 = vunpack.c.h.b16 %v458
        %v841 = vunpack.c.l.b16 %v459
        %v842 = vunpack.c.h.b16 %v459
        %v843 = vunpack.c.l.b16 %v460
        %v844 = vunpack.c.h.b16 %v460
        %v845 = vunpack.c.l.b16 %v461
        %v846 = vunpack.c.h.b16 %v461
        %v847 = vunpack.c.l.b16 %v462
        %v848 = vunpack.c.h.b16 %v462
        %v849 = vunpack.c.l.b16 %v463
        %v850 = vunpack.c.h.b16 %v463
        %v851 = vunpack.c.l.b16 %v464
        %v852 = vunpack.c.h.b16 %v464
        %v853 = vunpack.c.l.b16 %v465
        %v854 = vunpack.c.h.b16 %v465
        %v855 = vunpack.c.l.b16 %v466
        %v856 = vunpack.c.h.b16 %v466
        %v857 = vunpack.c.l.b16 %v467
        %v858 = vunpack.c.h.b16 %v467
        %v859 = vunpack.c.l.b16 %v468
        %v860 = vunpack.c.h.b16 %v468
        %v861 = vunpack.c.l.b16 %v469
        %v862 = vunpack.c.h.b16 %v469
        %v863 = vunpack.c.l.b16 %v470
        %v864 = vunpack.c.h.b16 %v470
        %v865 = vunpack.c.l.b16 %v471
        %v866 = vunpack.c.h.b16 %v471
        %v867 = vunpack.c.l.b16 %v472
        %v868 = vunpack.c.h.b16 %v472
        %v869 = vunpack.c.l.b16 %v473
        %v870 = vunpack.c.h.b16 %v473
        %v871 = vunpack.c.l.b16 %v474
        %v872 = vunpack.c.h.b16 %v474
        %v873 = vunpack.c.l.b16 %v475
        %v874 = vunpack.c.h.b16 %v475
        %v875 = vunpack.c.l.b16 %v476
        %v876 = vunpack.c.h.b16 %v476
        %v877 = vunpack.c.l.b16 %v477
        %v878 = vunpack.c.h.b16 %v477
        %v879 = vunpack.c.l.b16 %v478
        %v880 = vunpack.c.h.b16 %v478
        %v881 = vunpack.c.l.b16 %v479
        %v882 = vunpack.c.h.b16 %v479
        %v883 = vunpack.c.l.b16 %v480
        %v884 = vunpack.c.h.b16 %v480
        %v885 = vpack.c.b16 %v633, %v629
        %v886 = vpack.c.b16 %v634, %v630
        %v887 = vpack.c.b16 %v635, %v631
        %v888 = vpack.c.b16 %v636, %v632
        %v889 = vpack.c.b16 %v641, %v637
        %v890 = vpack.c.b16 %v642, %v638
        %v891 = vpack.c.b16 %v643, %v639
        %v892 = vpack.c.b16 %v644, %v640
        %v893 = vpack.c.b16 %v649, %v645
        %v894 = vpack.c.b16 %v650, %v646
        %v895 = vpack.c.b16 %v651, %v647
        %v896 = vpack.c.b16 %v652, %v648
        %v897 = vpack.c.b16 %v657, %v653
        %v898 = vpack.c.b16 %v658, %v654
        %v899 = vpack.c.b16 %v659, %v655
        %v900 = vpack.c.b16 %v660, %v656
        %v901 = vpack.c.b16 %v665, %v661
        %v902 = vpack.c.b16 %v666, %v662
        %v903 = vpack.c.b16 %v667, %v663
        %v904 = vpack.c.b16 %v668, %v664
        %v905 = vpack.c.b16 %v673, %v669
        %v906 = vpack.c.b16 %v674, %v670
        %v907 = vpack.c.b16 %v675, %v671
        %v908 = vpack.c.b16 %v676, %v672
        %v909 = vpack.c.b16 %v681, %v677
        %v910 = vpack.c.b16 %v682, %v678
        %v911 = vpack.c.b16 %v683, %v679
        %v912 = vpack.c.b16 %v684, %v680
        %v913 = vpack.c.b16 %v689, %v685
        %v914 = vpack.c.b16 %v690, %v686
        %v915 = vpack.c.b16 %v691, %v687
        %v916 = vpack.c.b16 %v692, %v688
        %v917 = vpack.c.b16 %v697, %v693
        %v918 = vpack.c.b16 %v698, %v694
        %v919 = vpack.c.b16 %v699, %v695
        %v920 = vpack.c.b16 %v700, %v696
        %v921 = vpack.c.b16 %v705, %v701
        %v922 = vpack.c.b16 %v706, %v702
        %v923 = vpack.c.b16 %v707, %v703
        %v924 = vpack.c.b16 %v708, %v704
        %v925 = vpack.c.b16 %v713, %v709
        %v926 = vpack.c.b16 %v714, %v710
        %v927 = vpack.c.b16 %v715, %v711
        %v928 = vpack.c.b16 %v716, %v712
        %v929 = vpack.c.b16 %v721, %v717
        %v930 = vpack.c.b16 %v722, %v718
        %v931 = vpack.c.b16 %v723, %v719
        %v932 = vpack.c.b16 %v724, %v720
        %v933 = vpack.c.b16 %v729, %v725
        %v934 = vpack.c.b16 %v730, %v726
        %v935 = vpack.c.b16 %v731, %v727
        %v936 = vpack.c.b16 %v732, %v728
        %v937 = vpack.c.b16 %v737, %v733
        %v938 = vpack.c.b16 %v738, %v734
        %v939 = vpack.c.b16 %v739, %v735
        %v940 = vpack.c.b16 %v740, %v736
        %v941 = vpack.c.b16 %v745, %v741
        %v942 = vpack.c.b16 %v746, %v742
        %v943 = vpack.c.b16 %v747, %v743
        %v944 = vpack.c.b16 %v748, %v744
        %v945 = vpack.c.b16 %v753, %v749
        %v946 = vpack.c.b16 %v754, %v750
        %v947 = vpack.c.b16 %v755, %v751
        %v948 = vpack.c.b16 %v756, %v752
        %v949 = vpack.c.b16 %v761, %v757
        %v950 = vpack.c.b16 %v762, %v758
        %v951 = vpack.c.b16 %v763, %v759
        %v952 = vpack.c.b16 %v764, %v760
        %v953 = vpack.c.b16 %v769, %v765
        %v954 = vpack.c.b16 %v770, %v766
        %v955 = vpack.c.b16 %v771, %v767
        %v956 = vpack.c.b16 %v772, %v768
        %v957 = vpack.c.b16 %v777, %v773
        %v958 = vpack.c.b16 %v778, %v774
        %v959 = vpack.c.b16 %v779, %v775
        %v960 = vpack.c.b16 %v780, %v776
        %v961 = vpack.c.b16 %v785, %v781
        %v962 = vpack.c.b16 %v786, %v782
        %v963 = vpack.c.b16 %v787, %v783
        %v964 = vpack.c.b16 %v788, %v784
        %v965 = vpack.c.b16 %v793, %v789
        %v966 = vpack.c.b16 %v794, %v790
        %v967 = vpack.c.b16 %v795, %v791
        %v968 = vpack.c.b16 %v796, %v792
        %v969 = vpack.c.b16 %v801, %v797
        %v970 = vpack.c.b16 %v802, %v798
        %v971 = vpack.c.b16 %v803, %v799
        %v972 = vpack.c.b16 %v804, %v800
        %v973 = vpack.c.b16 %v809, %v805
        %v974 = vpack.c.b16 %v810, %v806
        %v975 = vpack.c.b16 %v811, %v807
        %v976 = vpack.c.b16 %v812, %v808
        %v977 = vpack.c.b16 %v817, %v813
        %v978 = vpack.c.b16 %v818, %v814
        %v979 = vpack.c.b16 %v819, %v815
        %v980 = vpack.c.b16 %v820, %v816
        %v981 = vpack.c.b16 %v825, %v821
        %v982 = vpack.c.b16 %v826, %v822
        %v983 = vpack.c.b16 %v827, %v823
        %v984 = vpack.c.b16 %v828, %v824
        %v985 = vpack.c.b16 %v833, %v829
        %v986 = vpack.c.b16 %v834, %v830
        %v987 = vpack.c.b16 %v835, %v831
        %v988 = vpack.c.b16 %v836, %v832
        %v989 = vpack.c.b16 %v841, %v837
        %v990 = vpack.c.b16 %v842, %v838
        %v991 = vpack.c.b16 %v843, %v839
        %v992 = vpack.c.b16 %v844, %v840
        %v993 = vpack.c.b16 %v849, %v845
        %v994 = vpack.c.b16 %v850, %v846
        %v995 = vpack.c.b16 %v851, %v847
        %v996 = vpack.c.b16 %v852, %v848
        %v997 = vpack.c.b16 %v857, %v853
        %v998 = vpack.c.b16 %v858, %v854
        %v999 = vpack.c.b16 %v859, %v855
        %v1000 = vpack.c.b16 %v860, %v856
        %v1001 = vpack.c.b16 %v865, %v861
        %v1002 = vpack.c.b16 %v866, %v862
        %v1003 = vpack.c.b16 %v867, %v863
        %v1004 = vpack.c.b16 %v868, %v864
        %v1005 = vpack.c.b16 %v873, %v869
        %v1006 = vpack.c.b16 %v874, %v870
        %v1007 = vpack.c.b16 %v875, %v871
        %v1008 = vpack.c.b16 %v876, %v872
        %v1009 = vpack.c.b16 %v881, %v877
        %v1010 = vpack.c.b16 %v882, %v878
        %v1011 = vpack.c.b16 %v883, %v879
        %v1012 = vpack.c.b16 %v884, %v880
        %1141 = vmatprep.subr.bf16.mxu0 %v886
        %1142 = vmatpush1.bf16.msra.mxu0 %v885
        %1143 = vmatprep.subr.bf16.mxu0 %v890
        %1144 = vmatpush1.bf16.msra.mxu0 %v889
        %1145 = vmatprep.subr.bf16.mxu0 %v894
        %1146 = vmatpush1.bf16.msra.mxu0 %v893
        %1147 = vmatprep.subr.bf16.mxu0 %v898
        %1148 = vmatpush1.bf16.msra.mxu0 %v897
        %1149 = vmatprep.subr.bf16.mxu0 %v902
        %1150 = vmatpush1.bf16.msra.mxu0 %v901
        %1151 = vmatprep.subr.bf16.mxu0 %v906
        %1152 = vmatpush1.bf16.msra.mxu0 %v905
        %1153 = vmatprep.subr.bf16.mxu0 %v910
        %1154 = vmatpush1.bf16.msra.mxu0 %v909
        %1155 = vmatprep.subr.bf16.mxu0 %v914
        %1156 = vmatpush1.bf16.msra.mxu0 %v913
        %1157 = vmatprep.subr.bf16.mxu0 %v918
        %1158 = vmatpush1.bf16.msra.mxu0 %v917
        %1159 = vmatprep.subr.bf16.mxu0 %v922
        %1160 = vmatpush1.bf16.msra.mxu0 %v921
        %1161 = vmatprep.subr.bf16.mxu0 %v926
        %1162 = vmatpush1.bf16.msra.mxu0 %v925
        %1163 = vmatprep.subr.bf16.mxu0 %v930
        %1164 = vmatpush1.bf16.msra.mxu0 %v929
        %1165 = vmatprep.subr.bf16.mxu0 %v934
        %1166 = vmatpush1.bf16.msra.mxu0 %v933
        %1167 = vmatprep.subr.bf16.mxu0 %v938
        %1168 = vmatpush1.bf16.msra.mxu0 %v937
        %1169 = vmatprep.subr.bf16.mxu0 %v942
        %1170 = vmatpush1.bf16.msra.mxu0 %v941
        %1171 = vmatprep.subr.bf16.mxu0 %v946
        %1172 = vmatpush1.bf16.msra.mxu0 %v945
        %1173 = vmatprep.mubr.bf16.mxu0 %v494
        %1174 = vmatmul.mubr.bf16.gmra.mrb[0].mxu0 %v493
        %v1175 = vpop.f32.mrb[0].mxu0
        %v1176 = vadd.f32 0.0, %v1175
        %v1177 = vpop.f32.mrb[0].mxu0
        %v1178 = vadd.f32 0.0, %v1177
        %v1179 = vpop.f32.mrb[0].mxu0
        %v1180 = vadd.f32 0.0, %v1179
        %v1181 = vpop.f32.mrb[0].mxu0
        %v1182 = vadd.f32 0.0, %v1181
        %1183 = vdwg.mxu0
        %1184 = vmatprep.subr.bf16.mxu0 %v950
        %1185 = vmatpush1.bf16.msra.mxu0 %v949
        %1186 = vmatprep.subr.bf16.mxu0 %v954
        %1187 = vmatpush1.bf16.msra.mxu0 %v953
        %1188 = vmatprep.subr.bf16.mxu0 %v958
        %1189 = vmatpush1.bf16.msra.mxu0 %v957
        %1190 = vmatprep.subr.bf16.mxu0 %v962
        %1191 = vmatpush1.bf16.msra.mxu0 %v961
        %1192 = vmatprep.subr.bf16.mxu0 %v966
        %1193 = vmatpush1.bf16.msra.mxu0 %v965
        %1194 = vmatprep.subr.bf16.mxu0 %v970
        %1195 = vmatpush1.bf16.msra.mxu0 %v969
        %1196 = vmatprep.subr.bf16.mxu0 %v974
        %1197 = vmatpush1.bf16.msra.mxu0 %v973
        %1198 = vmatprep.subr.bf16.mxu0 %v978
        %1199 = vmatpush1.bf16.msra.mxu0 %v977
        %1200 = vmatprep.subr.bf16.mxu0 %v982
        %1201 = vmatpush1.bf16.msra.mxu0 %v981
        %1202 = vmatprep.subr.bf16.mxu0 %v986
        %1203 = vmatpush1.bf16.msra.mxu0 %v985
        %1204 = vmatprep.subr.bf16.mxu0 %v990
        %1205 = vmatpush1.bf16.msra.mxu0 %v989
        %1206 = vmatprep.subr.bf16.mxu0 %v994
        %1207 = vmatpush1.bf16.msra.mxu0 %v993
        %1208 = vmatprep.subr.bf16.mxu0 %v998
        %1209 = vmatpush1.bf16.msra.mxu0 %v997
        %1210 = vmatprep.subr.bf16.mxu0 %v1002
        %1211 = vmatpush1.bf16.msra.mxu0 %v1001
        %1212 = vmatprep.subr.bf16.mxu0 %v1006
        %1213 = vmatpush1.bf16.msra.mxu0 %v1005
        %1214 = vmatprep.subr.bf16.mxu0 %v1010
        %1215 = vmatpush1.bf16.msra.mxu0 %v1009
        %1216 = vmatprep.mubr.bf16.mxu0 %v496
        %1217 = vmatmul.mubr.bf16.gmra.mrb[0].mxu0 %v495
        %v1218 = vpop.f32.mrb[0].mxu0
        %v1219 = vadd.f32 %v1176, %v1218
        %v1220 = vpop.f32.mrb[0].mxu0
        %v1221 = vadd.f32 %v1178, %v1220
        %v1222 = vpop.f32.mrb[0].mxu0
        %v1223 = vadd.f32 %v1180, %v1222
        %v1224 = vpop.f32.mrb[0].mxu0
        %v1225 = vadd.f32 %v1182, %v1224
        %1226 = vdwg.mxu0
        %1227 = vmatprep.subr.bf16.mxu0 %v888
        %1228 = vmatpush1.bf16.msra.mxu0 %v887
        %1229 = vmatprep.subr.bf16.mxu0 %v892
        %1230 = vmatpush1.bf16.msra.mxu0 %v891
        %1231 = vmatprep.subr.bf16.mxu0 %v896
        %1232 = vmatpush1.bf16.msra.mxu0 %v895
        %1233 = vmatprep.subr.bf16.mxu0 %v900
        %1234 = vmatpush1.bf16.msra.mxu0 %v899
        %1235 = vmatprep.subr.bf16.mxu0 %v904
        %1236 = vmatpush1.bf16.msra.mxu0 %v903
        %1237 = vmatprep.subr.bf16.mxu0 %v908
        %1238 = vmatpush1.bf16.msra.mxu0 %v907
        %1239 = vmatprep.subr.bf16.mxu0 %v912
        %1240 = vmatpush1.bf16.msra.mxu0 %v911
        %1241 = vmatprep.subr.bf16.mxu0 %v916
        %1242 = vmatpush1.bf16.msra.mxu0 %v915
        %1243 = vmatprep.subr.bf16.mxu0 %v920
        %1244 = vmatpush1.bf16.msra.mxu0 %v919
        %1245 = vmatprep.subr.bf16.mxu0 %v924
        %1246 = vmatpush1.bf16.msra.mxu0 %v923
        %1247 = vmatprep.subr.bf16.mxu0 %v928
        %1248 = vmatpush1.bf16.msra.mxu0 %v927
        %1249 = vmatprep.subr.bf16.mxu0 %v932
        %1250 = vmatpush1.bf16.msra.mxu0 %v931
        %1251 = vmatprep.subr.bf16.mxu0 %v936
        %1252 = vmatpush1.bf16.msra.mxu0 %v935
        %1253 = vmatprep.subr.bf16.mxu0 %v940
        %1254 = vmatpush1.bf16.msra.mxu0 %v939
        %1255 = vmatprep.subr.bf16.mxu0 %v944
        %1256 = vmatpush1.bf16.msra.mxu0 %v943
        %1257 = vmatprep.subr.bf16.mxu0 %v948
        %1258 = vmatpush1.bf16.msra.mxu0 %v947
        %1259 = vmatprep.mubr.bf16.mxu0 %v494
        %1260 = vmatmul.mubr.bf16.gmra.mrb[0].mxu0 %v493
        %v1261 = vpop.f32.mrb[0].mxu0
        %v1262 = vadd.f32 0.0, %v1261
        %v1263 = vpop.f32.mrb[0].mxu0
        %v1264 = vadd.f32 0.0, %v1263
        %v1265 = vpop.f32.mrb[0].mxu0
        %v1266 = vadd.f32 0.0, %v1265
        %v1267 = vpop.f32.mrb[0].mxu0
        %v1268 = vadd.f32 0.0, %v1267
        %1269 = vdwg.mxu0
        %1270 = vmatprep.subr.bf16.mxu0 %v952
        %1271 = vmatpush1.bf16.msra.mxu0 %v951
        %1272 = vmatprep.subr.bf16.mxu0 %v956
        %1273 = vmatpush1.bf16.msra.mxu0 %v955
        %1274 = vmatprep.subr.bf16.mxu0 %v960
        %1275 = vmatpush1.bf16.msra.mxu0 %v959
        %1276 = vmatprep.subr.bf16.mxu0 %v964
        %1277 = vmatpush1.bf16.msra.mxu0 %v963
        %1278 = vmatprep.subr.bf16.mxu0 %v968
        %1279 = vmatpush1.bf16.msra.mxu0 %v967
        %1280 = vmatprep.subr.bf16.mxu0 %v972
        %1281 = vmatpush1.bf16.msra.mxu0 %v971
        %1282 = vmatprep.subr.bf16.mxu0 %v976
        %1283 = vmatpush1.bf16.msra.mxu0 %v975
        %1284 = vmatprep.subr.bf16.mxu0 %v980
        %1285 = vmatpush1.bf16.msra.mxu0 %v979
        %1286 = vmatprep.subr.bf16.mxu0 %v984
        %1287 = vmatpush1.bf16.msra.mxu0 %v983
        %1288 = vmatprep.subr.bf16.mxu0 %v988
        %1289 = vmatpush1.bf16.msra.mxu0 %v987
        %1290 = vmatprep.subr.bf16.mxu0 %v992
        %1291 = vmatpush1.bf16.msra.mxu0 %v991
        %1292 = vmatprep.subr.bf16.mxu0 %v996
        %1293 = vmatpush1.bf16.msra.mxu0 %v995
        %1294 = vmatprep.subr.bf16.mxu0 %v1000
        %1295 = vmatpush1.bf16.msra.mxu0 %v999
        %1296 = vmatprep.subr.bf16.mxu0 %v1004
        %1297 = vmatpush1.bf16.msra.mxu0 %v1003
        %1298 = vmatprep.subr.bf16.mxu0 %v1008
        %1299 = vmatpush1.bf16.msra.mxu0 %v1007
        %1300 = vmatprep.subr.bf16.mxu0 %v1012
        %1301 = vmatpush1.bf16.msra.mxu0 %v1011
        %1302 = vmatprep.mubr.bf16.mxu0 %v496
        %1303 = vmatmul.mubr.bf16.gmra.mrb[0].mxu0 %v495
        %v1304 = vpop.f32.mrb[0].mxu0
        %v1305 = vadd.f32 %v1262, %v1304
        %v1306 = vpop.f32.mrb[0].mxu0
        %v1307 = vadd.f32 %v1264, %v1306
        %v1308 = vpop.f32.mrb[0].mxu0
        %v1309 = vadd.f32 %v1266, %v1308
        %v1310 = vpop.f32.mrb[0].mxu0
        %v1311 = vadd.f32 %v1268, %v1310
        %1312 = vdwg.mxu0
        %v1313 = vadd.f32 %v341, %v1219
        %v1314 = vadd.f32 %v342, %v1221
        %v1315 = vadd.f32 %v343, %v1305
        %v1316 = vadd.f32 %v344, %v1307
        %v1317 = vadd.f32 %v345, %v1223
        %v1318 = vadd.f32 %v346, %v1225
        %v1319 = vadd.f32 %v347, %v1309
        %v1320 = vadd.f32 %v348, %v1311
        %1321 = vst [vmem:[#allocation2] sm:$0xff] %v1313
        %1322 = vst [vmem:[#allocation2 + $0x8] sm:$0xff] %v1314
        %1323 = vst [vmem:[#allocation2 + $0x10] sm:$0xff] %v1315
        %1324 = vst [vmem:[#allocation2 + $0x18] sm:$0xff] %v1316
        %1325 = vst [vmem:[#allocation2 + $0x20] sm:$0xff] %v1317
        %1326 = vst [vmem:[#allocation2 + $0x28] sm:$0xff] %v1318
        %1327 = vst [vmem:[#allocation2 + $0x30] sm:$0xff] %v1319
        %1328 = vst [vmem:[#allocation2 + $0x38] sm:$0xff] %v1320
        // Predicated region
        $region53: #{forward.3} parent=35 // pred_check
          %p1329 = pneg %p329
        $region54: #{forward.3} parent=35 // pred_check_branch
          %1331 = sbr.rel (%p1329) target = $region56
        $region55: #{forward.3} parent=35 // pred_region
          %v1332 = vld [vmem:[#allocation2] sm:$0xff]
          %v1333 = vld [vmem:[#allocation2 + $0x8] sm:$0xff]
          %v1334 = vld [vmem:[#allocation2 + $0x10] sm:$0xff]
          %v1335 = vld [vmem:[#allocation2 + $0x18] sm:$0xff]
          %v1336 = vld [vmem:[#allocation2 + $0x20] sm:$0xff]
          %v1337 = vld [vmem:[#allocation2 + $0x28] sm:$0xff]
          %v1338 = vld [vmem:[#allocation2 + $0x30] sm:$0xff]
          %v1339 = vld [vmem:[#allocation2 + $0x38] sm:$0xff]
          %v1340 = vlaneseq
          %v1341 = vshrl.u32 %v1340, 7
          %v1342 = vadd.s32 %v1341, 8
          %vm1343 = vcmp.lt.s32.totalorder %v1341, 16
          %vm1344 = vcmp.lt.s32.totalorder %v1342, 16
          %v1345 = vadd.f32 %v1332, %v1336
          %v1346 = vrot.slane %v1345, 4
          %v1347 = vadd.f32 %v1345, %v1346
          %v1348 = vrot.slane %v1347, 2
          %v1349 = vadd.f32 %v1347, %v1348
          %v1350 = vrot.slane %v1349, 1
          %v1351 = vadd.f32 %v1349, %v1350
          %v1352 = vadd.f32 %v1333, %v1337
          %v1353 = vrot.slane %v1352, 4
          %v1354 = vadd.f32 %v1352, %v1353
          %v1355 = vrot.slane %v1354, 2
          %v1356 = vadd.f32 %v1354, %v1355
          %v1357 = vrot.slane %v1356, 1
          %v1358 = vadd.f32 %v1356, %v1357
          %v1359 = vadd.f32 %v1334, %v1338
          %v1360 = vrot.slane %v1359, 4
          %v1361 = vadd.f32 %v1359, %v1360
          %v1362 = vrot.slane %v1361, 2
          %v1363 = vadd.f32 %v1361, %v1362
          %v1364 = vrot.slane %v1363, 1
          %v1365 = vadd.f32 %v1363, %v1364
          %v1366 = vadd.f32 %v1335, %v1339
          %v1367 = vrot.slane %v1366, 4
          %v1368 = vadd.f32 %v1366, %v1367
          %v1369 = vrot.slane %v1368, 2
          %v1370 = vadd.f32 %v1368, %v1369
          %v1371 = vrot.slane %v1370, 1
          %v1372 = vadd.f32 %v1370, %v1371
          %v1373 = vmul.f32 %v1351, 0.0625
          %v1374 = vmul.f32 %v1358, 0.0625
          %v1375 = vmul.f32 %v1365, 0.0625
          %v1376 = vmul.f32 %v1372, 0.0625
          %v1377 = vsub.f32 %v1332, %v1373
          %v1378 = vsub.f32 %v1333, %v1374
          %v1379 = vsub.f32 %v1334, %v1375
          %v1380 = vsub.f32 %v1335, %v1376
          %v1381 = vsub.f32 %v1336, %v1373
          %v1382 = vsub.f32 %v1337, %v1374
          %v1383 = vsub.f32 %v1338, %v1375
          %v1384 = vsub.f32 %v1339, %v1376
          %v1385 = vsel %vm1343, %v1377, 0.0
          %v1386 = vsel %vm1343, %v1378, 0.0
          %v1387 = vsel %vm1343, %v1379, 0.0
          %v1388 = vsel %vm1343, %v1380, 0.0
          %v1389 = vsel %vm1344, %v1381, 0.0
          %v1390 = vsel %vm1344, %v1382, 0.0
          %v1391 = vsel %vm1344, %v1383, 0.0
          %v1392 = vsel %vm1344, %v1384, 0.0
          %v1393 = vmul.f32 %v1385, %v1385
          %v1394 = vmul.f32 %v1386, %v1386
          %v1395 = vmul.f32 %v1387, %v1387
          %v1396 = vmul.f32 %v1388, %v1388
          %v1397 = vmul.f32 %v1389, %v1389
          %v1398 = vmul.f32 %v1390, %v1390
          %v1399 = vmul.f32 %v1391, %v1391
          %v1400 = vmul.f32 %v1392, %v1392
          %v1401 = vadd.f32 %v1393, %v1397
          %v1402 = vrot.slane %v1401, 4
          %v1403 = vadd.f32 %v1401, %v1402
          %v1404 = vrot.slane %v1403, 2
          %v1405 = vadd.f32 %v1403, %v1404
          %v1406 = vrot.slane %v1405, 1
          %v1407 = vadd.f32 %v1405, %v1406
          %v1408 = vadd.f32 %v1394, %v1398
          %v1409 = vrot.slane %v1408, 4
          %v1410 = vadd.f32 %v1408, %v1409
          %v1411 = vrot.slane %v1410, 2
          %v1412 = vadd.f32 %v1410, %v1411
          %v1413 = vrot.slane %v1412, 1
          %v1414 = vadd.f32 %v1412, %v1413
          %v1415 = vadd.f32 %v1395, %v1399
          %v1416 = vrot.slane %v1415, 4
          %v1417 = vadd.f32 %v1415, %v1416
          %v1418 = vrot.slane %v1417, 2
          %v1419 = vadd.f32 %v1417, %v1418
          %v1420 = vrot.slane %v1419, 1
          %v1421 = vadd.f32 %v1419, %v1420
          %v1422 = vadd.f32 %v1396, %v1400
          %v1423 = vrot.slane %v1422, 4
          %v1424 = vadd.f32 %v1422, %v1423
          %v1425 = vrot.slane %v1424, 2
          %v1426 = vadd.f32 %v1424, %v1425
          %v1427 = vrot.slane %v1426, 1
          %v1428 = vadd.f32 %v1426, %v1427
          %v1429 = vmul.f32 %v1407, 0.0625
          %v1430 = vmul.f32 %v1414, 0.0625
          %v1431 = vmul.f32 %v1421, 0.0625
          %v1432 = vmul.f32 %v1428, 0.0625
          %v1433 = vld [vmem:[%s270] sm:$0xf]
          %v1434 = vadd.f32 %v1429, 0.001
          %v1435 = vadd.f32 %v1430, 0.001
          %v1436 = vadd.f32 %v1431, 0.001
          %v1437 = vadd.f32 %v1432, 0.001
          %v1438 = vrsqrt.pop %v1434
          %v1439 = vrsqrt.pop %v1435
          %v1440 = vrsqrt.pop %v1436
          %v1441 = vrsqrt.pop %v1437
          %v1446 = vcombine.low %v1438, %v1439
          %v1447 = vcombine.low %v1440, %v1441
          %v1449 = vunpack.c.l.s4 1966171168
          %v1450 = vunpack.c.0.s8 %v1449
          %v1451 = vlaneseq
          %v1452 = vshrl.u32 %v1451, 7
          %v1453 = vsub.s32 %v1450, %v1452
          %v1454 = vrot.slane %v1446, %v1453
          %v1456 = vunpack.c.l.s4 1966171168
          %v1457 = vunpack.c.0.s8 %v1456
          %v1458 = vlaneseq
          %v1459 = vshrl.u32 %v1458, 7
          %v1460 = vsub.s32 %v1457, %v1459
          %v1461 = vrot.slane %v1447, %v1460
          %v1462 = vcombine.low %v1454, %v1461
          %v1464 = vunpack.c.l.s4 1966171168
          %v1465 = vunpack.c.0.s8 %v1464
          %v1466 = vlaneseq
          %v1467 = vshrl.u32 %v1466, 7
          %v1468 = vsub.s32 %v1465, %v1467
          %v1469 = vrot.slane %v1462, %v1468
          %v1471 = vmul.f32 %v1433, %v1469
          %v1473 = vlaneseq
          %v1474 = vshrl.u32 %v1473, 7
          %v1475 = vsub.s32 0, %v1474
          %v1476 = vrot.slane %v1471, %v1475
          %v1477 = vlaneseq
          %v1478 = vshrl.u32 %v1477, 7
          %v1479 = vsub.s32 1, %v1478
          %v1480 = vrot.slane %v1471, %v1479
          %v1481 = vlaneseq
          %v1482 = vshrl.u32 %v1481, 7
          %v1483 = vsub.s32 2, %v1482
          %v1484 = vrot.slane %v1471, %v1483
          %v1485 = vlaneseq
          %v1486 = vshrl.u32 %v1485, 7
          %v1487 = vsub.s32 3, %v1486
          %v1488 = vrot.slane %v1471, %v1487
          %v1493 = vmul.f32 %v1385, %v1476
          %v1494 = vmul.f32 %v1386, %v1480
          %v1495 = vmul.f32 %v1387, %v1484
          %v1496 = vmul.f32 %v1388, %v1488
          %v1497 = vmul.f32 %v1389, %v1476
          %v1498 = vmul.f32 %v1390, %v1480
          %v1499 = vmul.f32 %v1391, %v1484
          %v1500 = vmul.f32 %v1392, %v1488
          %v1501 = vld [vmem:[%s279] sm:$0xf]
          %v1503 = vlaneseq
          %v1504 = vshrl.u32 %v1503, 7
          %v1505 = vsub.s32 0, %v1504
          %v1506 = vrot.slane %v1501, %v1505
          %v1507 = vlaneseq
          %v1508 = vshrl.u32 %v1507, 7
          %v1509 = vsub.s32 1, %v1508
          %v1510 = vrot.slane %v1501, %v1509
          %v1511 = vlaneseq
          %v1512 = vshrl.u32 %v1511, 7
          %v1513 = vsub.s32 2, %v1512
          %v1514 = vrot.slane %v1501, %v1513
          %v1515 = vlaneseq
          %v1516 = vshrl.u32 %v1515, 7
          %v1517 = vsub.s32 3, %v1516
          %v1518 = vrot.slane %v1501, %v1517
          %v1523 = vadd.f32 %v1493, %v1506
          %v1524 = vadd.f32 %v1494, %v1510
          %v1525 = vadd.f32 %v1495, %v1514
          %v1526 = vadd.f32 %v1496, %v1518
          %v1527 = vadd.f32 %v1497, %v1506
          %v1528 = vadd.f32 %v1498, %v1510
          %v1529 = vadd.f32 %v1499, %v1514
          %v1530 = vadd.f32 %v1500, %v1518
          %v1531 = vmax.f32 %v1523, 0.0
          %v1532 = vmax.f32 %v1524, 0.0
          %v1533 = vmax.f32 %v1525, 0.0
          %v1534 = vmax.f32 %v1526, 0.0
          %v1535 = vmax.f32 %v1527, 0.0
          %v1536 = vmax.f32 %v1528, 0.0
          %v1537 = vmax.f32 %v1529, 0.0
          %v1538 = vmax.f32 %v1530, 0.0
          %v1539 = vsel %vm1343, %v1531, 0.0
          %v1540 = vsel %vm1343, %v1532, 0.0
          %v1541 = vsel %vm1343, %v1533, 0.0
          %v1542 = vsel %vm1343, %v1534, 0.0
          %v1543 = vsel %vm1344, %v1535, 0.0
          %v1544 = vsel %vm1344, %v1536, 0.0
          %v1545 = vsel %vm1344, %v1537, 0.0
          %v1546 = vsel %vm1344, %v1538, 0.0
          %v1547 = vpack.c.bf16 %v1543, %v1539
          %v1548 = vpack.c.bf16 %v1544, %v1540
          %v1549 = vpack.c.bf16 %v1545, %v1541
          %v1550 = vpack.c.bf16 %v1546, %v1542
          %v1555 = vunpack.c.l.b16 %v1547
          %v1556 = vunpack.c.l.b16 %v1548
          %v1557 = vunpack.c.l.b16 %v1549
          %v1558 = vunpack.c.l.b16 %v1550
          %v1559 = vunpack.c.h.b16 %v1547
          %v1560 = vunpack.c.h.b16 %v1548
          %v1561 = vunpack.c.h.b16 %v1549
          %v1562 = vunpack.c.h.b16 %v1550
          %v1563 = vpack.c.b16 %v1556, %v1555
          %v1564 = vpack.c.b16 %v1558, %v1557
          %v1565 = vpack.c.b16 %v1560, %v1559
          %v1566 = vpack.c.b16 %v1562, %v1561
          %1571 = vst [vmem:[%s317] sm:$0xff] %v1563
          %1572 = vst [vmem:[%s317 + $0x8] sm:$0xff] %v1564
          %1573 = vst [vmem:[%s317 + $0x10] sm:$0xff] %v1565
          %1574 = vst [vmem:[%s317 + $0x18] sm:$0xff] %v1566
        $region56: #{forward.3} parent=35 // pred_fallthru
          _
        %s1575 = sand.u32 %s147, 1
        %s1576 = sand.u32 %s147, 1
        %s1577 = smul.addr %s1576, 32
        %s1578 = scalar_lea.vmem [#allocation8], %s1577
        // Predicated region
        $region57: #{forward.3} parent=35 // pred_check
          %p1579 = pneg %p157
        $region58: #{forward.3} parent=35 // pred_check_branch
          %1581 = sbr.rel (%p1579) target = $region60
        $region59: #{forward.3} parent=35 // pred_region
          %s1582 = smul.u32 4, %s25
          %s1583 = smul.addr %s1582, 4
          %s1584 = scalar_lea.vmem %s4, %s1583
          // Predicated region
          $region61: #{forward.3} parent=59 // pred_check
            _
          $region62: #{forward.3} parent=59 // pred_check_branch
            %1586 = sbr.rel (0) target = $region64
          $region63: #{forward.3} parent=59 // pred_region
            // Predicated region
            $region65: #{forward.3} parent=63 // pred_check
              _
            $region66: #{forward.3} parent=63 // pred_check_branch
              %1588 = sbr.rel (0) target = $region68
            $region67: #{forward.3} parent=63 // pred_region
              loop: start=0, step=1, limit=1
              $region69: #{forward.3} parent=67 // loop_pre_header
                _
              $region70: #{forward.3} parent=67 // loop_header
                %s1590 = sphi 0, %s1594
                %p1591 = scmp.ge.s32.totalorder %s1590, 1
                %s1595 = sphi %s1578, %s1578
                %s1596 = sphi %s1584, %s1584
              $region71: #{forward.3} parent=67 // loop_header_branch
                %1593 = sbr.rel (%p1591) target = $region75
              $region72: #{forward.3} parent=67 // loop_body
                %v1597 = vld [vmem:[%s1595] sm:$0xff]
                %1598 = vst [vmem:[%s1596] sm:$0xff] %v1597
                %v1599 = vld [vmem:[%s1595 + $0x8] sm:$0xff]
                %1600 = vst [vmem:[%s1596 + $0x8] sm:$0xff] %v1599
                %v1601 = vld [vmem:[%s1595 + $0x10] sm:$0xff]
                %1602 = vst [vmem:[%s1596 + $0x20] sm:$0xff] %v1601
                %v1603 = vld [vmem:[%s1595 + $0x18] sm:$0xff]
                %1604 = vst [vmem:[%s1596 + $0x28] sm:$0xff] %v1603
              $region73: #{forward.3} parent=67 // loop_footer
                %s1594 = sadd.s32 1, %s1590
              $region74: #{forward.3} parent=67 // loop_footer_branch
                %1589 = sbr.rel target = $region70
              $region75: #{forward.3} parent=67 // loop_exit
                _
            $region68: #{forward.3} parent=63 // pred_fallthru
              _
            // Predicated region
            $region76: #{forward.3} parent=63 // pred_check
              _
            $region77: #{forward.3} parent=63 // pred_check_branch
              %1606 = sbr.rel target = $region79
            $region78: #{forward.3} parent=63 // pred_region
              _
            $region79: #{forward.3} parent=63 // pred_fallthru
              _
          $region64: #{forward.3} parent=59 // pred_fallthru
            _
          %1607 = vnop
        $region60: #{forward.3} parent=35 // pred_fallthru
          _
      $region36: #{forward.3} parent=5 // pred_fallthru
        _
      %p1608 = scmp.le.s32.totalorder 2, %s16
      // Predicated region
      $region80: #{forward.3} parent=5 // pred_check
        %p1609 = pneg %p1608
      $region81: #{forward.3} parent=5 // pred_check_branch
        %1611 = sbr.rel (%p1609) target = $region83
      $region82: #{forward.3} parent=5 // pred_region
        %s1612 = ssub.s32 %s16, 2
        // Predicated region
        $region84: #{forward.3} parent=82 // pred_check
          %p1613 = pneg %p163
        $region85: #{forward.3} parent=82 // pred_check_branch
          %1615 = sbr.rel (%p1613) target = $region87
        $region86: #{forward.3} parent=82 // pred_region
          %s1616 = sand.u32 %s148, 1
          %s1617 = sand.u32 %s148, 1
          %s1618 = smul.addr %s1617, 32
          %s1619 = scalar_lea.vmem [#allocation8], %s1618
        $region87: #{forward.3} parent=82 // pred_fallthru
          _
      $region83: #{forward.3} parent=5 // pred_fallthru
        _
    $region6: #{forward.3} parent=1 // loop_footer
      %s20 = sadd.s32 1, %s16
    $region7: #{forward.3} parent=1 // loop_footer_branch
      %15 = sbr.rel target = $region3
    $region8: #{forward.3} parent=1 // loop_exit
      _
    %1620 = vsyncpa [#allocation4], 1
    %s1621 = scalar_lea.sflag [#allocation4], 1
    %1622 = vsyncpa %s1621, 1
    %1623 = vsyncpa [#allocation6], 1
    %s1624 = scalar_lea.sflag [#allocation6], 1
    %1625 = vsyncpa %s1624, 1

// kernel: forward.4
$region0: #{forward.4}
  #allocation0 [shape = 'u32[]', space=smem, size = 0x4, offset = 0x4, fixed_abs, tag = 'smem constant byte address 0x4 - core index']
  #allocation1 [shape = 'u32[144,128]{1,0:T(1,128)}', space=vmem, size = 0x12000, scoped, tag = 'internal scratch']
  #allocation2 [shape = 'f32[16,512]{1,0:T(8,128)}', space=vmem, size = 0x8000, scoped, tag = 'scratch operand']
  %s0 = inlined_call_operand.vmem [shape: bf16[16,1024], index: 0, kind: input, shape index: {}]
  %s1 = inlined_call_operand.hbm [shape: bf16[1024,1024], index: 1, kind: input, shape index: {}]
  %s2 = inlined_call_operand.hbm [shape: f32[1,1024], index: 2, kind: input, shape index: {}]
  %s3 = inlined_call_operand.hbm [shape: f32[1,1024], index: 3, kind: input, shape index: {}]
  %s4 = inlined_call_operand.vmem [shape: bf16[16,1024], index: 4, kind: output, shape index: {}]
  %s5 = sld [smem:[#allocation0]]
  $region111: #{forward.4} parent=0
    _
  %s7 = ssub.s32 1, %s5
  %s8 = scalar_select 0, %s7, %s5
  $region1: #{forward.4} parent=0
    #allocation3 [shape = 'u8[32768]{0}', space=vmem, size = 0x8000, scoped, tag = 'input window, operand 0']
    #allocation4 [shape = 'u8[1048576]{0}', space=vmem, size = 0x100000, scoped, tag = 'input window, operand 1']
    #allocation5 [shape = 's32[2]{0}', space=sflag, size = 0x8, scoped, tag = 'scoped memory for forward.4']
    #allocation6 [shape = 'u8[4096]{0}', space=vmem, size = 0x1000, scoped, tag = 'input window, operand 2']
    #allocation7 [shape = 's32[2]{0}', space=sflag, size = 0x8, scoped, tag = 'scoped memory for forward.4']
    #allocation8 [shape = 'u8[4096]{0}', space=vmem, size = 0x1000, scoped, tag = 'input window, operand 3']
    #allocation9 [shape = 'u8[32768]{0}', space=vmem, size = 0x8000, scoped, tag = 'output window, operand 0']
    %9 = vsyncpa [#allocation5], 0
    %s10 = scalar_lea.sflag [#allocation5], 1
    %11 = vsyncpa %s10, 0
    %12 = vsyncpa [#allocation7], 0
    %s13 = scalar_lea.sflag [#allocation7], 1
    %14 = vsyncpa %s13, 0
    loop: start=0, step=1, limit=6
    $region2: #{forward.4} parent=1 // loop_pre_header
      _
    $region3: #{forward.4} parent=1 // loop_header
      %s16 = sphi 0, %s20
      %p17 = scmp.ge.s32.totalorder %s16, 6
      %s23 = sphi 0, %s35
      %s24 = sphi 0, %s31
      %s25 = sphi 0, %s23
      %s26 = sphi 0, %s24
      %s27 = sphi 0, %s25
      %s28 = sphi 0, %s26
      %s38 = sphi 0, %s40
      %s41 = sphi 0, %s38
      %s42 = sphi 0, %s41
      %s58 = sphi 0, %s42
      %s66 = sphi 0, %s68
      %s69 = sphi 0, %s66
      %s70 = sphi 0, %s69
      %s86 = sphi 0, %s70
      %s92 = sphi 0, %s94
      %s95 = sphi 0, %s92
      %s96 = sphi 0, %s95
      %s112 = sphi 0, %s96
      %s118 = sphi 0, %s120
      %s121 = sphi 0, %s118
      %s122 = sphi 0, %s121
      %s138 = sphi 0, %s122
      %s144 = sphi 0, %s146
      %s147 = sphi 0, %s144
      %s148 = sphi 0, %s147
      %s164 = sphi 0, %s148
    $region4: #{forward.4} parent=1 // loop_header_branch
      %19 = sbr.rel (%p17) target = $region8
    $region5: #{forward.4} parent=1 // loop_body
      %s21 = ssub.s32 %s16, 1
      %s22 = ssub.s32 %s16, 2
      %s29 = sadd.s32 1, %s24
      %p30 = scmp.ge.s32.totalorder %s29, 2
      %s31 = scalar_select %p30, 0, %s29
      %s32 = sadd.s32 1, %s23
      %s33 = scalar_select %p30, %s32, %s23
      %p34 = scmp.ge.s32.totalorder %s33, 2
      %s35 = scalar_select %p34, 0, %s33
      %s36 = ssub.s32 %s24, %s31
      %p37 = scmp.eq.s32.totalorder %s36, 0
      %s39 = sadd.s32 %s38, 1
      %s40 = scalar_select %p37, %s38, %s39
      %p43 = pneg %p37
      %p44 = scmp.eq.s32.totalorder %s16, 3
      %p45 = por %p43, %p44
      %p46 = scmp.ne.s32.totalorder %s38, %s41
      %p47 = scmp.eq.s32.totalorder %s16, 0
      %p48 = por %p46, %p47
      %p49 = scmp.ne.s32.totalorder %s38, %s41
      %p50 = scmp.eq.s32.totalorder %s21, 3
      %p51 = por %p49, %p50
      %p52 = scmp.ne.s32.totalorder %s41, %s42
      %p53 = scmp.eq.s32.totalorder %s21, 0
      %p54 = por %p52, %p53
      %p55 = scmp.ne.s32.totalorder %s41, %s42
      %p56 = scmp.eq.s32.totalorder %s22, 3
      %p57 = por %p55, %p56
      %p59 = scmp.ne.s32.totalorder %s42, %s58
      %p60 = scmp.eq.s32.totalorder %s22, 0
      %p61 = por %p59, %p60
      %s62 = ssub.s32 %s24, %s31
      %s63 = ssub.s32 %s23, %s35
      %s64 = sor.u32 %s62, %s63
      %p65 = scmp.eq.s32.totalorder %s64, 0
      %s67 = sadd.s32 %s66, 1
      %s68 = scalar_select %p65, %s66, %s67
      %p71 = pneg %p65
      %p72 = scmp.eq.s32.totalorder %s16, 3
      %p73 = por %p71, %p72
      %p74 = scmp.ne.s32.totalorder %s66, %s69
      %p75 = scmp.eq.s32.totalorder %s16, 0
      %p76 = por %p74, %p75
      %p77 = scmp.ne.s32.totalorder %s66, %s69
      %p78 = scmp.eq.s32.totalorder %s21, 3
      %p79 = por %p77, %p78
      %p80 = scmp.ne.s32.totalorder %s69, %s70
      %p81 = scmp.eq.s32.totalorder %s21, 0
      %p82 = por %p80, %p81
      %p83 = scmp.ne.s32.totalorder %s69, %s70
      %p84 = scmp.eq.s32.totalorder %s22, 3
      %p85 = por %p83, %p84
      %p87 = scmp.ne.s32.totalorder %s70, %s86
      %p88 = scmp.eq.s32.totalorder %s22, 0
      %p89 = por %p87, %p88
      %s90 = ssub.s32 %s23, %s35
      %p91 = scmp.eq.s32.totalorder %s90, 0
      %s93 = sadd.s32 %s92, 1
      %s94 = scalar_select %p91, %s92, %s93
      %p97 = pneg %p91
      %p98 = scmp.eq.s32.totalorder %s16, 3
      %p99 = por %p97, %p98
      %p100 = scmp.ne.s32.totalorder %s92, %s95
      %p101 = scmp.eq.s32.totalorder %s16, 0
      %p102 = por %p100, %p101
      %p103 = scmp.ne.s32.totalorder %s92, %s95
      %p104 = scmp.eq.s32.totalorder %s21, 3
      %p105 = por %p103, %p104
      %p106 = scmp.ne.s32.totalorder %s95, %s96
      %p107 = scmp.eq.s32.totalorder %s21, 0
      %p108 = por %p106, %p107
      %p109 = scmp.ne.s32.totalorder %s95, %s96
      %p110 = scmp.eq.s32.totalorder %s22, 3
      %p111 = por %p109, %p110
      %p113 = scmp.ne.s32.totalorder %s96, %s112
      %p114 = scmp.eq.s32.totalorder %s22, 0
      %p115 = por %p113, %p114
      %s116 = ssub.s32 %s23, %s35
      %p117 = scmp.eq.s32.totalorder %s116, 0
      %s119 = sadd.s32 %s118, 1
      %s120 = scalar_select %p117, %s118, %s119
      %p123 = pneg %p117
      %p124 = scmp.eq.s32.totalorder %s16, 3
      %p125 = por %p123, %p124
      %p126 = scmp.ne.s32.totalorder %s118, %s121
      %p127 = scmp.eq.s32.totalorder %s16, 0
      %p128 = por %p126, %p127
      %p129 = scmp.ne.s32.totalorder %s118, %s121
      %p130 = scmp.eq.s32.totalorder %s21, 3
      %p131 = por %p129, %p130
      %p132 = scmp.ne.s32.totalorder %s121, %s122
      %p133 = scmp.eq.s32.totalorder %s21, 0
      %p134 = por %p132, %p133
      %p135 = scmp.ne.s32.totalorder %s121, %s122
      %p136 = scmp.eq.s32.totalorder %s22, 3
      %p137 = por %p135, %p136
      %p139 = scmp.ne.s32.totalorder %s122, %s138
      %p140 = scmp.eq.s32.totalorder %s22, 0
      %p141 = por %p139, %p140
      %s142 = ssub.s32 %s23, %s35
      %p143 = scmp.eq.s32.totalorder %s142, 0
      %s145 = sadd.s32 %s144, 1
      %s146 = scalar_select %p143, %s144, %s145
      %p149 = pneg %p143
      %p150 = scmp.eq.s32.totalorder %s16, 3
      %p151 = por %p149, %p150
      %p152 = scmp.ne.s32.totalorder %s144, %s147
      %p153 = scmp.eq.s32.totalorder %s16, 0
      %p154 = por %p152, %p153
      %p155 = scmp.ne.s32.totalorder %s144, %s147
      %p156 = scmp.eq.s32.totalorder %s21, 3
      %p157 = por %p155, %p156
      %p158 = scmp.ne.s32.totalorder %s147, %s148
      %p159 = scmp.eq.s32.totalorder %s21, 0
      %p160 = por %p158, %p159
      %p161 = scmp.ne.s32.totalorder %s147, %s148
      %p162 = scmp.eq.s32.totalorder %s22, 3
      %p163 = por %p161, %p162
      %p165 = scmp.ne.s32.totalorder %s148, %s164
      %p166 = scmp.eq.s32.totalorder %s22, 0
      %p167 = por %p165, %p166
      %p168 = scmp.le.s32.totalorder 1, %s16
      %p169 = scmp.lt.s32.totalorder %s16, 5
      %p170 = pnand %p168, %p169
      %p171 = pneg %p170
      // Predicated region
      $region9: #{forward.4} parent=5 // pred_check
        _
      $region10: #{forward.4} parent=5 // pred_check_branch
        %173 = sbr.rel (%p170) target = $region12
      $region11: #{forward.4} parent=5 // pred_region
        %s174 = ssub.s32 %s16, 1
      $region12: #{forward.4} parent=5 // pred_fallthru
        _
      %p175 = scmp.lt.s32.totalorder %s16, 4
      // Predicated region
      $region13: #{forward.4} parent=5 // pred_check
        %p176 = pneg %p175
      $region14: #{forward.4} parent=5 // pred_check_branch
        %178 = sbr.rel (%p176) target = $region16
      $region15: #{forward.4} parent=5 // pred_region
        // Predicated region
        $region17: #{forward.4} parent=15 // pred_check
          %p179 = pneg %p48
        $region18: #{forward.4} parent=15 // pred_check_branch
          %181 = sbr.rel (%p179) target = $region20
        $region19: #{forward.4} parent=15 // pred_region
          %s182 = sand.u32 %s38, 1
          %s183 = sand.u32 %s38, 1
          %s184 = smul.addr %s183, 32
          %s185 = scalar_lea.vmem [#allocation3], %s184
          %s186 = smul.u32 4, %s24
          %s187 = smul.addr %s186, 4
          %s188 = scalar_lea.vmem %s0, %s187
          // Predicated region
          $region21: #{forward.4} parent=19 // pred_check
            _
          $region22: #{forward.4} parent=19 // pred_check_branch
            %190 = sbr.rel (0) target = $region24
          $region23: #{forward.4} parent=19 // pred_region
            // Predicated region
            $region25: #{forward.4} parent=23 // pred_check
              _
            $region26: #{forward.4} parent=23 // pred_check_branch
              %192 = sbr.rel (0) target = $region28
            $region27: #{forward.4} parent=23 // pred_region
              loop: start=0, step=1, limit=1
              $region29: #{forward.4} parent=27 // loop_pre_header
                _
              $region30: #{forward.4} parent=27 // loop_header
                %s194 = sphi 0, %s198
                %p195 = scmp.ge.s32.totalorder %s194, 1
                %s199 = sphi %s188, %s188
                %s200 = sphi %s185, %s185
              $region31: #{forward.4} parent=27 // loop_header_branch
                %197 = sbr.rel (%p195) target = $region35
              $region32: #{forward.4} parent=27 // loop_body
                %v201 = vld [vmem:[%s199] sm:$0xff]
                %202 = vst [vmem:[%s200] sm:$0xff] %v201
                %v203 = vld [vmem:[%s199 + $0x8] sm:$0xff]
                %204 = vst [vmem:[%s200 + $0x8] sm:$0xff] %v203
                %v205 = vld [vmem:[%s199 + $0x20] sm:$0xff]
                %206 = vst [vmem:[%s200 + $0x10] sm:$0xff] %v205
                %v207 = vld [vmem:[%s199 + $0x28] sm:$0xff]
                %208 = vst [vmem:[%s200 + $0x18] sm:$0xff] %v207
              $region33: #{forward.4} parent=27 // loop_footer
                %s198 = sadd.s32 1, %s194
              $region34: #{forward.4} parent=27 // loop_footer_branch
                %193 = sbr.rel target = $region30
              $region35: #{forward.4} parent=27 // loop_exit
                _
            $region28: #{forward.4} parent=23 // pred_fallthru
              _
            // Predicated region
            $region36: #{forward.4} parent=23 // pred_check
              _
            $region37: #{forward.4} parent=23 // pred_check_branch
              %210 = sbr.rel target = $region39
            $region38: #{forward.4} parent=23 // pred_region
              _
            $region39: #{forward.4} parent=23 // pred_fallthru
              _
          $region24: #{forward.4} parent=19 // pred_fallthru
            _
          %211 = vnop
        $region20: #{forward.4} parent=15 // pred_fallthru
          _
        // Predicated region
        $region40: #{forward.4} parent=15 // pred_check
          %p212 = pneg %p76
        $region41: #{forward.4} parent=15 // pred_check_branch
          %214 = sbr.rel (%p212) target = $region43
        $region42: #{forward.4} parent=15 // pred_region
          %s215 = sand.u32 %s66, 1
          %s216 = scalar_lea.sflag [#allocation5], %s215
          %s217 = sand.u32 %s66, 1
          %s218 = smul.addr %s217, 1024
          %s219 = scalar_lea.vmem [#allocation4], %s218
          %s220 = smul.u32 64, %s24
          %s221 = smul.u32 4, %s23
          %s223 = ssub.s32 16384, 16384
          %224 = vsyncadd %s216, %s223
          %s225 = smul.addr %s220, 8
          %s226 = sadd.s32 %s221, %s225
          %s227 = smul.addr %s226, 64
          %s228 = scalar_lea.hbm %s1, %s227
          %s229 = sshll.u32 %s219, 4
          %s230 = int_to_ptr.vmem [resolvable:$true] %s229
          %235 = dma.hbm_to_vmem [thread:$0]  %s228, 16384, %s230, %s216, 512, 256, 16
        $region43: #{forward.4} parent=15 // pred_fallthru
          _
        // Predicated region
        $region44: #{forward.4} parent=15 // pred_check
          %p236 = pneg %p102
        $region45: #{forward.4} parent=15 // pred_check_branch
          %238 = sbr.rel (%p236) target = $region47
        $region46: #{forward.4} parent=15 // pred_region
          %s239 = sand.u32 %s16, 1
          %s240 = scalar_lea.sflag [#allocation7], %s239
          %s241 = sand.u32 %s92, 1
          %s242 = smul.addr %s241, 4
          %s243 = scalar_lea.vmem [#allocation6], %s242
          %s244 = smul.u32 4, %s23
          %s246 = ssub.s32 64, 64
          %247 = vsyncadd %s240, %s246
          %s248 = smul.addr %s244, 16
          %s249 = scalar_lea.hbm %s2, %s248
          %s251 = sshll.u32 %s243, 4
          %s252 = int_to_ptr.vmem [resolvable:$true] %s251
          %254 = dma.hbm_to_vmem [thread:$0]  %s249, 64, %s252, %s240
        $region47: #{forward.4} parent=15 // pred_fallthru
          _
        // Predicated region
        $region48: #{forward.4} parent=15 // pred_check
          %p255 = pneg %p128
        $region49: #{forward.4} parent=15 // pred_check_branch
          %257 = sbr.rel (%p255) target = $region51
        $region50: #{forward.4} parent=15 // pred_region
          %s258 = sand.u32 %s16, 1
          %s259 = scalar_lea.sflag [#allocation7], %s258
          %s260 = sand.u32 %s118, 1
          %s261 = smul.addr %s260, 4
          %s262 = scalar_lea.vmem [#allocation8], %s261
          %s263 = smul.u32 4, %s23
          %s265 = ssub.s32 64, 64
          %266 = vsyncadd %s259, %s265
          %s267 = smul.addr %s263, 16
          %s268 = scalar_lea.hbm %s3, %s267
          %s270 = sshll.u32 %s262, 4
          %s271 = int_to_ptr.vmem [resolvable:$true] %s270
          %273 = dma.hbm_to_vmem [thread:$0]  %s268, 64, %s271, %s259
        $region51: #{forward.4} parent=15 // pred_fallthru
          _
      $region16: #{forward.4} parent=5 // pred_fallthru
        _
      %p274 = scmp.le.s32.totalorder 1, %s16
      %p275 = scmp.lt.s32.totalorder %s16, 5
      %p276 = pnand %p274, %p275
      %p277 = pneg %p276
      // Predicated region
      $region52: #{forward.4} parent=5 // pred_check
        _
      $region53: #{forward.4} parent=5 // pred_check_branch
        %279 = sbr.rel (%p276) target = $region55
      $region54: #{forward.4} parent=5 // pred_region
        %s280 = ssub.s32 %s16, 1
        %s281 = sand.u32 %s41, 1
        %s282 = sand.u32 %s41, 1
        %s283 = smul.addr %s282, 32
        %s284 = scalar_lea.vmem [#allocation3], %s283
        // Predicated region
        $region56: #{forward.4} parent=54 // pred_check
          %p285 = pneg %p54
        $region57: #{forward.4} parent=54 // pred_check_branch
          %287 = sbr.rel (%p285) target = $region59
        $region58: #{forward.4} parent=54 // pred_region
          _
        $region59: #{forward.4} parent=54 // pred_fallthru
          _
        %s288 = sand.u32 %s69, 1
        %s289 = scalar_lea.sflag [#allocation5], %s288
        %s290 = sand.u32 %s69, 1
        %s291 = smul.addr %s290, 1024
        %s292 = scalar_lea.vmem [#allocation4], %s291
        // Predicated region
        $region60: #{forward.4} parent=54 // pred_check
          %p293 = pneg %p82
        $region61: #{forward.4} parent=54 // pred_check_branch
          %295 = sbr.rel (%p293) target = $region63
        $region62: #{forward.4} parent=54 // pred_region
          %296 = dma.done %s289, 16384
        $region63: #{forward.4} parent=54 // pred_fallthru
          _
        %s297 = sand.u32 %s21, 1
        %s298 = scalar_lea.sflag [#allocation7], %s297
        %s299 = sand.u32 %s95, 1
        %s300 = smul.addr %s299, 4
        %s301 = scalar_lea.vmem [#allocation6], %s300
        // Predicated region
        $region64: #{forward.4} parent=54 // pred_check
          %p302 = pneg %p108
        $region65: #{forward.4} parent=54 // pred_check_branch
          %304 = sbr.rel (%p302) target = $region67
        $region66: #{forward.4} parent=54 // pred_region
          %305 = dma.done %s298, 64
        $region67: #{forward.4} parent=54 // pred_fallthru
          _
        %s306 = sand.u32 %s21, 1
        %s307 = scalar_lea.sflag [#allocation7], %s306
        %s308 = sand.u32 %s121, 1
        %s309 = smul.addr %s308, 4
        %s310 = scalar_lea.vmem [#allocation8], %s309
        // Predicated region
        $region68: #{forward.4} parent=54 // pred_check
          %p311 = pneg %p134
        $region69: #{forward.4} parent=54 // pred_check_branch
          %313 = sbr.rel (%p311) target = $region71
        $region70: #{forward.4} parent=54 // pred_region
          %314 = dma.done %s307, 64
        $region71: #{forward.4} parent=54 // pred_fallthru
          _
        %s315 = sand.u32 %s41, 1
        %s316 = sand.u32 %s41, 1
        %s317 = smul.addr %s316, 32
        %s318 = scalar_lea.vmem [#allocation3], %s317
        %p319 = pneg %p54
        %p320 = pneg %p51
        %s321 = sand.u32 %s69, 1
        %s322 = scalar_lea.sflag [#allocation5], %s321
        %s323 = sand.u32 %s69, 1
        %s324 = smul.addr %s323, 1024
        %s325 = scalar_lea.vmem [#allocation4], %s324
        %p326 = pneg %p82
        %p327 = pneg %p79
        %s328 = sand.u32 %s21, 1
        %s329 = scalar_lea.sflag [#allocation7], %s328
        %s330 = sand.u32 %s95, 1
        %s331 = smul.addr %s330, 4
        %s332 = scalar_lea.vmem [#allocation6], %s331
        %p333 = pneg %p108
        %p334 = pneg %p105
        %s335 = sand.u32 %s21, 1
        %s336 = scalar_lea.sflag [#allocation7], %s335
        %s337 = sand.u32 %s121, 1
        %s338 = smul.addr %s337, 4
        %s339 = scalar_lea.vmem [#allocation8], %s338
        %p340 = pneg %p134
        %p341 = pneg %p131
        %p342 = pneg %p160
        %p343 = pneg %p157
        %s344 = sand.u32 %s147, 1
        %s345 = sand.u32 %s147, 1
        %s346 = smul.addr %s345, 32
        %s347 = scalar_lea.vmem [#allocation9], %s346
        %s348 = smul.u32 4, %s26
        %s349 = smul.u32 64, %s26
        %s350 = smul.u32 4, %s25
        %s351 = smul.u32 4, %s25
        %s352 = smul.u32 4, %s25
        %s353 = smul.u32 4, %s25
        %p354 = scmp.eq.s32.totalorder %s26, 0
        // Predicated region
        $region72: #{forward.4} parent=54 // pred_check
          %p355 = pneg %p354
        $region73: #{forward.4} parent=54 // pred_check_branch
          %357 = sbr.rel (%p355) target = $region75
        $region74: #{forward.4} parent=54 // pred_region
          %358 = vst [vmem:[#allocation2] sm:$0xff] 0.0
          %359 = vst [vmem:[#allocation2 + $0x8] sm:$0xff] 0.0
          %360 = vst [vmem:[#allocation2 + $0x10] sm:$0xff] 0.0
          %361 = vst [vmem:[#allocation2 + $0x18] sm:$0xff] 0.0
          %362 = vst [vmem:[#allocation2 + $0x20] sm:$0xff] 0.0
          %363 = vst [vmem:[#allocation2 + $0x28] sm:$0xff] 0.0
          %364 = vst [vmem:[#allocation2 + $0x30] sm:$0xff] 0.0
          %365 = vst [vmem:[#allocation2 + $0x38] sm:$0xff] 0.0
        $region75: #{forward.4} parent=54 // pred_fallthru
          _
        %v366 = vld [vmem:[#allocation2] sm:$0xff]
        %v367 = vld [vmem:[#allocation2 + $0x8] sm:$0xff]
        %v368 = vld [vmem:[#allocation2 + $0x10] sm:$0xff]
        %v369 = vld [vmem:[#allocation2 + $0x18] sm:$0xff]
        %v370 = vld [vmem:[#allocation2 + $0x20] sm:$0xff]
        %v371 = vld [vmem:[#allocation2 + $0x28] sm:$0xff]
        %v372 = vld [vmem:[#allocation2 + $0x30] sm:$0xff]
        %v373 = vld [vmem:[#allocation2 + $0x38] sm:$0xff]
        %v374 = vld [vmem:[%s284] sm:$0xff]
        %v375 = vld [vmem:[%s284 + $0x8] sm:$0xff]
        %v376 = vld [vmem:[%s284 + $0x10] sm:$0xff]
        %v377 = vld [vmem:[%s284 + $0x18] sm:$0xff]
        %v378 = vld [vmem:[%s292] sm:$0xff]
        %v379 = vld [vmem:[%s292 + $0x8] sm:$0xff]
        %v380 = vld [vmem:[%s292 + $0x10] sm:$0xff]
        %v381 = vld [vmem:[%s292 + $0x18] sm:$0xff]
        %v382 = vld [vmem:[%s292 + $0x20] sm:$0xff]
        %v383 = vld [vmem:[%s292 + $0x28] sm:$0xff]
        %v384 = vld [vmem:[%s292 + $0x30] sm:$0xff]
        %v385 = vld [vmem:[%s292 + $0x38] sm:$0xff]
        %v386 = vld [vmem:[%s292 + $0x40] sm:$0xff]
        %v387 = vld [vmem:[%s292 + $0x48] sm:$0xff]
        %v388 = vld [vmem:[%s292 + $0x50] sm:$0xff]
        %v389 = vld [vmem:[%s292 + $0x58] sm:$0xff]
        %v390 = vld [vmem:[%s292 + $0x60] sm:$0xff]
        %v391 = vld [vmem:[%s292 + $0x68] sm:$0xff]
        %v392 = vld [vmem:[%s292 + $0x70] sm:$0xff]
        %v393 = vld [vmem:[%s292 + $0x78] sm:$0xff]
        %v394 = vld [vmem:[%s292 + $0x80] sm:$0xff]
        %v395 = vld [vmem:[%s292 + $0x88] sm:$0xff]
        %v396 = vld [vmem:[%s292 + $0x90] sm:$0xff]
        %v397 = vld [vmem:[%s292 + $0x98] sm:$0xff]
        %v398 = vld [vmem:[%s292 + $0xa0] sm:$0xff]
        %v399 = vld [vmem:[%s292 + $0xa8] sm:$0xff]
        %v400 = vld [vmem:[%s292 + $0xb0] sm:$0xff]
        %v401 = vld [vmem:[%s292 + $0xb8] sm:$0xff]
        %v402 = vld [vmem:[%s292 + $0xc0] sm:$0xff]
        %v403 = vld [vmem:[%s292 + $0xc8] sm:$0xff]
        %v404 = vld [vmem:[%s292 + $0xd0] sm:$0xff]
        %v405 = vld [vmem:[%s292 + $0xd8] sm:$0xff]
        %v406 = vld [vmem:[%s292 + $0xe0] sm:$0xff]
        %v407 = vld [vmem:[%s292 + $0xe8] sm:$0xff]
        %v408 = vld [vmem:[%s292 + $0xf0] sm:$0xff]
        %v409 = vld [vmem:[%s292 + $0xf8] sm:$0xff]
        %v410 = vld [vmem:[%s292 + $0x100] sm:$0xff]
        %v411 = vld [vmem:[%s292 + $0x108] sm:$0xff]
        %v412 = vld [vmem:[%s292 + $0x110] sm:$0xff]
        %v413 = vld [vmem:[%s292 + $0x118] sm:$0xff]
        %v414 = vld [vmem:[%s292 + $0x120] sm:$0xff]
        %v415 = vld [vmem:[%s292 + $0x128] sm:$0xff]
        %v416 = vld [vmem:[%s292 + $0x130] sm:$0xff]
        %v417 = vld [vmem:[%s292 + $0x138] sm:$0xff]
        %v418 = vld [vmem:[%s292 + $0x140] sm:$0xff]
        %v419 = vld [vmem:[%s292 + $0x148] sm:$0xff]
        %v420 = vld [vmem:[%s292 + $0x150] sm:$0xff]
        %v421 = vld [vmem:[%s292 + $0x158] sm:$0xff]
        %v422 = vld [vmem:[%s292 + $0x160] sm:$0xff]
        %v423 = vld [vmem:[%s292 + $0x168] sm:$0xff]
        %v424 = vld [vmem:[%s292 + $0x170] sm:$0xff]
        %v425 = vld [vmem:[%s292 + $0x178] sm:$0xff]
        %v426 = vld [vmem:[%s292 + $0x180] sm:$0xff]
        %v427 = vld [vmem:[%s292 + $0x188] sm:$0xff]
        %v428 = vld [vmem:[%s292 + $0x190] sm:$0xff]
        %v429 = vld [vmem:[%s292 + $0x198] sm:$0xff]
        %v430 = vld [vmem:[%s292 + $0x1a0] sm:$0xff]
        %v431 = vld [vmem:[%s292 + $0x1a8] sm:$0xff]
        %v432 = vld [vmem:[%s292 + $0x1b0] sm:$0xff]
        %v433 = vld [vmem:[%s292 + $0x1b8] sm:$0xff]
        %v434 = vld [vmem:[%s292 + $0x1c0] sm:$0xff]
        %v435 = vld [vmem:[%s292 + $0x1c8] sm:$0xff]
        %v436 = vld [vmem:[%s292 + $0x1d0] sm:$0xff]
        %v437 = vld [vmem:[%s292 + $0x1d8] sm:$0xff]
        %v438 = vld [vmem:[%s292 + $0x1e0] sm:$0xff]
        %v439 = vld [vmem:[%s292 + $0x1e8] sm:$0xff]
        %v440 = vld [vmem:[%s292 + $0x1f0] sm:$0xff]
        %v441 = vld [vmem:[%s292 + $0x1f8] sm:$0xff]
        %v442 = vld [vmem:[%s292 + $0x200] sm:$0xff]
        %v443 = vld [vmem:[%s292 + $0x208] sm:$0xff]
        %v444 = vld [vmem:[%s292 + $0x210] sm:$0xff]
        %v445 = vld [vmem:[%s292 + $0x218] sm:$0xff]
        %v446 = vld [vmem:[%s292 + $0x220] sm:$0xff]
        %v447 = vld [vmem:[%s292 + $0x228] sm:$0xff]
        %v448 = vld [vmem:[%s292 + $0x230] sm:$0xff]
        %v449 = vld [vmem:[%s292 + $0x238] sm:$0xff]
        %v450 = vld [vmem:[%s292 + $0x240] sm:$0xff]
        %v451 = vld [vmem:[%s292 + $0x248] sm:$0xff]
        %v452 = vld [vmem:[%s292 + $0x250] sm:$0xff]
        %v453 = vld [vmem:[%s292 + $0x258] sm:$0xff]
        %v454 = vld [vmem:[%s292 + $0x260] sm:$0xff]
        %v455 = vld [vmem:[%s292 + $0x268] sm:$0xff]
        %v456 = vld [vmem:[%s292 + $0x270] sm:$0xff]
        %v457 = vld [vmem:[%s292 + $0x278] sm:$0xff]
        %v458 = vld [vmem:[%s292 + $0x280] sm:$0xff]
        %v459 = vld [vmem:[%s292 + $0x288] sm:$0xff]
        %v460 = vld [vmem:[%s292 + $0x290] sm:$0xff]
        %v461 = vld [vmem:[%s292 + $0x298] sm:$0xff]
        %v462 = vld [vmem:[%s292 + $0x2a0] sm:$0xff]
        %v463 = vld [vmem:[%s292 + $0x2a8] sm:$0xff]
        %v464 = vld [vmem:[%s292 + $0x2b0] sm:$0xff]
        %v465 = vld [vmem:[%s292 + $0x2b8] sm:$0xff]
        %v466 = vld [vmem:[%s292 + $0x2c0] sm:$0xff]
        %v467 = vld [vmem:[%s292 + $0x2c8] sm:$0xff]
        %v468 = vld [vmem:[%s292 + $0x2d0] sm:$0xff]
        %v469 = vld [vmem:[%s292 + $0x2d8] sm:$0xff]
        %v470 = vld [vmem:[%s292 + $0x2e0] sm:$0xff]
        %v471 = vld [vmem:[%s292 + $0x2e8] sm:$0xff]
        %v472 = vld [vmem:[%s292 + $0x2f0] sm:$0xff]
        %v473 = vld [vmem:[%s292 + $0x2f8] sm:$0xff]
        %v474 = vld [vmem:[%s292 + $0x300] sm:$0xff]
        %v475 = vld [vmem:[%s292 + $0x308] sm:$0xff]
        %v476 = vld [vmem:[%s292 + $0x310] sm:$0xff]
        %v477 = vld [vmem:[%s292 + $0x318] sm:$0xff]
        %v478 = vld [vmem:[%s292 + $0x320] sm:$0xff]
        %v479 = vld [vmem:[%s292 + $0x328] sm:$0xff]
        %v480 = vld [vmem:[%s292 + $0x330] sm:$0xff]
        %v481 = vld [vmem:[%s292 + $0x338] sm:$0xff]
        %v482 = vld [vmem:[%s292 + $0x340] sm:$0xff]
        %v483 = vld [vmem:[%s292 + $0x348] sm:$0xff]
        %v484 = vld [vmem:[%s292 + $0x350] sm:$0xff]
        %v485 = vld [vmem:[%s292 + $0x358] sm:$0xff]
        %v486 = vld [vmem:[%s292 + $0x360] sm:$0xff]
        %v487 = vld [vmem:[%s292 + $0x368] sm:$0xff]
        %v488 = vld [vmem:[%s292 + $0x370] sm:$0xff]
        %v489 = vld [vmem:[%s292 + $0x378] sm:$0xff]
        %v490 = vld [vmem:[%s292 + $0x380] sm:$0xff]
        %v491 = vld [vmem:[%s292 + $0x388] sm:$0xff]
        %v492 = vld [vmem:[%s292 + $0x390] sm:$0xff]
        %v493 = vld [vmem:[%s292 + $0x398] sm:$0xff]
        %v494 = vld [vmem:[%s292 + $0x3a0] sm:$0xff]
        %v495 = vld [vmem:[%s292 + $0x3a8] sm:$0xff]
        %v496 = vld [vmem:[%s292 + $0x3b0] sm:$0xff]
        %v497 = vld [vmem:[%s292 + $0x3b8] sm:$0xff]
        %v498 = vld [vmem:[%s292 + $0x3c0] sm:$0xff]
        %v499 = vld [vmem:[%s292 + $0x3c8] sm:$0xff]
        %v500 = vld [vmem:[%s292 + $0x3d0] sm:$0xff]
        %v501 = vld [vmem:[%s292 + $0x3d8] sm:$0xff]
        %v502 = vld [vmem:[%s292 + $0x3e0] sm:$0xff]
        %v503 = vld [vmem:[%s292 + $0x3e8] sm:$0xff]
        %v504 = vld [vmem:[%s292 + $0x3f0] sm:$0xff]
        %v505 = vld [vmem:[%s292 + $0x3f8] sm:$0xff]
        %v510 = vunpack.c.l.b16 %v374
        %v511 = vunpack.c.h.b16 %v374
        %v512 = vunpack.c.l.b16 %v375
        %v513 = vunpack.c.h.b16 %v375
        %v514 = vunpack.c.l.b16 %v376
        %v515 = vunpack.c.h.b16 %v376
        %v516 = vunpack.c.l.b16 %v377
        %v517 = vunpack.c.h.b16 %v377
        %v518 = vpack.c.b16 %v514, %v510
        %v519 = vpack.c.b16 %v515, %v511
        %v520 = vpack.c.b16 %v516, %v512
        %v521 = vpack.c.b16 %v517, %v513
        %v654 = vunpack.c.l.b16 %v378
        %v655 = vunpack.c.h.b16 %v378
        %v656 = vunpack.c.l.b16 %v379
        %v657 = vunpack.c.h.b16 %v379
        %v658 = vunpack.c.l.b16 %v380
        %v659 = vunpack.c.h.b16 %v380
        %v660 = vunpack.c.l.b16 %v381
        %v661 = vunpack.c.h.b16 %v381
        %v662 = vunpack.c.l.b16 %v382
        %v663 = vunpack.c.h.b16 %v382
        %v664 = vunpack.c.l.b16 %v383
        %v665 = vunpack.c.h.b16 %v383
        %v666 = vunpack.c.l.b16 %v384
        %v667 = vunpack.c.h.b16 %v384
        %v668 = vunpack.c.l.b16 %v385
        %v669 = vunpack.c.h.b16 %v385
        %v670 = vunpack.c.l.b16 %v386
        %v671 = vunpack.c.h.b16 %v386
        %v672 = vunpack.c.l.b16 %v387
        %v673 = vunpack.c.h.b16 %v387
        %v674 = vunpack.c.l.b16 %v388
        %v675 = vunpack.c.h.b16 %v388
        %v676 = vunpack.c.l.b16 %v389
        %v677 = vunpack.c.h.b16 %v389
        %v678 = vunpack.c.l.b16 %v390
        %v679 = vunpack.c.h.b16 %v390
        %v680 = vunpack.c.l.b16 %v391
        %v681 = vunpack.c.h.b16 %v391
        %v682 = vunpack.c.l.b16 %v392
        %v683 = vunpack.c.h.b16 %v392
        %v684 = vunpack.c.l.b16 %v393
        %v685 = vunpack.c.h.b16 %v393
        %v686 = vunpack.c.l.b16 %v394
        %v687 = vunpack.c.h.b16 %v394
        %v688 = vunpack.c.l.b16 %v395
        %v689 = vunpack.c.h.b16 %v395
        %v690 = vunpack.c.l.b16 %v396
        %v691 = vunpack.c.h.b16 %v396
        %v692 = vunpack.c.l.b16 %v397
        %v693 = vunpack.c.h.b16 %v397
        %v694 = vunpack.c.l.b16 %v398
        %v695 = vunpack.c.h.b16 %v398
        %v696 = vunpack.c.l.b16 %v399
        %v697 = vunpack.c.h.b16 %v399
        %v698 = vunpack.c.l.b16 %v400
        %v699 = vunpack.c.h.b16 %v400
        %v700 = vunpack.c.l.b16 %v401
        %v701 = vunpack.c.h.b16 %v401
        %v702 = vunpack.c.l.b16 %v402
        %v703 = vunpack.c.h.b16 %v402
        %v704 = vunpack.c.l.b16 %v403
        %v705 = vunpack.c.h.b16 %v403
        %v706 = vunpack.c.l.b16 %v404
        %v707 = vunpack.c.h.b16 %v404
        %v708 = vunpack.c.l.b16 %v405
        %v709 = vunpack.c.h.b16 %v405
        %v710 = vunpack.c.l.b16 %v406
        %v711 = vunpack.c.h.b16 %v406
        %v712 = vunpack.c.l.b16 %v407
        %v713 = vunpack.c.h.b16 %v407
        %v714 = vunpack.c.l.b16 %v408
        %v715 = vunpack.c.h.b16 %v408
        %v716 = vunpack.c.l.b16 %v409
        %v717 = vunpack.c.h.b16 %v409
        %v718 = vunpack.c.l.b16 %v410
        %v719 = vunpack.c.h.b16 %v410
        %v720 = vunpack.c.l.b16 %v411
        %v721 = vunpack.c.h.b16 %v411
        %v722 = vunpack.c.l.b16 %v412
        %v723 = vunpack.c.h.b16 %v412
        %v724 = vunpack.c.l.b16 %v413
        %v725 = vunpack.c.h.b16 %v413
        %v726 = vunpack.c.l.b16 %v414
        %v727 = vunpack.c.h.b16 %v414
        %v728 = vunpack.c.l.b16 %v415
        %v729 = vunpack.c.h.b16 %v415
        %v730 = vunpack.c.l.b16 %v416
        %v731 = vunpack.c.h.b16 %v416
        %v732 = vunpack.c.l.b16 %v417
        %v733 = vunpack.c.h.b16 %v417
        %v734 = vunpack.c.l.b16 %v418
        %v735 = vunpack.c.h.b16 %v418
        %v736 = vunpack.c.l.b16 %v419
        %v737 = vunpack.c.h.b16 %v419
        %v738 = vunpack.c.l.b16 %v420
        %v739 = vunpack.c.h.b16 %v420
        %v740 = vunpack.c.l.b16 %v421
        %v741 = vunpack.c.h.b16 %v421
        %v742 = vunpack.c.l.b16 %v422
        %v743 = vunpack.c.h.b16 %v422
        %v744 = vunpack.c.l.b16 %v423
        %v745 = vunpack.c.h.b16 %v423
        %v746 = vunpack.c.l.b16 %v424
        %v747 = vunpack.c.h.b16 %v424
        %v748 = vunpack.c.l.b16 %v425
        %v749 = vunpack.c.h.b16 %v425
        %v750 = vunpack.c.l.b16 %v426
        %v751 = vunpack.c.h.b16 %v426
        %v752 = vunpack.c.l.b16 %v427
        %v753 = vunpack.c.h.b16 %v427
        %v754 = vunpack.c.l.b16 %v428
        %v755 = vunpack.c.h.b16 %v428
        %v756 = vunpack.c.l.b16 %v429
        %v757 = vunpack.c.h.b16 %v429
        %v758 = vunpack.c.l.b16 %v430
        %v759 = vunpack.c.h.b16 %v430
        %v760 = vunpack.c.l.b16 %v431
        %v761 = vunpack.c.h.b16 %v431
        %v762 = vunpack.c.l.b16 %v432
        %v763 = vunpack.c.h.b16 %v432
        %v764 = vunpack.c.l.b16 %v433
        %v765 = vunpack.c.h.b16 %v433
        %v766 = vunpack.c.l.b16 %v434
        %v767 = vunpack.c.h.b16 %v434
        %v768 = vunpack.c.l.b16 %v435
        %v769 = vunpack.c.h.b16 %v435
        %v770 = vunpack.c.l.b16 %v436
        %v771 = vunpack.c.h.b16 %v436
        %v772 = vunpack.c.l.b16 %v437
        %v773 = vunpack.c.h.b16 %v437
        %v774 = vunpack.c.l.b16 %v438
        %v775 = vunpack.c.h.b16 %v438
        %v776 = vunpack.c.l.b16 %v439
        %v777 = vunpack.c.h.b16 %v439
        %v778 = vunpack.c.l.b16 %v440
        %v779 = vunpack.c.h.b16 %v440
        %v780 = vunpack.c.l.b16 %v441
        %v781 = vunpack.c.h.b16 %v441
        %v782 = vunpack.c.l.b16 %v442
        %v783 = vunpack.c.h.b16 %v442
        %v784 = vunpack.c.l.b16 %v443
        %v785 = vunpack.c.h.b16 %v443
        %v786 = vunpack.c.l.b16 %v444
        %v787 = vunpack.c.h.b16 %v444
        %v788 = vunpack.c.l.b16 %v445
        %v789 = vunpack.c.h.b16 %v445
        %v790 = vunpack.c.l.b16 %v446
        %v791 = vunpack.c.h.b16 %v446
        %v792 = vunpack.c.l.b16 %v447
        %v793 = vunpack.c.h.b16 %v447
        %v794 = vunpack.c.l.b16 %v448
        %v795 = vunpack.c.h.b16 %v448
        %v796 = vunpack.c.l.b16 %v449
        %v797 = vunpack.c.h.b16 %v449
        %v798 = vunpack.c.l.b16 %v450
        %v799 = vunpack.c.h.b16 %v450
        %v800 = vunpack.c.l.b16 %v451
        %v801 = vunpack.c.h.b16 %v451
        %v802 = vunpack.c.l.b16 %v452
        %v803 = vunpack.c.h.b16 %v452
        %v804 = vunpack.c.l.b16 %v453
        %v805 = vunpack.c.h.b16 %v453
        %v806 = vunpack.c.l.b16 %v454
        %v807 = vunpack.c.h.b16 %v454
        %v808 = vunpack.c.l.b16 %v455
        %v809 = vunpack.c.h.b16 %v455
        %v810 = vunpack.c.l.b16 %v456
        %v811 = vunpack.c.h.b16 %v456
        %v812 = vunpack.c.l.b16 %v457
        %v813 = vunpack.c.h.b16 %v457
        %v814 = vunpack.c.l.b16 %v458
        %v815 = vunpack.c.h.b16 %v458
        %v816 = vunpack.c.l.b16 %v459
        %v817 = vunpack.c.h.b16 %v459
        %v818 = vunpack.c.l.b16 %v460
        %v819 = vunpack.c.h.b16 %v460
        %v820 = vunpack.c.l.b16 %v461
        %v821 = vunpack.c.h.b16 %v461
        %v822 = vunpack.c.l.b16 %v462
        %v823 = vunpack.c.h.b16 %v462
        %v824 = vunpack.c.l.b16 %v463
        %v825 = vunpack.c.h.b16 %v463
        %v826 = vunpack.c.l.b16 %v464
        %v827 = vunpack.c.h.b16 %v464
        %v828 = vunpack.c.l.b16 %v465
        %v829 = vunpack.c.h.b16 %v465
        %v830 = vunpack.c.l.b16 %v466
        %v831 = vunpack.c.h.b16 %v466
        %v832 = vunpack.c.l.b16 %v467
        %v833 = vunpack.c.h.b16 %v467
        %v834 = vunpack.c.l.b16 %v468
        %v835 = vunpack.c.h.b16 %v468
        %v836 = vunpack.c.l.b16 %v469
        %v837 = vunpack.c.h.b16 %v469
        %v838 = vunpack.c.l.b16 %v470
        %v839 = vunpack.c.h.b16 %v470
        %v840 = vunpack.c.l.b16 %v471
        %v841 = vunpack.c.h.b16 %v471
        %v842 = vunpack.c.l.b16 %v472
        %v843 = vunpack.c.h.b16 %v472
        %v844 = vunpack.c.l.b16 %v473
        %v845 = vunpack.c.h.b16 %v473
        %v846 = vunpack.c.l.b16 %v474
        %v847 = vunpack.c.h.b16 %v474
        %v848 = vunpack.c.l.b16 %v475
        %v849 = vunpack.c.h.b16 %v475
        %v850 = vunpack.c.l.b16 %v476
        %v851 = vunpack.c.h.b16 %v476
        %v852 = vunpack.c.l.b16 %v477
        %v853 = vunpack.c.h.b16 %v477
        %v854 = vunpack.c.l.b16 %v478
        %v855 = vunpack.c.h.b16 %v478
        %v856 = vunpack.c.l.b16 %v479
        %v857 = vunpack.c.h.b16 %v479
        %v858 = vunpack.c.l.b16 %v480
        %v859 = vunpack.c.h.b16 %v480
        %v860 = vunpack.c.l.b16 %v481
        %v861 = vunpack.c.h.b16 %v481
        %v862 = vunpack.c.l.b16 %v482
        %v863 = vunpack.c.h.b16 %v482
        %v864 = vunpack.c.l.b16 %v483
        %v865 = vunpack.c.h.b16 %v483
        %v866 = vunpack.c.l.b16 %v484
        %v867 = vunpack.c.h.b16 %v484
        %v868 = vunpack.c.l.b16 %v485
        %v869 = vunpack.c.h.b16 %v485
        %v870 = vunpack.c.l.b16 %v486
        %v871 = vunpack.c.h.b16 %v486
        %v872 = vunpack.c.l.b16 %v487
        %v873 = vunpack.c.h.b16 %v487
        %v874 = vunpack.c.l.b16 %v488
        %v875 = vunpack.c.h.b16 %v488
        %v876 = vunpack.c.l.b16 %v489
        %v877 = vunpack.c.h.b16 %v489
        %v878 = vunpack.c.l.b16 %v490
        %v879 = vunpack.c.h.b16 %v490
        %v880 = vunpack.c.l.b16 %v491
        %v881 = vunpack.c.h.b16 %v491
        %v882 = vunpack.c.l.b16 %v492
        %v883 = vunpack.c.h.b16 %v492
        %v884 = vunpack.c.l.b16 %v493
        %v885 = vunpack.c.h.b16 %v493
        %v886 = vunpack.c.l.b16 %v494
        %v887 = vunpack.c.h.b16 %v494
        %v888 = vunpack.c.l.b16 %v495
        %v889 = vunpack.c.h.b16 %v495
        %v890 = vunpack.c.l.b16 %v496
        %v891 = vunpack.c.h.b16 %v496
        %v892 = vunpack.c.l.b16 %v497
        %v893 = vunpack.c.h.b16 %v497
        %v894 = vunpack.c.l.b16 %v498
        %v895 = vunpack.c.h.b16 %v498
        %v896 = vunpack.c.l.b16 %v499
        %v897 = vunpack.c.h.b16 %v499
        %v898 = vunpack.c.l.b16 %v500
        %v899 = vunpack.c.h.b16 %v500
        %v900 = vunpack.c.l.b16 %v501
        %v901 = vunpack.c.h.b16 %v501
        %v902 = vunpack.c.l.b16 %v502
        %v903 = vunpack.c.h.b16 %v502
        %v904 = vunpack.c.l.b16 %v503
        %v905 = vunpack.c.h.b16 %v503
        %v906 = vunpack.c.l.b16 %v504
        %v907 = vunpack.c.h.b16 %v504
        %v908 = vunpack.c.l.b16 %v505
        %v909 = vunpack.c.h.b16 %v505
        %v910 = vpack.c.b16 %v658, %v654
        %v911 = vpack.c.b16 %v659, %v655
        %v912 = vpack.c.b16 %v660, %v656
        %v913 = vpack.c.b16 %v661, %v657
        %v914 = vpack.c.b16 %v666, %v662
        %v915 = vpack.c.b16 %v667, %v663
        %v916 = vpack.c.b16 %v668, %v664
        %v917 = vpack.c.b16 %v669, %v665
        %v918 = vpack.c.b16 %v674, %v670
        %v919 = vpack.c.b16 %v675, %v671
        %v920 = vpack.c.b16 %v676, %v672
        %v921 = vpack.c.b16 %v677, %v673
        %v922 = vpack.c.b16 %v682, %v678
        %v923 = vpack.c.b16 %v683, %v679
        %v924 = vpack.c.b16 %v684, %v680
        %v925 = vpack.c.b16 %v685, %v681
        %v926 = vpack.c.b16 %v690, %v686
        %v927 = vpack.c.b16 %v691, %v687
        %v928 = vpack.c.b16 %v692, %v688
        %v929 = vpack.c.b16 %v693, %v689
        %v930 = vpack.c.b16 %v698, %v694
        %v931 = vpack.c.b16 %v699, %v695
        %v932 = vpack.c.b16 %v700, %v696
        %v933 = vpack.c.b16 %v701, %v697
        %v934 = vpack.c.b16 %v706, %v702
        %v935 = vpack.c.b16 %v707, %v703
        %v936 = vpack.c.b16 %v708, %v704
        %v937 = vpack.c.b16 %v709, %v705
        %v938 = vpack.c.b16 %v714, %v710
        %v939 = vpack.c.b16 %v715, %v711
        %v940 = vpack.c.b16 %v716, %v712
        %v941 = vpack.c.b16 %v717, %v713
        %v942 = vpack.c.b16 %v722, %v718
        %v943 = vpack.c.b16 %v723, %v719
        %v944 = vpack.c.b16 %v724, %v720
        %v945 = vpack.c.b16 %v725, %v721
        %v946 = vpack.c.b16 %v730, %v726
        %v947 = vpack.c.b16 %v731, %v727
        %v948 = vpack.c.b16 %v732, %v728
        %v949 = vpack.c.b16 %v733, %v729
        %v950 = vpack.c.b16 %v738, %v734
        %v951 = vpack.c.b16 %v739, %v735
        %v952 = vpack.c.b16 %v740, %v736
        %v953 = vpack.c.b16 %v741, %v737
        %v954 = vpack.c.b16 %v746, %v742
        %v955 = vpack.c.b16 %v747, %v743
        %v956 = vpack.c.b16 %v748, %v744
        %v957 = vpack.c.b16 %v749, %v745
        %v958 = vpack.c.b16 %v754, %v750
        %v959 = vpack.c.b16 %v755, %v751
        %v960 = vpack.c.b16 %v756, %v752
        %v961 = vpack.c.b16 %v757, %v753
        %v962 = vpack.c.b16 %v762, %v758
        %v963 = vpack.c.b16 %v763, %v759
        %v964 = vpack.c.b16 %v764, %v760
        %v965 = vpack.c.b16 %v765, %v761
        %v966 = vpack.c.b16 %v770, %v766
        %v967 = vpack.c.b16 %v771, %v767
        %v968 = vpack.c.b16 %v772, %v768
        %v969 = vpack.c.b16 %v773, %v769
        %v970 = vpack.c.b16 %v778, %v774
        %v971 = vpack.c.b16 %v779, %v775
        %v972 = vpack.c.b16 %v780, %v776
        %v973 = vpack.c.b16 %v781, %v777
        %v974 = vpack.c.b16 %v786, %v782
        %v975 = vpack.c.b16 %v787, %v783
        %v976 = vpack.c.b16 %v788, %v784
        %v977 = vpack.c.b16 %v789, %v785
        %v978 = vpack.c.b16 %v794, %v790
        %v979 = vpack.c.b16 %v795, %v791
        %v980 = vpack.c.b16 %v796, %v792
        %v981 = vpack.c.b16 %v797, %v793
        %v982 = vpack.c.b16 %v802, %v798
        %v983 = vpack.c.b16 %v803, %v799
        %v984 = vpack.c.b16 %v804, %v800
        %v985 = vpack.c.b16 %v805, %v801
        %v986 = vpack.c.b16 %v810, %v806
        %v987 = vpack.c.b16 %v811, %v807
        %v988 = vpack.c.b16 %v812, %v808
        %v989 = vpack.c.b16 %v813, %v809
        %v990 = vpack.c.b16 %v818, %v814
        %v991 = vpack.c.b16 %v819, %v815
        %v992 = vpack.c.b16 %v820, %v816
        %v993 = vpack.c.b16 %v821, %v817
        %v994 = vpack.c.b16 %v826, %v822
        %v995 = vpack.c.b16 %v827, %v823
        %v996 = vpack.c.b16 %v828, %v824
        %v997 = vpack.c.b16 %v829, %v825
        %v998 = vpack.c.b16 %v834, %v830
        %v999 = vpack.c.b16 %v835, %v831
        %v1000 = vpack.c.b16 %v836, %v832
        %v1001 = vpack.c.b16 %v837, %v833
        %v1002 = vpack.c.b16 %v842, %v838
        %v1003 = vpack.c.b16 %v843, %v839
        %v1004 = vpack.c.b16 %v844, %v840
        %v1005 = vpack.c.b16 %v845, %v841
        %v1006 = vpack.c.b16 %v850, %v846
        %v1007 = vpack.c.b16 %v851, %v847
        %v1008 = vpack.c.b16 %v852, %v848
        %v1009 = vpack.c.b16 %v853, %v849
        %v1010 = vpack.c.b16 %v858, %v854
        %v1011 = vpack.c.b16 %v859, %v855
        %v1012 = vpack.c.b16 %v860, %v856
        %v1013 = vpack.c.b16 %v861, %v857
        %v1014 = vpack.c.b16 %v866, %v862
        %v1015 = vpack.c.b16 %v867, %v863
        %v1016 = vpack.c.b16 %v868, %v864
        %v1017 = vpack.c.b16 %v869, %v865
        %v1018 = vpack.c.b16 %v874, %v870
        %v1019 = vpack.c.b16 %v875, %v871
        %v1020 = vpack.c.b16 %v876, %v872
        %v1021 = vpack.c.b16 %v877, %v873
        %v1022 = vpack.c.b16 %v882, %v878
        %v1023 = vpack.c.b16 %v883, %v879
        %v1024 = vpack.c.b16 %v884, %v880
        %v1025 = vpack.c.b16 %v885, %v881
        %v1026 = vpack.c.b16 %v890, %v886
        %v1027 = vpack.c.b16 %v891, %v887
        %v1028 = vpack.c.b16 %v892, %v888
        %v1029 = vpack.c.b16 %v893, %v889
        %v1030 = vpack.c.b16 %v898, %v894
        %v1031 = vpack.c.b16 %v899, %v895
        %v1032 = vpack.c.b16 %v900, %v896
        %v1033 = vpack.c.b16 %v901, %v897
        %v1034 = vpack.c.b16 %v906, %v902
        %v1035 = vpack.c.b16 %v907, %v903
        %v1036 = vpack.c.b16 %v908, %v904
        %v1037 = vpack.c.b16 %v909, %v905
        %1166 = vmatprep.subr.bf16.mxu0 %v911
        %1167 = vmatpush1.bf16.msra.mxu0 %v910
        %1168 = vmatprep.subr.bf16.mxu0 %v915
        %1169 = vmatpush1.bf16.msra.mxu0 %v914
        %1170 = vmatprep.subr.bf16.mxu0 %v919
        %1171 = vmatpush1.bf16.msra.mxu0 %v918
        %1172 = vmatprep.subr.bf16.mxu0 %v923
        %1173 = vmatpush1.bf16.msra.mxu0 %v922
        %1174 = vmatprep.subr.bf16.mxu0 %v927
        %1175 = vmatpush1.bf16.msra.mxu0 %v926
        %1176 = vmatprep.subr.bf16.mxu0 %v931
        %1177 = vmatpush1.bf16.msra.mxu0 %v930
        %1178 = vmatprep.subr.bf16.mxu0 %v935
        %1179 = vmatpush1.bf16.msra.mxu0 %v934
        %1180 = vmatprep.subr.bf16.mxu0 %v939
        %1181 = vmatpush1.bf16.msra.mxu0 %v938
        %1182 = vmatprep.subr.bf16.mxu0 %v943
        %1183 = vmatpush1.bf16.msra.mxu0 %v942
        %1184 = vmatprep.subr.bf16.mxu0 %v947
        %1185 = vmatpush1.bf16.msra.mxu0 %v946
        %1186 = vmatprep.subr.bf16.mxu0 %v951
        %1187 = vmatpush1.bf16.msra.mxu0 %v950
        %1188 = vmatprep.subr.bf16.mxu0 %v955
        %1189 = vmatpush1.bf16.msra.mxu0 %v954
        %1190 = vmatprep.subr.bf16.mxu0 %v959
        %1191 = vmatpush1.bf16.msra.mxu0 %v958
        %1192 = vmatprep.subr.bf16.mxu0 %v963
        %1193 = vmatpush1.bf16.msra.mxu0 %v962
        %1194 = vmatprep.subr.bf16.mxu0 %v967
        %1195 = vmatpush1.bf16.msra.mxu0 %v966
        %1196 = vmatprep.subr.bf16.mxu0 %v971
        %1197 = vmatpush1.bf16.msra.mxu0 %v970
        %1198 = vmatprep.mubr.bf16.mxu0 %v519
        %1199 = vmatmul.mubr.bf16.gmra.mrb[0].mxu0 %v518
        %v1200 = vpop.f32.mrb[0].mxu0
        %v1201 = vadd.f32 0.0, %v1200
        %v1202 = vpop.f32.mrb[0].mxu0
        %v1203 = vadd.f32 0.0, %v1202
        %v1204 = vpop.f32.mrb[0].mxu0
        %v1205 = vadd.f32 0.0, %v1204
        %v1206 = vpop.f32.mrb[0].mxu0
        %v1207 = vadd.f32 0.0, %v1206
        %1208 = vdwg.mxu0
        %1209 = vmatprep.subr.bf16.mxu0 %v975
        %1210 = vmatpush1.bf16.msra.mxu0 %v974
        %1211 = vmatprep.subr.bf16.mxu0 %v979
        %1212 = vmatpush1.bf16.msra.mxu0 %v978
        %1213 = vmatprep.subr.bf16.mxu0 %v983
        %1214 = vmatpush1.bf16.msra.mxu0 %v982
        %1215 = vmatprep.subr.bf16.mxu0 %v987
        %1216 = vmatpush1.bf16.msra.mxu0 %v986
        %1217 = vmatprep.subr.bf16.mxu0 %v991
        %1218 = vmatpush1.bf16.msra.mxu0 %v990
        %1219 = vmatprep.subr.bf16.mxu0 %v995
        %1220 = vmatpush1.bf16.msra.mxu0 %v994
        %1221 = vmatprep.subr.bf16.mxu0 %v999
        %1222 = vmatpush1.bf16.msra.mxu0 %v998
        %1223 = vmatprep.subr.bf16.mxu0 %v1003
        %1224 = vmatpush1.bf16.msra.mxu0 %v1002
        %1225 = vmatprep.subr.bf16.mxu0 %v1007
        %1226 = vmatpush1.bf16.msra.mxu0 %v1006
        %1227 = vmatprep.subr.bf16.mxu0 %v1011
        %1228 = vmatpush1.bf16.msra.mxu0 %v1010
        %1229 = vmatprep.subr.bf16.mxu0 %v1015
        %1230 = vmatpush1.bf16.msra.mxu0 %v1014
        %1231 = vmatprep.subr.bf16.mxu0 %v1019
        %1232 = vmatpush1.bf16.msra.mxu0 %v1018
        %1233 = vmatprep.subr.bf16.mxu0 %v1023
        %1234 = vmatpush1.bf16.msra.mxu0 %v1022
        %1235 = vmatprep.subr.bf16.mxu0 %v1027
        %1236 = vmatpush1.bf16.msra.mxu0 %v1026
        %1237 = vmatprep.subr.bf16.mxu0 %v1031
        %1238 = vmatpush1.bf16.msra.mxu0 %v1030
        %1239 = vmatprep.subr.bf16.mxu0 %v1035
        %1240 = vmatpush1.bf16.msra.mxu0 %v1034
        %1241 = vmatprep.mubr.bf16.mxu0 %v521
        %1242 = vmatmul.mubr.bf16.gmra.mrb[0].mxu0 %v520
        %v1243 = vpop.f32.mrb[0].mxu0
        %v1244 = vadd.f32 %v1201, %v1243
        %v1245 = vpop.f32.mrb[0].mxu0
        %v1246 = vadd.f32 %v1203, %v1245
        %v1247 = vpop.f32.mrb[0].mxu0
        %v1248 = vadd.f32 %v1205, %v1247
        %v1249 = vpop.f32.mrb[0].mxu0
        %v1250 = vadd.f32 %v1207, %v1249
        %1251 = vdwg.mxu0
        %1252 = vmatprep.subr.bf16.mxu0 %v913
        %1253 = vmatpush1.bf16.msra.mxu0 %v912
        %1254 = vmatprep.subr.bf16.mxu0 %v917
        %1255 = vmatpush1.bf16.msra.mxu0 %v916
        %1256 = vmatprep.subr.bf16.mxu0 %v921
        %1257 = vmatpush1.bf16.msra.mxu0 %v920
        %1258 = vmatprep.subr.bf16.mxu0 %v925
        %1259 = vmatpush1.bf16.msra.mxu0 %v924
        %1260 = vmatprep.subr.bf16.mxu0 %v929
        %1261 = vmatpush1.bf16.msra.mxu0 %v928
        %1262 = vmatprep.subr.bf16.mxu0 %v933
        %1263 = vmatpush1.bf16.msra.mxu0 %v932
        %1264 = vmatprep.subr.bf16.mxu0 %v937
        %1265 = vmatpush1.bf16.msra.mxu0 %v936
        %1266 = vmatprep.subr.bf16.mxu0 %v941
        %1267 = vmatpush1.bf16.msra.mxu0 %v940
        %1268 = vmatprep.subr.bf16.mxu0 %v945
        %1269 = vmatpush1.bf16.msra.mxu0 %v944
        %1270 = vmatprep.subr.bf16.mxu0 %v949
        %1271 = vmatpush1.bf16.msra.mxu0 %v948
        %1272 = vmatprep.subr.bf16.mxu0 %v953
        %1273 = vmatpush1.bf16.msra.mxu0 %v952
        %1274 = vmatprep.subr.bf16.mxu0 %v957
        %1275 = vmatpush1.bf16.msra.mxu0 %v956
        %1276 = vmatprep.subr.bf16.mxu0 %v961
        %1277 = vmatpush1.bf16.msra.mxu0 %v960
        %1278 = vmatprep.subr.bf16.mxu0 %v965
        %1279 = vmatpush1.bf16.msra.mxu0 %v964
        %1280 = vmatprep.subr.bf16.mxu0 %v969
        %1281 = vmatpush1.bf16.msra.mxu0 %v968
        %1282 = vmatprep.subr.bf16.mxu0 %v973
        %1283 = vmatpush1.bf16.msra.mxu0 %v972
        %1284 = vmatprep.mubr.bf16.mxu0 %v519
        %1285 = vmatmul.mubr.bf16.gmra.mrb[0].mxu0 %v518
        %v1286 = vpop.f32.mrb[0].mxu0
        %v1287 = vadd.f32 0.0, %v1286
        %v1288 = vpop.f32.mrb[0].mxu0
        %v1289 = vadd.f32 0.0, %v1288
        %v1290 = vpop.f32.mrb[0].mxu0
        %v1291 = vadd.f32 0.0, %v1290
        %v1292 = vpop.f32.mrb[0].mxu0
        %v1293 = vadd.f32 0.0, %v1292
        %1294 = vdwg.mxu0
        %1295 = vmatprep.subr.bf16.mxu0 %v977
        %1296 = vmatpush1.bf16.msra.mxu0 %v976
        %1297 = vmatprep.subr.bf16.mxu0 %v981
        %1298 = vmatpush1.bf16.msra.mxu0 %v980
        %1299 = vmatprep.subr.bf16.mxu0 %v985
        %1300 = vmatpush1.bf16.msra.mxu0 %v984
        %1301 = vmatprep.subr.bf16.mxu0 %v989
        %1302 = vmatpush1.bf16.msra.mxu0 %v988
        %1303 = vmatprep.subr.bf16.mxu0 %v993
        %1304 = vmatpush1.bf16.msra.mxu0 %v992
        %1305 = vmatprep.subr.bf16.mxu0 %v997
        %1306 = vmatpush1.bf16.msra.mxu0 %v996
        %1307 = vmatprep.subr.bf16.mxu0 %v1001
        %1308 = vmatpush1.bf16.msra.mxu0 %v1000
        %1309 = vmatprep.subr.bf16.mxu0 %v1005
        %1310 = vmatpush1.bf16.msra.mxu0 %v1004
        %1311 = vmatprep.subr.bf16.mxu0 %v1009
        %1312 = vmatpush1.bf16.msra.mxu0 %v1008
        %1313 = vmatprep.subr.bf16.mxu0 %v1013
        %1314 = vmatpush1.bf16.msra.mxu0 %v1012
        %1315 = vmatprep.subr.bf16.mxu0 %v1017
        %1316 = vmatpush1.bf16.msra.mxu0 %v1016
        %1317 = vmatprep.subr.bf16.mxu0 %v1021
        %1318 = vmatpush1.bf16.msra.mxu0 %v1020
        %1319 = vmatprep.subr.bf16.mxu0 %v1025
        %1320 = vmatpush1.bf16.msra.mxu0 %v1024
        %1321 = vmatprep.subr.bf16.mxu0 %v1029
        %1322 = vmatpush1.bf16.msra.mxu0 %v1028
        %1323 = vmatprep.subr.bf16.mxu0 %v1033
        %1324 = vmatpush1.bf16.msra.mxu0 %v1032
        %1325 = vmatprep.subr.bf16.mxu0 %v1037
        %1326 = vmatpush1.bf16.msra.mxu0 %v1036
        %1327 = vmatprep.mubr.bf16.mxu0 %v521
        %1328 = vmatmul.mubr.bf16.gmra.mrb[0].mxu0 %v520
        %v1329 = vpop.f32.mrb[0].mxu0
        %v1330 = vadd.f32 %v1287, %v1329
        %v1331 = vpop.f32.mrb[0].mxu0
        %v1332 = vadd.f32 %v1289, %v1331
        %v1333 = vpop.f32.mrb[0].mxu0
        %v1334 = vadd.f32 %v1291, %v1333
        %v1335 = vpop.f32.mrb[0].mxu0
        %v1336 = vadd.f32 %v1293, %v1335
        %1337 = vdwg.mxu0
        %v1338 = vadd.f32 %v366, %v1244
        %v1339 = vadd.f32 %v367, %v1246
        %v1340 = vadd.f32 %v368, %v1330
        %v1341 = vadd.f32 %v369, %v1332
        %v1342 = vadd.f32 %v370, %v1248
        %v1343 = vadd.f32 %v371, %v1250
        %v1344 = vadd.f32 %v372, %v1334
        %v1345 = vadd.f32 %v373, %v1336
        %1346 = vst [vmem:[#allocation2] sm:$0xff] %v1338
        %1347 = vst [vmem:[#allocation2 + $0x8] sm:$0xff] %v1339
        %1348 = vst [vmem:[#allocation2 + $0x10] sm:$0xff] %v1340
        %1349 = vst [vmem:[#allocation2 + $0x18] sm:$0xff] %v1341
        %1350 = vst [vmem:[#allocation2 + $0x20] sm:$0xff] %v1342
        %1351 = vst [vmem:[#allocation2 + $0x28] sm:$0xff] %v1343
        %1352 = vst [vmem:[#allocation2 + $0x30] sm:$0xff] %v1344
        %1353 = vst [vmem:[#allocation2 + $0x38] sm:$0xff] %v1345
        %p1354 = scmp.eq.s32.totalorder %s26, 1
        // Predicated region
        $region76: #{forward.4} parent=54 // pred_check
          %p1355 = pneg %p1354
        $region77: #{forward.4} parent=54 // pred_check_branch
          %1357 = sbr.rel (%p1355) target = $region79
        $region78: #{forward.4} parent=54 // pred_region
          %v1358 = vld [vmem:[#allocation2] sm:$0xff]
          %v1359 = vld [vmem:[#allocation2 + $0x8] sm:$0xff]
          %v1360 = vld [vmem:[#allocation2 + $0x10] sm:$0xff]
          %v1361 = vld [vmem:[#allocation2 + $0x18] sm:$0xff]
          %v1362 = vld [vmem:[#allocation2 + $0x20] sm:$0xff]
          %v1363 = vld [vmem:[#allocation2 + $0x28] sm:$0xff]
          %v1364 = vld [vmem:[#allocation2 + $0x30] sm:$0xff]
          %v1365 = vld [vmem:[#allocation2 + $0x38] sm:$0xff]
          %v1366 = vlaneseq
          %v1367 = vshrl.u32 %v1366, 7
          %v1368 = vadd.s32 %v1367, 8
          %vm1369 = vcmp.lt.s32.totalorder %v1367, 16
          %vm1370 = vcmp.lt.s32.totalorder %v1368, 16
          %v1371 = vadd.f32 %v1358, %v1362
          %v1372 = vrot.slane %v1371, 4
          %v1373 = vadd.f32 %v1371, %v1372
          %v1374 = vrot.slane %v1373, 2
          %v1375 = vadd.f32 %v1373, %v1374
          %v1376 = vrot.slane %v1375, 1
          %v1377 = vadd.f32 %v1375, %v1376
          %v1378 = vadd.f32 %v1359, %v1363
          %v1379 = vrot.slane %v1378, 4
          %v1380 = vadd.f32 %v1378, %v1379
          %v1381 = vrot.slane %v1380, 2
          %v1382 = vadd.f32 %v1380, %v1381
          %v1383 = vrot.slane %v1382, 1
          %v1384 = vadd.f32 %v1382, %v1383
          %v1385 = vadd.f32 %v1360, %v1364
          %v1386 = vrot.slane %v1385, 4
          %v1387 = vadd.f32 %v1385, %v1386
          %v1388 = vrot.slane %v1387, 2
          %v1389 = vadd.f32 %v1387, %v1388
          %v1390 = vrot.slane %v1389, 1
          %v1391 = vadd.f32 %v1389, %v1390
          %v1392 = vadd.f32 %v1361, %v1365
          %v1393 = vrot.slane %v1392, 4
          %v1394 = vadd.f32 %v1392, %v1393
          %v1395 = vrot.slane %v1394, 2
          %v1396 = vadd.f32 %v1394, %v1395
          %v1397 = vrot.slane %v1396, 1
          %v1398 = vadd.f32 %v1396, %v1397
          %v1399 = vmul.f32 %v1377, 0.0625
          %v1400 = vmul.f32 %v1384, 0.0625
          %v1401 = vmul.f32 %v1391, 0.0625
          %v1402 = vmul.f32 %v1398, 0.0625
          %v1403 = vsub.f32 %v1358, %v1399
          %v1404 = vsub.f32 %v1359, %v1400
          %v1405 = vsub.f32 %v1360, %v1401
          %v1406 = vsub.f32 %v1361, %v1402
          %v1407 = vsub.f32 %v1362, %v1399
          %v1408 = vsub.f32 %v1363, %v1400
          %v1409 = vsub.f32 %v1364, %v1401
          %v1410 = vsub.f32 %v1365, %v1402
          %v1411 = vsel %vm1369, %v1403, 0.0
          %v1412 = vsel %vm1369, %v1404, 0.0
          %v1413 = vsel %vm1369, %v1405, 0.0
          %v1414 = vsel %vm1369, %v1406, 0.0
          %v1415 = vsel %vm1370, %v1407, 0.0
          %v1416 = vsel %vm1370, %v1408, 0.0
          %v1417 = vsel %vm1370, %v1409, 0.0
          %v1418 = vsel %vm1370, %v1410, 0.0
          %v1419 = vmul.f32 %v1411, %v1411
          %v1420 = vmul.f32 %v1412, %v1412
          %v1421 = vmul.f32 %v1413, %v1413
          %v1422 = vmul.f32 %v1414, %v1414
          %v1423 = vmul.f32 %v1415, %v1415
          %v1424 = vmul.f32 %v1416, %v1416
          %v1425 = vmul.f32 %v1417, %v1417
          %v1426 = vmul.f32 %v1418, %v1418
          %v1427 = vadd.f32 %v1419, %v1423
          %v1428 = vrot.slane %v1427, 4
          %v1429 = vadd.f32 %v1427, %v1428
          %v1430 = vrot.slane %v1429, 2
          %v1431 = vadd.f32 %v1429, %v1430
          %v1432 = vrot.slane %v1431, 1
          %v1433 = vadd.f32 %v1431, %v1432
          %v1434 = vadd.f32 %v1420, %v1424
          %v1435 = vrot.slane %v1434, 4
          %v1436 = vadd.f32 %v1434, %v1435
          %v1437 = vrot.slane %v1436, 2
          %v1438 = vadd.f32 %v1436, %v1437
          %v1439 = vrot.slane %v1438, 1
          %v1440 = vadd.f32 %v1438, %v1439
          %v1441 = vadd.f32 %v1421, %v1425
          %v1442 = vrot.slane %v1441, 4
          %v1443 = vadd.f32 %v1441, %v1442
          %v1444 = vrot.slane %v1443, 2
          %v1445 = vadd.f32 %v1443, %v1444
          %v1446 = vrot.slane %v1445, 1
          %v1447 = vadd.f32 %v1445, %v1446
          %v1448 = vadd.f32 %v1422, %v1426
          %v1449 = vrot.slane %v1448, 4
          %v1450 = vadd.f32 %v1448, %v1449
          %v1451 = vrot.slane %v1450, 2
          %v1452 = vadd.f32 %v1450, %v1451
          %v1453 = vrot.slane %v1452, 1
          %v1454 = vadd.f32 %v1452, %v1453
          %v1455 = vmul.f32 %v1433, 0.0625
          %v1456 = vmul.f32 %v1440, 0.0625
          %v1457 = vmul.f32 %v1447, 0.0625
          %v1458 = vmul.f32 %v1454, 0.0625
          %v1459 = vld [vmem:[%s301] sm:$0xf]
          %v1460 = vadd.f32 %v1455, 0.001
          %v1461 = vadd.f32 %v1456, 0.001
          %v1462 = vadd.f32 %v1457, 0.001
          %v1463 = vadd.f32 %v1458, 0.001
          %v1464 = vrsqrt.pop %v1460
          %v1465 = vrsqrt.pop %v1461
          %v1466 = vrsqrt.pop %v1462
          %v1467 = vrsqrt.pop %v1463
          %v1472 = vcombine.low %v1464, %v1465
          %v1473 = vcombine.low %v1466, %v1467
          %v1475 = vunpack.c.l.s4 1966171168
          %v1476 = vunpack.c.0.s8 %v1475
          %v1477 = vlaneseq
          %v1478 = vshrl.u32 %v1477, 7
          %v1479 = vsub.s32 %v1476, %v1478
          %v1480 = vrot.slane %v1472, %v1479
          %v1482 = vunpack.c.l.s4 1966171168
          %v1483 = vunpack.c.0.s8 %v1482
          %v1484 = vlaneseq
          %v1485 = vshrl.u32 %v1484, 7
          %v1486 = vsub.s32 %v1483, %v1485
          %v1487 = vrot.slane %v1473, %v1486
          %v1488 = vcombine.low %v1480, %v1487
          %v1490 = vunpack.c.l.s4 1966171168
          %v1491 = vunpack.c.0.s8 %v1490
          %v1492 = vlaneseq
          %v1493 = vshrl.u32 %v1492, 7
          %v1494 = vsub.s32 %v1491, %v1493
          %v1495 = vrot.slane %v1488, %v1494
          %v1497 = vmul.f32 %v1459, %v1495
          %v1499 = vlaneseq
          %v1500 = vshrl.u32 %v1499, 7
          %v1501 = vsub.s32 0, %v1500
          %v1502 = vrot.slane %v1497, %v1501
          %v1503 = vlaneseq
          %v1504 = vshrl.u32 %v1503, 7
          %v1505 = vsub.s32 1, %v1504
          %v1506 = vrot.slane %v1497, %v1505
          %v1507 = vlaneseq
          %v1508 = vshrl.u32 %v1507, 7
          %v1509 = vsub.s32 2, %v1508
          %v1510 = vrot.slane %v1497, %v1509
          %v1511 = vlaneseq
          %v1512 = vshrl.u32 %v1511, 7
          %v1513 = vsub.s32 3, %v1512
          %v1514 = vrot.slane %v1497, %v1513
          %v1519 = vmul.f32 %v1411, %v1502
          %v1520 = vmul.f32 %v1412, %v1506
          %v1521 = vmul.f32 %v1413, %v1510
          %v1522 = vmul.f32 %v1414, %v1514
          %v1523 = vmul.f32 %v1415, %v1502
          %v1524 = vmul.f32 %v1416, %v1506
          %v1525 = vmul.f32 %v1417, %v1510
          %v1526 = vmul.f32 %v1418, %v1514
          %v1527 = vld [vmem:[%s310] sm:$0xf]
          %v1529 = vlaneseq
          %v1530 = vshrl.u32 %v1529, 7
          %v1531 = vsub.s32 0, %v1530
          %v1532 = vrot.slane %v1527, %v1531
          %v1533 = vlaneseq
          %v1534 = vshrl.u32 %v1533, 7
          %v1535 = vsub.s32 1, %v1534
          %v1536 = vrot.slane %v1527, %v1535
          %v1537 = vlaneseq
          %v1538 = vshrl.u32 %v1537, 7
          %v1539 = vsub.s32 2, %v1538
          %v1540 = vrot.slane %v1527, %v1539
          %v1541 = vlaneseq
          %v1542 = vshrl.u32 %v1541, 7
          %v1543 = vsub.s32 3, %v1542
          %v1544 = vrot.slane %v1527, %v1543
          %v1549 = vadd.f32 %v1519, %v1532
          %v1550 = vadd.f32 %v1520, %v1536
          %v1551 = vadd.f32 %v1521, %v1540
          %v1552 = vadd.f32 %v1522, %v1544
          %v1553 = vadd.f32 %v1523, %v1532
          %v1554 = vadd.f32 %v1524, %v1536
          %v1555 = vadd.f32 %v1525, %v1540
          %v1556 = vadd.f32 %v1526, %v1544
          %v1557 = vmax.f32 %v1549, 0.0
          %v1558 = vmax.f32 %v1550, 0.0
          %v1559 = vmax.f32 %v1551, 0.0
          %v1560 = vmax.f32 %v1552, 0.0
          %v1561 = vmax.f32 %v1553, 0.0
          %v1562 = vmax.f32 %v1554, 0.0
          %v1563 = vmax.f32 %v1555, 0.0
          %v1564 = vmax.f32 %v1556, 0.0
          %v1565 = vsel %vm1369, %v1557, 0.0
          %v1566 = vsel %vm1369, %v1558, 0.0
          %v1567 = vsel %vm1369, %v1559, 0.0
          %v1568 = vsel %vm1369, %v1560, 0.0
          %v1569 = vsel %vm1370, %v1561, 0.0
          %v1570 = vsel %vm1370, %v1562, 0.0
          %v1571 = vsel %vm1370, %v1563, 0.0
          %v1572 = vsel %vm1370, %v1564, 0.0
          %v1573 = vpack.c.bf16 %v1569, %v1565
          %v1574 = vpack.c.bf16 %v1570, %v1566
          %v1575 = vpack.c.bf16 %v1571, %v1567
          %v1576 = vpack.c.bf16 %v1572, %v1568
          %v1581 = vunpack.c.l.b16 %v1573
          %v1582 = vunpack.c.l.b16 %v1574
          %v1583 = vunpack.c.l.b16 %v1575
          %v1584 = vunpack.c.l.b16 %v1576
          %v1585 = vunpack.c.h.b16 %v1573
          %v1586 = vunpack.c.h.b16 %v1574
          %v1587 = vunpack.c.h.b16 %v1575
          %v1588 = vunpack.c.h.b16 %v1576
          %v1589 = vpack.c.b16 %v1582, %v1581
          %v1590 = vpack.c.b16 %v1584, %v1583
          %v1591 = vpack.c.b16 %v1586, %v1585
          %v1592 = vpack.c.b16 %v1588, %v1587
          %1597 = vst [vmem:[%s347] sm:$0xff] %v1589
          %1598 = vst [vmem:[%s347 + $0x8] sm:$0xff] %v1590
          %1599 = vst [vmem:[%s347 + $0x10] sm:$0xff] %v1591
          %1600 = vst [vmem:[%s347 + $0x18] sm:$0xff] %v1592
        $region79: #{forward.4} parent=54 // pred_fallthru
          _
        %s1601 = sand.u32 %s147, 1
        %s1602 = sand.u32 %s147, 1
        %s1603 = smul.addr %s1602, 32
        %s1604 = scalar_lea.vmem [#allocation9], %s1603
        // Predicated region
        $region80: #{forward.4} parent=54 // pred_check
          %p1605 = pneg %p157
        $region81: #{forward.4} parent=54 // pred_check_branch
          %1607 = sbr.rel (%p1605) target = $region83
        $region82: #{forward.4} parent=54 // pred_region
          %s1608 = smul.u32 4, %s25
          %s1609 = smul.addr %s1608, 4
          %s1610 = scalar_lea.vmem %s4, %s1609
          // Predicated region
          $region84: #{forward.4} parent=82 // pred_check
            _
          $region85: #{forward.4} parent=82 // pred_check_branch
            %1612 = sbr.rel (0) target = $region87
          $region86: #{forward.4} parent=82 // pred_region
            // Predicated region
            $region88: #{forward.4} parent=86 // pred_check
              _
            $region89: #{forward.4} parent=86 // pred_check_branch
              %1614 = sbr.rel (0) target = $region91
            $region90: #{forward.4} parent=86 // pred_region
              loop: start=0, step=1, limit=1
              $region92: #{forward.4} parent=90 // loop_pre_header
                _
              $region93: #{forward.4} parent=90 // loop_header
                %s1616 = sphi 0, %s1620
                %p1617 = scmp.ge.s32.totalorder %s1616, 1
                %s1621 = sphi %s1604, %s1604
                %s1622 = sphi %s1610, %s1610
              $region94: #{forward.4} parent=90 // loop_header_branch
                %1619 = sbr.rel (%p1617) target = $region98
              $region95: #{forward.4} parent=90 // loop_body
                %v1623 = vld [vmem:[%s1621] sm:$0xff]
                %1624 = vst [vmem:[%s1622] sm:$0xff] %v1623
                %v1625 = vld [vmem:[%s1621 + $0x8] sm:$0xff]
                %1626 = vst [vmem:[%s1622 + $0x8] sm:$0xff] %v1625
                %v1627 = vld [vmem:[%s1621 + $0x10] sm:$0xff]
                %1628 = vst [vmem:[%s1622 + $0x20] sm:$0xff] %v1627
                %v1629 = vld [vmem:[%s1621 + $0x18] sm:$0xff]
                %1630 = vst [vmem:[%s1622 + $0x28] sm:$0xff] %v1629
              $region96: #{forward.4} parent=90 // loop_footer
                %s1620 = sadd.s32 1, %s1616
              $region97: #{forward.4} parent=90 // loop_footer_branch
                %1615 = sbr.rel target = $region93
              $region98: #{forward.4} parent=90 // loop_exit
                _
            $region91: #{forward.4} parent=86 // pred_fallthru
              _
            // Predicated region
            $region99: #{forward.4} parent=86 // pred_check
              _
            $region100: #{forward.4} parent=86 // pred_check_branch
              %1632 = sbr.rel target = $region102
            $region101: #{forward.4} parent=86 // pred_region
              _
            $region102: #{forward.4} parent=86 // pred_fallthru
              _
          $region87: #{forward.4} parent=82 // pred_fallthru
            _
          %1633 = vnop
        $region83: #{forward.4} parent=54 // pred_fallthru
          _
      $region55: #{forward.4} parent=5 // pred_fallthru
        _
      %p1634 = scmp.le.s32.totalorder 2, %s16
      // Predicated region
      $region103: #{forward.4} parent=5 // pred_check
        %p1635 = pneg %p1634
      $region104: #{forward.4} parent=5 // pred_check_branch
        %1637 = sbr.rel (%p1635) target = $region106
      $region105: #{forward.4} parent=5 // pred_region
        %s1638 = ssub.s32 %s16, 2
        // Predicated region
        $region107: #{forward.4} parent=105 // pred_check
          %p1639 = pneg %p163
        $region108: #{forward.4} parent=105 // pred_check_branch
          %1641 = sbr.rel (%p1639) target = $region110
        $region109: #{forward.4} parent=105 // pred_region
          %s1642 = sand.u32 %s148, 1
          %s1643 = sand.u32 %s148, 1
          %s1644 = smul.addr %s1643, 32
          %s1645 = scalar_lea.vmem [#allocation9], %s1644
        $region110: #{forward.4} parent=105 // pred_fallthru
          _
      $region106: #{forward.4} parent=5 // pred_fallthru
        _
    $region6: #{forward.4} parent=1 // loop_footer
      %s20 = sadd.s32 1, %s16
    $region7: #{forward.4} parent=1 // loop_footer_branch
      %15 = sbr.rel target = $region3
    $region8: #{forward.4} parent=1 // loop_exit
      _
    %1646 = vsyncpa [#allocation5], 1
    %s1647 = scalar_lea.sflag [#allocation5], 1
    %1648 = vsyncpa %s1647, 1
    %1649 = vsyncpa [#allocation7], 1
    %s1650 = scalar_lea.sflag [#allocation7], 1
    %1651 = vsyncpa %s1650, 1

// kernel: forward.5
$region0: #{forward.5}
  #allocation0 [shape = 'u32[]', space=smem, size = 0x4, offset = 0x4, fixed_abs, tag = 'smem constant byte address 0x4 - core index']
  #allocation1 [shape = 'u32[144,128]{1,0:T(1,128)}', space=vmem, size = 0x12000, scoped, tag = 'internal scratch']
  %s0 = inlined_call_operand.vmem [shape: bf16[16,1024], index: 0, kind: input, shape index: {}]
  %s1 = inlined_call_operand.vmem [shape: bf16[1024,128], index: 1, kind: input, shape index: {}]
  %s2 = inlined_call_operand.vmem [shape: f32[1,128], index: 2, kind: input, shape index: {}]
  %s3 = inlined_call_operand.vmem [shape: f32[16,128], index: 3, kind: output, shape index: {0}]
  %s4 = inlined_call_operand.vmem [shape: f32[16,128], index: 4, kind: output, shape index: {1}]
  %5 = xla_tuple %s3, %s4
  %s6 = sld [smem:[#allocation0]]
  $region30: #{forward.5} parent=0
    _
  %s8 = ssub.s32 1, %s6
  %s9 = scalar_select 0, %s8, %s6
  // Predicated region
  $region2: #{forward.5} parent=0 // pred_check
    _
  $region3: #{forward.5} parent=0 // pred_check_branch
    %11 = sbr.rel (0) target = $region5
  $region4: #{forward.5} parent=0 // pred_region
    _
  $region5: #{forward.5} parent=0 // pred_fallthru
    _
  // Predicated region
  $region6: #{forward.5} parent=0 // pred_check
    _
  $region7: #{forward.5} parent=0 // pred_check_branch
    %13 = sbr.rel (0) target = $region9
  $region8: #{forward.5} parent=0 // pred_region
    _
  $region9: #{forward.5} parent=0 // pred_fallthru
    _
  // Predicated region
  $region10: #{forward.5} parent=0 // pred_check
    _
  $region11: #{forward.5} parent=0 // pred_check_branch
    %15 = sbr.rel (0) target = $region13
  $region12: #{forward.5} parent=0 // pred_region
    _
  $region13: #{forward.5} parent=0 // pred_fallthru
    _
  %v17 = vld [vmem:[%s0] sm:$0xff]
  %v18 = vld [vmem:[%s0 + $0x8] sm:$0xff]
  %v19 = vld [vmem:[%s0 + $0x10] sm:$0xff]
  %v20 = vld [vmem:[%s0 + $0x18] sm:$0xff]
  %v21 = vld [vmem:[%s0 + $0x20] sm:$0xff]
  %v22 = vld [vmem:[%s0 + $0x28] sm:$0xff]
  %v23 = vld [vmem:[%s0 + $0x30] sm:$0xff]
  %v24 = vld [vmem:[%s0 + $0x38] sm:$0xff]
  %v25 = vld [vmem:[%s1] sm:$0xf]
  %v26 = vld [vmem:[%s1 + $0x4] sm:$0xf]
  %v27 = vld [vmem:[%s1 + $0x8] sm:$0xf]
  %v28 = vld [vmem:[%s1 + $0xc] sm:$0xf]
  %v29 = vld [vmem:[%s1 + $0x10] sm:$0xf]
  %v30 = vld [vmem:[%s1 + $0x14] sm:$0xf]
  %v31 = vld [vmem:[%s1 + $0x18] sm:$0xf]
  %v32 = vld [vmem:[%s1 + $0x1c] sm:$0xf]
  %v33 = vld [vmem:[%s1 + $0x20] sm:$0xf]
  %v34 = vld [vmem:[%s1 + $0x24] sm:$0xf]
  %v35 = vld [vmem:[%s1 + $0x28] sm:$0xf]
  %v36 = vld [vmem:[%s1 + $0x2c] sm:$0xf]
  %v37 = vld [vmem:[%s1 + $0x30] sm:$0xf]
  %v38 = vld [vmem:[%s1 + $0x34] sm:$0xf]
  %v39 = vld [vmem:[%s1 + $0x38] sm:$0xf]
  %v40 = vld [vmem:[%s1 + $0x3c] sm:$0xf]
  %v41 = vld [vmem:[%s1 + $0x40] sm:$0xf]
  %v42 = vld [vmem:[%s1 + $0x44] sm:$0xf]
  %v43 = vld [vmem:[%s1 + $0x48] sm:$0xf]
  %v44 = vld [vmem:[%s1 + $0x4c] sm:$0xf]
  %v45 = vld [vmem:[%s1 + $0x50] sm:$0xf]
  %v46 = vld [vmem:[%s1 + $0x54] sm:$0xf]
  %v47 = vld [vmem:[%s1 + $0x58] sm:$0xf]
  %v48 = vld [vmem:[%s1 + $0x5c] sm:$0xf]
  %v49 = vld [vmem:[%s1 + $0x60] sm:$0xf]
  %v50 = vld [vmem:[%s1 + $0x64] sm:$0xf]
  %v51 = vld [vmem:[%s1 + $0x68] sm:$0xf]
  %v52 = vld [vmem:[%s1 + $0x6c] sm:$0xf]
  %v53 = vld [vmem:[%s1 + $0x70] sm:$0xf]
  %v54 = vld [vmem:[%s1 + $0x74] sm:$0xf]
  %v55 = vld [vmem:[%s1 + $0x78] sm:$0xf]
  %v56 = vld [vmem:[%s1 + $0x7c] sm:$0xf]
  %v57 = vld [vmem:[%s1 + $0x80] sm:$0xf]
  %v58 = vld [vmem:[%s1 + $0x84] sm:$0xf]
  %v59 = vld [vmem:[%s1 + $0x88] sm:$0xf]
  %v60 = vld [vmem:[%s1 + $0x8c] sm:$0xf]
  %v61 = vld [vmem:[%s1 + $0x90] sm:$0xf]
  %v62 = vld [vmem:[%s1 + $0x94] sm:$0xf]
  %v63 = vld [vmem:[%s1 + $0x98] sm:$0xf]
  %v64 = vld [vmem:[%s1 + $0x9c] sm:$0xf]
  %v65 = vld [vmem:[%s1 + $0xa0] sm:$0xf]
  %v66 = vld [vmem:[%s1 + $0xa4] sm:$0xf]
  %v67 = vld [vmem:[%s1 + $0xa8] sm:$0xf]
  %v68 = vld [vmem:[%s1 + $0xac] sm:$0xf]
  %v69 = vld [vmem:[%s1 + $0xb0] sm:$0xf]
  %v70 = vld [vmem:[%s1 + $0xb4] sm:$0xf]
  %v71 = vld [vmem:[%s1 + $0xb8] sm:$0xf]
  %v72 = vld [vmem:[%s1 + $0xbc] sm:$0xf]
  %v73 = vld [vmem:[%s1 + $0xc0] sm:$0xf]
  %v74 = vld [vmem:[%s1 + $0xc4] sm:$0xf]
  %v75 = vld [vmem:[%s1 + $0xc8] sm:$0xf]
  %v76 = vld [vmem:[%s1 + $0xcc] sm:$0xf]
  %v77 = vld [vmem:[%s1 + $0xd0] sm:$0xf]
  %v78 = vld [vmem:[%s1 + $0xd4] sm:$0xf]
  %v79 = vld [vmem:[%s1 + $0xd8] sm:$0xf]
  %v80 = vld [vmem:[%s1 + $0xdc] sm:$0xf]
  %v81 = vld [vmem:[%s1 + $0xe0] sm:$0xf]
  %v82 = vld [vmem:[%s1 + $0xe4] sm:$0xf]
  %v83 = vld [vmem:[%s1 + $0xe8] sm:$0xf]
  %v84 = vld [vmem:[%s1 + $0xec] sm:$0xf]
  %v85 = vld [vmem:[%s1 + $0xf0] sm:$0xf]
  %v86 = vld [vmem:[%s1 + $0xf4] sm:$0xf]
  %v87 = vld [vmem:[%s1 + $0xf8] sm:$0xf]
  %v88 = vld [vmem:[%s1 + $0xfc] sm:$0xf]
  %v89 = vld [vmem:[%s1 + $0x100] sm:$0xf]
  %v90 = vld [vmem:[%s1 + $0x104] sm:$0xf]
  %v91 = vld [vmem:[%s1 + $0x108] sm:$0xf]
  %v92 = vld [vmem:[%s1 + $0x10c] sm:$0xf]
  %v93 = vld [vmem:[%s1 + $0x110] sm:$0xf]
  %v94 = vld [vmem:[%s1 + $0x114] sm:$0xf]
  %v95 = vld [vmem:[%s1 + $0x118] sm:$0xf]
  %v96 = vld [vmem:[%s1 + $0x11c] sm:$0xf]
  %v97 = vld [vmem:[%s1 + $0x120] sm:$0xf]
  %v98 = vld [vmem:[%s1 + $0x124] sm:$0xf]
  %v99 = vld [vmem:[%s1 + $0x128] sm:$0xf]
  %v100 = vld [vmem:[%s1 + $0x12c] sm:$0xf]
  %v101 = vld [vmem:[%s1 + $0x130] sm:$0xf]
  %v102 = vld [vmem:[%s1 + $0x134] sm:$0xf]
  %v103 = vld [vmem:[%s1 + $0x138] sm:$0xf]
  %v104 = vld [vmem:[%s1 + $0x13c] sm:$0xf]
  %v105 = vld [vmem:[%s1 + $0x140] sm:$0xf]
  %v106 = vld [vmem:[%s1 + $0x144] sm:$0xf]
  %v107 = vld [vmem:[%s1 + $0x148] sm:$0xf]
  %v108 = vld [vmem:[%s1 + $0x14c] sm:$0xf]
  %v109 = vld [vmem:[%s1 + $0x150] sm:$0xf]
  %v110 = vld [vmem:[%s1 + $0x154] sm:$0xf]
  %v111 = vld [vmem:[%s1 + $0x158] sm:$0xf]
  %v112 = vld [vmem:[%s1 + $0x15c] sm:$0xf]
  %v113 = vld [vmem:[%s1 + $0x160] sm:$0xf]
  %v114 = vld [vmem:[%s1 + $0x164] sm:$0xf]
  %v115 = vld [vmem:[%s1 + $0x168] sm:$0xf]
  %v116 = vld [vmem:[%s1 + $0x16c] sm:$0xf]
  %v117 = vld [vmem:[%s1 + $0x170] sm:$0xf]
  %v118 = vld [vmem:[%s1 + $0x174] sm:$0xf]
  %v119 = vld [vmem:[%s1 + $0x178] sm:$0xf]
  %v120 = vld [vmem:[%s1 + $0x17c] sm:$0xf]
  %v121 = vld [vmem:[%s1 + $0x180] sm:$0xf]
  %v122 = vld [vmem:[%s1 + $0x184] sm:$0xf]
  %v123 = vld [vmem:[%s1 + $0x188] sm:$0xf]
  %v124 = vld [vmem:[%s1 + $0x18c] sm:$0xf]
  %v125 = vld [vmem:[%s1 + $0x190] sm:$0xf]
  %v126 = vld [vmem:[%s1 + $0x194] sm:$0xf]
  %v127 = vld [vmem:[%s1 + $0x198] sm:$0xf]
  %v128 = vld [vmem:[%s1 + $0x19c] sm:$0xf]
  %v129 = vld [vmem:[%s1 + $0x1a0] sm:$0xf]
  %v130 = vld [vmem:[%s1 + $0x1a4] sm:$0xf]
  %v131 = vld [vmem:[%s1 + $0x1a8] sm:$0xf]
  %v132 = vld [vmem:[%s1 + $0x1ac] sm:$0xf]
  %v133 = vld [vmem:[%s1 + $0x1b0] sm:$0xf]
  %v134 = vld [vmem:[%s1 + $0x1b4] sm:$0xf]
  %v135 = vld [vmem:[%s1 + $0x1b8] sm:$0xf]
  %v136 = vld [vmem:[%s1 + $0x1bc] sm:$0xf]
  %v137 = vld [vmem:[%s1 + $0x1c0] sm:$0xf]
  %v138 = vld [vmem:[%s1 + $0x1c4] sm:$0xf]
  %v139 = vld [vmem:[%s1 + $0x1c8] sm:$0xf]
  %v140 = vld [vmem:[%s1 + $0x1cc] sm:$0xf]
  %v141 = vld [vmem:[%s1 + $0x1d0] sm:$0xf]
  %v142 = vld [vmem:[%s1 + $0x1d4] sm:$0xf]
  %v143 = vld [vmem:[%s1 + $0x1d8] sm:$0xf]
  %v144 = vld [vmem:[%s1 + $0x1dc] sm:$0xf]
  %v145 = vld [vmem:[%s1 + $0x1e0] sm:$0xf]
  %v146 = vld [vmem:[%s1 + $0x1e4] sm:$0xf]
  %v147 = vld [vmem:[%s1 + $0x1e8] sm:$0xf]
  %v148 = vld [vmem:[%s1 + $0x1ec] sm:$0xf]
  %v149 = vld [vmem:[%s1 + $0x1f0] sm:$0xf]
  %v150 = vld [vmem:[%s1 + $0x1f4] sm:$0xf]
  %v151 = vld [vmem:[%s1 + $0x1f8] sm:$0xf]
  %v152 = vld [vmem:[%s1 + $0x1fc] sm:$0xf]
  %v153 = vld [vmem:[%s2] sm:$0x1]
  %v155 = vlaneseq
  %v156 = vshrl.u32 %v155, 7
  %v157 = vsub.s32 0, %v156
  %v158 = vrot.slane %v153, %v157
  %v168 = vunpack.c.l.b16 %v17
  %v169 = vunpack.c.h.b16 %v17
  %v170 = vunpack.c.l.b16 %v18
  %v171 = vunpack.c.h.b16 %v18
  %v172 = vunpack.c.l.b16 %v19
  %v173 = vunpack.c.h.b16 %v19
  %v174 = vunpack.c.l.b16 %v20
  %v175 = vunpack.c.h.b16 %v20
  %v176 = vunpack.c.l.b16 %v21
  %v177 = vunpack.c.h.b16 %v21
  %v178 = vunpack.c.l.b16 %v22
  %v179 = vunpack.c.h.b16 %v22
  %v180 = vunpack.c.l.b16 %v23
  %v181 = vunpack.c.h.b16 %v23
  %v182 = vunpack.c.l.b16 %v24
  %v183 = vunpack.c.h.b16 %v24
  %v184 = vpack.c.b16 %v176, %v168
  %v185 = vpack.c.b16 %v177, %v169
  %v186 = vpack.c.b16 %v178, %v170
  %v187 = vpack.c.b16 %v179, %v171
  %v188 = vpack.c.b16 %v180, %v172
  %v189 = vpack.c.b16 %v181, %v173
  %v190 = vpack.c.b16 %v182, %v174
  %v191 = vpack.c.b16 %v183, %v175
  %v328 = vunpack.c.l.b16 %v25
  %v329 = vunpack.c.l.b16 %v26
  %v330 = vunpack.c.l.b16 %v27
  %v331 = vunpack.c.l.b16 %v28
  %v332 = vunpack.c.l.b16 %v29
  %v333 = vunpack.c.l.b16 %v30
  %v334 = vunpack.c.l.b16 %v31
  %v335 = vunpack.c.l.b16 %v32
  %v336 = vunpack.c.l.b16 %v33
  %v337 = vunpack.c.l.b16 %v34
  %v338 = vunpack.c.l.b16 %v35
  %v339 = vunpack.c.l.b16 %v36
  %v340 = vunpack.c.l.b16 %v37
  %v341 = vunpack.c.l.b16 %v38
  %v342 = vunpack.c.l.b16 %v39
  %v343 = vunpack.c.l.b16 %v40
  %v344 = vunpack.c.l.b16 %v41
  %v345 = vunpack.c.l.b16 %v42
  %v346 = vunpack.c.l.b16 %v43
  %v347 = vunpack.c.l.b16 %v44
  %v348 = vunpack.c.l.b16 %v45
  %v349 = vunpack.c.l.b16 %v46
  %v350 = vunpack.c.l.b16 %v47
  %v351 = vunpack.c.l.b16 %v48
  %v352 = vunpack.c.l.b16 %v49
  %v353 = vunpack.c.l.b16 %v50
  %v354 = vunpack.c.l.b16 %v51
  %v355 = vunpack.c.l.b16 %v52
  %v356 = vunpack.c.l.b16 %v53
  %v357 = vunpack.c.l.b16 %v54
  %v358 = vunpack.c.l.b16 %v55
  %v359 = vunpack.c.l.b16 %v56
  %v360 = vunpack.c.l.b16 %v57
  %v361 = vunpack.c.l.b16 %v58
  %v362 = vunpack.c.l.b16 %v59
  %v363 = vunpack.c.l.b16 %v60
  %v364 = vunpack.c.l.b16 %v61
  %v365 = vunpack.c.l.b16 %v62
  %v366 = vunpack.c.l.b16 %v63
  %v367 = vunpack.c.l.b16 %v64
  %v368 = vunpack.c.l.b16 %v65
  %v369 = vunpack.c.l.b16 %v66
  %v370 = vunpack.c.l.b16 %v67
  %v371 = vunpack.c.l.b16 %v68
  %v372 = vunpack.c.l.b16 %v69
  %v373 = vunpack.c.l.b16 %v70
  %v374 = vunpack.c.l.b16 %v71
  %v375 = vunpack.c.l.b16 %v72
  %v376 = vunpack.c.l.b16 %v73
  %v377 = vunpack.c.l.b16 %v74
  %v378 = vunpack.c.l.b16 %v75
  %v379 = vunpack.c.l.b16 %v76
  %v380 = vunpack.c.l.b16 %v77
  %v381 = vunpack.c.l.b16 %v78
  %v382 = vunpack.c.l.b16 %v79
  %v383 = vunpack.c.l.b16 %v80
  %v384 = vunpack.c.l.b16 %v81
  %v385 = vunpack.c.l.b16 %v82
  %v386 = vunpack.c.l.b16 %v83
  %v387 = vunpack.c.l.b16 %v84
  %v388 = vunpack.c.l.b16 %v85
  %v389 = vunpack.c.l.b16 %v86
  %v390 = vunpack.c.l.b16 %v87
  %v391 = vunpack.c.l.b16 %v88
  %v392 = vunpack.c.l.b16 %v89
  %v393 = vunpack.c.l.b16 %v90
  %v394 = vunpack.c.l.b16 %v91
  %v395 = vunpack.c.l.b16 %v92
  %v396 = vunpack.c.l.b16 %v93
  %v397 = vunpack.c.l.b16 %v94
  %v398 = vunpack.c.l.b16 %v95
  %v399 = vunpack.c.l.b16 %v96
  %v400 = vunpack.c.l.b16 %v97
  %v401 = vunpack.c.l.b16 %v98
  %v402 = vunpack.c.l.b16 %v99
  %v403 = vunpack.c.l.b16 %v100
  %v404 = vunpack.c.l.b16 %v101
  %v405 = vunpack.c.l.b16 %v102
  %v406 = vunpack.c.l.b16 %v103
  %v407 = vunpack.c.l.b16 %v104
  %v408 = vunpack.c.l.b16 %v105
  %v409 = vunpack.c.l.b16 %v106
  %v410 = vunpack.c.l.b16 %v107
  %v411 = vunpack.c.l.b16 %v108
  %v412 = vunpack.c.l.b16 %v109
  %v413 = vunpack.c.l.b16 %v110
  %v414 = vunpack.c.l.b16 %v111
  %v415 = vunpack.c.l.b16 %v112
  %v416 = vunpack.c.l.b16 %v113
  %v417 = vunpack.c.l.b16 %v114
  %v418 = vunpack.c.l.b16 %v115
  %v419 = vunpack.c.l.b16 %v116
  %v420 = vunpack.c.l.b16 %v117
  %v421 = vunpack.c.l.b16 %v118
  %v422 = vunpack.c.l.b16 %v119
  %v423 = vunpack.c.l.b16 %v120
  %v424 = vunpack.c.l.b16 %v121
  %v425 = vunpack.c.l.b16 %v122
  %v426 = vunpack.c.l.b16 %v123
  %v427 = vunpack.c.l.b16 %v124
  %v428 = vunpack.c.l.b16 %v125
  %v429 = vunpack.c.l.b16 %v126
  %v430 = vunpack.c.l.b16 %v127
  %v431 = vunpack.c.l.b16 %v128
  %v432 = vunpack.c.l.b16 %v129
  %v433 = vunpack.c.l.b16 %v130
  %v434 = vunpack.c.l.b16 %v131
  %v435 = vunpack.c.l.b16 %v132
  %v436 = vunpack.c.l.b16 %v133
  %v437 = vunpack.c.l.b16 %v134
  %v438 = vunpack.c.l.b16 %v135
  %v439 = vunpack.c.l.b16 %v136
  %v440 = vunpack.c.l.b16 %v137
  %v441 = vunpack.c.l.b16 %v138
  %v442 = vunpack.c.l.b16 %v139
  %v443 = vunpack.c.l.b16 %v140
  %v444 = vunpack.c.l.b16 %v141
  %v445 = vunpack.c.l.b16 %v142
  %v446 = vunpack.c.l.b16 %v143
  %v447 = vunpack.c.l.b16 %v144
  %v448 = vunpack.c.l.b16 %v145
  %v449 = vunpack.c.l.b16 %v146
  %v450 = vunpack.c.l.b16 %v147
  %v451 = vunpack.c.l.b16 %v148
  %v452 = vunpack.c.l.b16 %v149
  %v453 = vunpack.c.l.b16 %v150
  %v454 = vunpack.c.l.b16 %v151
  %v455 = vunpack.c.l.b16 %v152
  %v456 = vpack.c.b16 %v329, %v328
  %v457 = vpack.c.b16 %v331, %v330
  %v458 = vpack.c.b16 %v333, %v332
  %v459 = vpack.c.b16 %v335, %v334
  %v460 = vpack.c.b16 %v337, %v336
  %v461 = vpack.c.b16 %v339, %v338
  %v462 = vpack.c.b16 %v341, %v340
  %v463 = vpack.c.b16 %v343, %v342
  %v464 = vpack.c.b16 %v345, %v344
  %v465 = vpack.c.b16 %v347, %v346
  %v466 = vpack.c.b16 %v349, %v348
  %v467 = vpack.c.b16 %v351, %v350
  %v468 = vpack.c.b16 %v353, %v352
  %v469 = vpack.c.b16 %v355, %v354
  %v470 = vpack.c.b16 %v357, %v356
  %v471 = vpack.c.b16 %v359, %v358
  %v472 = vpack.c.b16 %v361, %v360
  %v473 = vpack.c.b16 %v363, %v362
  %v474 = vpack.c.b16 %v365, %v364
  %v475 = vpack.c.b16 %v367, %v366
  %v476 = vpack.c.b16 %v369, %v368
  %v477 = vpack.c.b16 %v371, %v370
  %v478 = vpack.c.b16 %v373, %v372
  %v479 = vpack.c.b16 %v375, %v374
  %v480 = vpack.c.b16 %v377, %v376
  %v481 = vpack.c.b16 %v379, %v378
  %v482 = vpack.c.b16 %v381, %v380
  %v483 = vpack.c.b16 %v383, %v382
  %v484 = vpack.c.b16 %v385, %v384
  %v485 = vpack.c.b16 %v387, %v386
  %v486 = vpack.c.b16 %v389, %v388
  %v487 = vpack.c.b16 %v391, %v390
  %v488 = vpack.c.b16 %v393, %v392
  %v489 = vpack.c.b16 %v395, %v394
  %v490 = vpack.c.b16 %v397, %v396
  %v491 = vpack.c.b16 %v399, %v398
  %v492 = vpack.c.b16 %v401, %v400
  %v493 = vpack.c.b16 %v403, %v402
  %v494 = vpack.c.b16 %v405, %v404
  %v495 = vpack.c.b16 %v407, %v406
  %v496 = vpack.c.b16 %v409, %v408
  %v497 = vpack.c.b16 %v411, %v410
  %v498 = vpack.c.b16 %v413, %v412
  %v499 = vpack.c.b16 %v415, %v414
  %v500 = vpack.c.b16 %v417, %v416
  %v501 = vpack.c.b16 %v419, %v418
  %v502 = vpack.c.b16 %v421, %v420
  %v503 = vpack.c.b16 %v423, %v422
  %v504 = vpack.c.b16 %v425, %v424
  %v505 = vpack.c.b16 %v427, %v426
  %v506 = vpack.c.b16 %v429, %v428
  %v507 = vpack.c.b16 %v431, %v430
  %v508 = vpack.c.b16 %v433, %v432
  %v509 = vpack.c.b16 %v435, %v434
  %v510 = vpack.c.b16 %v437, %v436
  %v511 = vpack.c.b16 %v439, %v438
  %v512 = vpack.c.b16 %v441, %v440
  %v513 = vpack.c.b16 %v443, %v442
  %v514 = vpack.c.b16 %v445, %v444
  %v515 = vpack.c.b16 %v447, %v446
  %v516 = vpack.c.b16 %v449, %v448
  %v517 = vpack.c.b16 %v451, %v450
  %v518 = vpack.c.b16 %v453, %v452
  %v519 = vpack.c.b16 %v455, %v454
  %584 = vmatprep.subr.bf16.mxu0 0
  %585 = vmatpush1.bf16.msra.mxu0 %v456
  %586 = vmatprep.subr.bf16.mxu0 0
  %587 = vmatpush1.bf16.msra.mxu0 %v457
  %588 = vmatprep.subr.bf16.mxu0 0
  %589 = vmatpush1.bf16.msra.mxu0 %v458
  %590 = vmatprep.subr.bf16.mxu0 0
  %591 = vmatpush1.bf16.msra.mxu0 %v459
  %592 = vmatprep.subr.bf16.mxu0 0
  %593 = vmatpush1.bf16.msra.mxu0 %v460
  %594 = vmatprep.subr.bf16.mxu0 0
  %595 = vmatpush1.bf16.msra.mxu0 %v461
  %596 = vmatprep.subr.bf16.mxu0 0
  %597 = vmatpush1.bf16.msra.mxu0 %v462
  %598 = vmatprep.subr.bf16.mxu0 0
  %599 = vmatpush1.bf16.msra.mxu0 %v463
  %600 = vmatprep.subr.bf16.mxu0 0
  %601 = vmatpush1.bf16.msra.mxu0 %v464
  %602 = vmatprep.subr.bf16.mxu0 0
  %603 = vmatpush1.bf16.msra.mxu0 %v465
  %604 = vmatprep.subr.bf16.mxu0 0
  %605 = vmatpush1.bf16.msra.mxu0 %v466
  %606 = vmatprep.subr.bf16.mxu0 0
  %607 = vmatpush1.bf16.msra.mxu0 %v467
  %608 = vmatprep.subr.bf16.mxu0 0
  %609 = vmatpush1.bf16.msra.mxu0 %v468
  %610 = vmatprep.subr.bf16.mxu0 0
  %611 = vmatpush1.bf16.msra.mxu0 %v469
  %612 = vmatprep.subr.bf16.mxu0 0
  %613 = vmatpush1.bf16.msra.mxu0 %v470
  %614 = vmatprep.subr.bf16.mxu0 0
  %615 = vmatpush1.bf16.msra.mxu0 %v471
  %616 = vmatprep.mubr.bf16.mxu0 %v185
  %617 = vmatmul.mubr.bf16.gmra.mrb[0].mxu0 %v184
  %v618 = vpop.f32.mrb[0].mxu0
  %v619 = vadd.f32 %v158, %v618
  %v620 = vpop.f32.mrb[0].mxu0
  %v621 = vpop.f32.mrb[0].mxu0
  %v622 = vadd.f32 %v158, %v621
  %v623 = vpop.f32.mrb[0].mxu0
  %624 = vdwg.mxu0
  %625 = vmatprep.subr.bf16.mxu0 0
  %626 = vmatpush1.bf16.msra.mxu0 %v472
  %627 = vmatprep.subr.bf16.mxu0 0
  %628 = vmatpush1.bf16.msra.mxu0 %v473
  %629 = vmatprep.subr.bf16.mxu0 0
  %630 = vmatpush1.bf16.msra.mxu0 %v474
  %631 = vmatprep.subr.bf16.mxu0 0
  %632 = vmatpush1.bf16.msra.mxu0 %v475
  %633 = vmatprep.subr.bf16.mxu0 0
  %634 = vmatpush1.bf16.msra.mxu0 %v476
  %635 = vmatprep.subr.bf16.mxu0 0
  %636 = vmatpush1.bf16.msra.mxu0 %v477
  %637 = vmatprep.subr.bf16.mxu0 0
  %638 = vmatpush1.bf16.msra.mxu0 %v478
  %639 = vmatprep.subr.bf16.mxu0 0
  %640 = vmatpush1.bf16.msra.mxu0 %v479
  %641 = vmatprep.subr.bf16.mxu0 0
  %642 = vmatpush1.bf16.msra.mxu0 %v480
  %643 = vmatprep.subr.bf16.mxu0 0
  %644 = vmatpush1.bf16.msra.mxu0 %v481
  %645 = vmatprep.subr.bf16.mxu0 0
  %646 = vmatpush1.bf16.msra.mxu0 %v482
  %647 = vmatprep.subr.bf16.mxu0 0
  %648 = vmatpush1.bf16.msra.mxu0 %v483
  %649 = vmatprep.subr.bf16.mxu0 0
  %650 = vmatpush1.bf16.msra.mxu0 %v484
  %651 = vmatprep.subr.bf16.mxu0 0
  %652 = vmatpush1.bf16.msra.mxu0 %v485
  %653 = vmatprep.subr.bf16.mxu0 0
  %654 = vmatpush1.bf16.msra.mxu0 %v486
  %655 = vmatprep.subr.bf16.mxu0 0
  %656 = vmatpush1.bf16.msra.mxu0 %v487
  %657 = vmatprep.mubr.bf16.mxu0 %v187
  %658 = vmatmul.mubr.bf16.gmra.mrb[0].mxu0 %v186
  %v659 = vpop.f32.mrb[0].mxu0
  %v660 = vadd.f32 %v619, %v659
  %v661 = vpop.f32.mrb[0].mxu0
  %v662 = vpop.f32.mrb[0].mxu0
  %v663 = vadd.f32 %v622, %v662
  %v664 = vpop.f32.mrb[0].mxu0
  %665 = vdwg.mxu0
  %666 = vmatprep.subr.bf16.mxu0 0
  %667 = vmatpush1.bf16.msra.mxu0 %v488
  %668 = vmatprep.subr.bf16.mxu0 0
  %669 = vmatpush1.bf16.msra.mxu0 %v489
  %670 = vmatprep.subr.bf16.mxu0 0
  %671 = vmatpush1.bf16.msra.mxu0 %v490
  %672 = vmatprep.subr.bf16.mxu0 0
  %673 = vmatpush1.bf16.msra.mxu0 %v491
  %674 = vmatprep.subr.bf16.mxu0 0
  %675 = vmatpush1.bf16.msra.mxu0 %v492
  %676 = vmatprep.subr.bf16.mxu0 0
  %677 = vmatpush1.bf16.msra.mxu0 %v493
  %678 = vmatprep.subr.bf16.mxu0 0
  %679 = vmatpush1.bf16.msra.mxu0 %v494
  %680 = vmatprep.subr.bf16.mxu0 0
  %681 = vmatpush1.bf16.msra.mxu0 %v495
  %682 = vmatprep.subr.bf16.mxu0 0
  %683 = vmatpush1.bf16.msra.mxu0 %v496
  %684 = vmatprep.subr.bf16.mxu0 0
  %685 = vmatpush1.bf16.msra.mxu0 %v497
  %686 = vmatprep.subr.bf16.mxu0 0
  %687 = vmatpush1.bf16.msra.mxu0 %v498
  %688 = vmatprep.subr.bf16.mxu0 0
  %689 = vmatpush1.bf16.msra.mxu0 %v499
  %690 = vmatprep.subr.bf16.mxu0 0
  %691 = vmatpush1.bf16.msra.mxu0 %v500
  %692 = vmatprep.subr.bf16.mxu0 0
  %693 = vmatpush1.bf16.msra.mxu0 %v501
  %694 = vmatprep.subr.bf16.mxu0 0
  %695 = vmatpush1.bf16.msra.mxu0 %v502
  %696 = vmatprep.subr.bf16.mxu0 0
  %697 = vmatpush1.bf16.msra.mxu0 %v503
  %698 = vmatprep.mubr.bf16.mxu0 %v189
  %699 = vmatmul.mubr.bf16.gmra.mrb[0].mxu0 %v188
  %v700 = vpop.f32.mrb[0].mxu0
  %v701 = vadd.f32 %v660, %v700
  %v702 = vpop.f32.mrb[0].mxu0
  %v703 = vpop.f32.mrb[0].mxu0
  %v704 = vadd.f32 %v663, %v703
  %v705 = vpop.f32.mrb[0].mxu0
  %706 = vdwg.mxu0
  %707 = vmatprep.subr.bf16.mxu0 0
  %708 = vmatpush1.bf16.msra.mxu0 %v504
  %709 = vmatprep.subr.bf16.mxu0 0
  %710 = vmatpush1.bf16.msra.mxu0 %v505
  %711 = vmatprep.subr.bf16.mxu0 0
  %712 = vmatpush1.bf16.msra.mxu0 %v506
  %713 = vmatprep.subr.bf16.mxu0 0
  %714 = vmatpush1.bf16.msra.mxu0 %v507
  %715 = vmatprep.subr.bf16.mxu0 0
  %716 = vmatpush1.bf16.msra.mxu0 %v508
  %717 = vmatprep.subr.bf16.mxu0 0
  %718 = vmatpush1.bf16.msra.mxu0 %v509
  %719 = vmatprep.subr.bf16.mxu0 0
  %720 = vmatpush1.bf16.msra.mxu0 %v510
  %721 = vmatprep.subr.bf16.mxu0 0
  %722 = vmatpush1.bf16.msra.mxu0 %v511
  %723 = vmatprep.subr.bf16.mxu0 0
  %724 = vmatpush1.bf16.msra.mxu0 %v512
  %725 = vmatprep.subr.bf16.mxu0 0
  %726 = vmatpush1.bf16.msra.mxu0 %v513
  %727 = vmatprep.subr.bf16.mxu0 0
  %728 = vmatpush1.bf16.msra.mxu0 %v514
  %729 = vmatprep.subr.bf16.mxu0 0
  %730 = vmatpush1.bf16.msra.mxu0 %v515
  %731 = vmatprep.subr.bf16.mxu0 0
  %732 = vmatpush1.bf16.msra.mxu0 %v516
  %733 = vmatprep.subr.bf16.mxu0 0
  %734 = vmatpush1.bf16.msra.mxu0 %v517
  %735 = vmatprep.subr.bf16.mxu0 0
  %736 = vmatpush1.bf16.msra.mxu0 %v518
  %737 = vmatprep.subr.bf16.mxu0 0
  %738 = vmatpush1.bf16.msra.mxu0 %v519
  %739 = vmatprep.mubr.bf16.mxu0 %v191
  %740 = vmatmul.mubr.bf16.gmra.mrb[0].mxu0 %v190
  %v741 = vpop.f32.mrb[0].mxu0
  %v742 = vadd.f32 %v701, %v741
  %v743 = vpop.f32.mrb[0].mxu0
  %v744 = vpop.f32.mrb[0].mxu0
  %v745 = vadd.f32 %v704, %v744
  %v746 = vpop.f32.mrb[0].mxu0
  %747 = vdwg.mxu0
  %748 = vst [vmem:[%s3] sm:$0xff] %v742
  %749 = vst [vmem:[%s3 + $0x8] sm:$0xff] %v745
  %v750 = vlaneseq
  %v751 = vand.u32 %v750, 127
  %vm752 = vcmp.lt.s32.totalorder %v751, 8
  %v753 = vsel %vm752, %v742, -inf
  %v754 = vsel %vm752, %v745, -inf
  %755 = vmax.xlane.f32.xlu0 %v753
  %v756 = vpop.xlane.xlu0 %755
  %757 = vmax.xlane.f32.xlu0 %v754
  %v758 = vpop.xlane.xlu0 %757
  %v759 = vsub.f32 %v753, %v756
  %v760 = vsub.f32 %v754, %v758
  %v761 = vmul.f32 %v759, 1.442695
  %v762 = vpow.pop %v761
  %v763 = vmul.f32 %v760, 1.442695
  %v764 = vpow.pop %v763
  %765 = vadd.xlane.f32.xlu0 %v762
  %v766 = vpop.xlane.xlu0 %765
  %767 = vadd.xlane.f32.xlu0 %v764
  %v768 = vpop.xlane.xlu0 %767
  %v769 = vrcp.pop %v766
  %v770 = vrcp.pop %v768
  %v771 = vmul.f32 %v762, %v769
  %v772 = vmul.f32 %v764, %v770
  %773 = vst [vmem:[%s4] sm:$0xff] %v771
  %774 = vst [vmem:[%s4 + $0x8] sm:$0xff] %v772
  // Predicated region
  $region14: #{forward.5} parent=0 // pred_check
    _
  $region15: #{forward.5} parent=0 // pred_check_branch
    %776 = sbr.rel (0) target = $region17
  $region16: #{forward.5} parent=0 // pred_region
    _
  $region17: #{forward.5} parent=0 // pred_fallthru
    _
  // Predicated region
  $region18: #{forward.5} parent=0 // pred_check
    _
  $region19: #{forward.5} parent=0 // pred_check_branch
    %778 = sbr.rel (0) target = $region21
  $region20: #{forward.5} parent=0 // pred_region
    _
  $region21: #{forward.5} parent=0 // pred_fallthru
    _
  // Predicated region
  $region22: #{forward.5} parent=0 // pred_check
    _
  $region23: #{forward.5} parent=0 // pred_check_branch
    %780 = sbr.rel (0) target = $region25
  $region24: #{forward.5} parent=0 // pred_region
    _
  $region25: #{forward.5} parent=0 // pred_fallthru
    _
  // Predicated region
  $region26: #{forward.5} parent=0 // pred_check
    _
  $region27: #{forward.5} parent=0 // pred_check_branch
    %782 = sbr.rel (0) target = $region29
  $region28: #{forward.5} parent=0 // pred_region
    _
  $region29: #{forward.5} parent=0 // pred_fallthru
    _

</llo_original>
